<compile_context>
chip_gen: v7x
topology: tpu7x:2x2x1
jax: 0.10.0
libtpu: 0.0.40
codegen_flags: <defaults>
</compile_context>

<pallas_src>
import functools

import jax
import jax.numpy as jnp
from jax.experimental import pallas as pl
from jax.experimental.pallas import tpu as pltpu


def _round_up(x, m):
    return (x + m - 1) // m * m


def _pick_tile(mp):
    """Largest lane tile (<=1024) dividing the padded M extent."""
    for t in (1024, 512, 256, 128):
        if mp % t == 0:
            return t
    return 128


# ---------------------------------------------------------------------------
# Pallas kernels
# ---------------------------------------------------------------------------
def _fused_conv_kernel(w_ref, x_ref, s_ref, b_ref, *rest, relu, has_residual):
    """One M-tile of y = relu?(W @ X * scale + bias [+ residual]).

    w_ref: (Cout, Kp) bf16   x_ref: (Kp, tm) bf16
    s_ref/b_ref: (Cout, 1) f32   [r_ref: (Cout, tm) f32]   o_ref: (Cout, tm) f32
    K is fully contained in one block -> single MXU dot, no accumulator.
    """
    if has_residual:
        r_ref, o_ref = rest
    else:
        (o_ref,) = rest
    acc = jnp.dot(w_ref[...], x_ref[...], preferred_element_type=jnp.float32)
    y = acc * s_ref[...] + b_ref[...]
    if has_residual:
        y = y + r_ref[...]
    if relu:
        y = jnp.maximum(y, 0.0)
    o_ref[...] = y.astype(o_ref.dtype)


def _maxpool_kernel(p_ref, o_ref):
    # p_ref: (KK, C, tm) window taps -> max over taps, lane-dense output.
    o_ref[...] = jnp.max(p_ref[...], axis=0)


# ---------------------------------------------------------------------------
# Pallas wrappers
# ---------------------------------------------------------------------------
def fused_conv_matmul(wt, xt, scale, bias, residual=None, relu=True):
    """y[Cout, Mp] = relu?(wt @ xt * scale + bias [+ residual]).

    wt: (Cout, Kp) bf16, xt: (Kp, Mp) bf16, scale/bias: (Cout, 1) f32,
    residual: (Cout, Mp) f32 or None.
    """
    cout, kp = wt.shape
    _, mp = xt.shape
    tm = _pick_tile(mp)
    has_residual = residual is not None

    in_specs = [
        pl.BlockSpec((cout, kp), lambda i: (0, 0)),   # weights: resident
        pl.BlockSpec((kp, tm), lambda i: (0, i)),     # patches: streamed over M
        pl.BlockSpec((cout, 1), lambda i: (0, 0)),    # folded BN scale
        pl.BlockSpec((cout, 1), lambda i: (0, 0)),    # folded BN bias
    ]
    args = [wt, xt, scale, bias]
    if has_residual:
        in_specs.append(pl.BlockSpec((cout, tm), lambda i: (0, i)))
        args.append(residual)

    return pl.pallas_call(
        functools.partial(_fused_conv_kernel, relu=relu,
                          has_residual=has_residual),
        out_shape=jax.ShapeDtypeStruct((cout, mp), jnp.float32),
        grid=(mp // tm,),
        in_specs=in_specs,
        out_specs=pl.BlockSpec((cout, tm), lambda i: (0, i)),
        compiler_params=pltpu.CompilerParams(
            dimension_semantics=("parallel",)),
    )(*args)


def maxpool_window_reduce(patches):
    """patches: (KK, C, Mp) -> (C, Mp) max over window taps, tiled over M."""
    kk, c, mp = patches.shape
    tm = _pick_tile(mp)
    return pl.pallas_call(
        _maxpool_kernel,
        out_shape=jax.ShapeDtypeStruct((c, mp), patches.dtype),
        grid=(mp // tm,),
        in_specs=[pl.BlockSpec((kk, c, tm), lambda i: (0, 0, i))],
        out_specs=pl.BlockSpec((c, tm), lambda i: (0, i)),
        compiler_params=pltpu.CompilerParams(
            dimension_semantics=("parallel",)),
    )(patches)


# ---------------------------------------------------------------------------
# im2col glue (plain JAX), channel-major layout [C, N, H, W]
# ---------------------------------------------------------------------------
# TODO(synk): im2col still materializes the kh*kw-amplified patch matrix in HBM;
# an in-kernel tap gather would cut activation reads ~9x at real resolutions.
def im2col_cmajor(a, kh, kw, stride, pad, pad_value=0.0):
    # a: [C, N, H, W] -> patches [kh*kw, C, N, Ho, Wo]  (K index = tap*C + c)
    c, n, h, w = a.shape
    ho = (h + 2 * pad - kh) // stride + 1
    wo = (w + 2 * pad - kw) // stride + 1
    ap = jnp.pad(a, ((0, 0), (0, 0), (pad, pad), (pad, pad)),
                 constant_values=pad_value)
    taps = []
    for i in range(kh):
        for j in range(kw):
            taps.append(ap[:, :, i:i + ho * stride:stride,
                           j:j + wo * stride:stride])
    return jnp.stack(taps, axis=0), (n, ho, wo)


def conv_bn_act(a, conv, residual=None, relu=True):
    """a: [Cin, N, H, W] f32 -> [Cout, N, Ho, Wo] f32 via fused Pallas matmul."""
    kh, kw, stride, pad = conv["kh"], conv["kw"], conv["stride"], conv["pad"]
    cin = a.shape[0]
    cout, kp = conv["wt"].shape
    p, (n, ho, wo) = im2col_cmajor(a, kh, kw, stride, pad)
    k = kh * kw * cin
    m = n * ho * wo
    mp = _round_up(m, 128)

    xt = jnp.zeros((kp, mp), jnp.bfloat16)
    xt = xt.at[:k, :m].set(p.reshape(k, m).astype(jnp.bfloat16))

    res = None
    if residual is not None:
        res = jnp.zeros((cout, mp), jnp.float32)
        res = res.at[:, :m].set(residual.reshape(cout, m))

    y = fused_conv_matmul(conv["wt"], xt, conv["scale"], conv["bias"],
                          residual=res, relu=relu)
    return y[:, :m].reshape(cout, n, ho, wo)


def maxpool3x3s2(a):
    # a: [C, N, H, W] -> [C, N, Ho, Wo]
    c, n, h, w = a.shape
    p, (_, ho, wo) = im2col_cmajor(a, 3, 3, 2, 1, pad_value=-1e30)
    m = n * ho * wo
    mp = _round_up(m, 128)
    patches = jnp.full((9, c, mp), -1e30, jnp.float32)
    patches = patches.at[:, :, :m].set(p.reshape(9, c, m))
    y = maxpool_window_reduce(patches)
    return y[:, :m].reshape(c, n, ho, wo)


# ---------------------------------------------------------------------------
# Parameters: deterministic synthetic init; BN folded; weights packed ONCE
# (flattened HWIO -> [Cout, Kp], K zero-padded to 128 multiple, bf16 cast).
# ---------------------------------------------------------------------------
def init_conv_w(key, kh, kw, cin, cout):
    fan_in = kh * kw * cin
    return (jax.random.normal(key, (kh, kw, cin, cout), jnp.float32)
            * (2.0 / fan_in) ** 0.5)


def init_bn(key, c, eps=1e-5):
    k1, k2, k3, k4 = jax.random.split(key, 4)
    gamma = jax.random.uniform(k1, (c,), minval=0.5, maxval=1.5)
    beta = jax.random.normal(k2, (c,)) * 0.1
    mean = jax.random.normal(k3, (c,)) * 0.1
    var = jax.random.uniform(k4, (c,), minval=0.5, maxval=1.5)
    scale = gamma / jnp.sqrt(var + eps)
    bias = beta - mean * scale
    return scale, bias


def pack_conv(w_hwio, scale, bias, stride, pad):
    kh, kw, cin, cout = w_hwio.shape
    k = kh * kw * cin
    kp = _round_up(k, 128)
    wt = jnp.zeros((cout, kp), jnp.bfloat16)
    wt = wt.at[:, :k].set(w_hwio.reshape(k, cout).T.astype(jnp.bfloat16))
    return {
        "wt": wt,
        "scale": scale.reshape(cout, 1).astype(jnp.float32),
        "bias": bias.reshape(cout, 1).astype(jnp.float32),
        "kh": kh, "kw": kw, "stride": stride, "pad": pad,
    }


def init_params(key, base=8, blocks=(2, 2, 2, 2), in_ch=3):
    keys = iter(jax.random.split(key, 256))
    params = {
        "conv1": pack_conv(init_conv_w(next(keys), 7, 7, in_ch, base),
                           *init_bn(next(keys), base), stride=2, pad=3),
    }
    cin = base
    widths = [base, base * 2, base * 4, base * 8]
    for li, (w, nb) in enumerate(zip(widths, blocks)):
        layer = []
        for b in range(nb):
            stride = 1 if (li == 0 or b > 0) else 2
            bp = {
                "conv1": pack_conv(init_conv_w(next(keys), 3, 3, cin, w),
                                   *init_bn(next(keys), w),
                                   stride=stride, pad=1),
                "conv2": pack_conv(init_conv_w(next(keys), 3, 3, w, w),
                                   *init_bn(next(keys), w), stride=1, pad=1),
            }
            if stride != 1 or cin != w:
                bp["down"] = pack_conv(init_conv_w(next(keys), 1, 1, cin, w),
                                       *init_bn(next(keys), w),
                                       stride=stride, pad=0)
            layer.append(bp)
            cin = w
        params[f"layer{li + 1}"] = layer
    return params


# ---------------------------------------------------------------------------
# ResNetBackbone forward (conv1 -> bn1 -> relu -> maxpool -> layer1..layer4)
# ---------------------------------------------------------------------------
def basic_block(a, bp):
    identity = a
    if "down" in bp:
        identity = conv_bn_act(a, bp["down"], relu=False)
    out = conv_bn_act(a, bp["conv1"], relu=True)
    out = conv_bn_act(out, bp["conv2"], residual=identity, relu=True)
    return out


def resnet_backbone_forward(x_nchw, params):
    # NCHW -> channel-major [C, N, H, W] internal layout (spatial on lanes).
    a = jnp.transpose(x_nchw, (1, 0, 2, 3)).astype(jnp.float32)
    a = conv_bn_act(a, params["conv1"], relu=True)
    a = maxpool3x3s2(a)
    for layer in ("layer1", "layer2", "layer3", "layer4"):
        for bp in params[layer]:
            a = basic_block(a, bp)
    return jnp.transpose(a, (1, 0, 2, 3))  # back to NCHW (matches PyTorch out)


# TODO(synk): BatchNorm training-mode (batch statistics) is not implemented;
# inference semantics (running stats folded into scale/bias) are used.

if __name__ == "__main__":
    key = jax.random.PRNGKey(0)
    xkey, pkey = jax.random.split(key)
    # Small shapes: batch=2, 3 input channels, 32x32 spatial, base width 8
    # (-> layer widths 8/16/32/64, final spatial 1x1).
    x = jax.random.normal(xkey, (2, 3, 32, 32), jnp.float32)
    params = init_params(pkey, base=8)

    fwd = jax.jit(lambda inp: resnet_backbone_forward(inp, params))
    out = fwd(x)
    out = jax.block_until_ready(out)
    assert out.shape == (2, 64, 1, 1), out.shape
    assert jnp.all(jnp.isfinite(out))
    print("KERNEL_OK")
</pallas_src>

<mosaic_0001>
module attributes {stable_mosaic.version = 11 : i64} {
  func.func @_fused_conv_kernel(%arg0: i32, %arg1: memref<8x256xbf16, #tpu.memory_space<vmem>>, %arg2: memref<256x512xbf16, #tpu.memory_space<vmem>>, %arg3: memref<8x1xf32, #tpu.memory_space<vmem>>, %arg4: memref<8x1xf32, #tpu.memory_space<vmem>>, %arg5: memref<8x512xf32, #tpu.memory_space<vmem>>) attributes {dimension_semantics = [#tpu.dimension_semantics<parallel>], iteration_bounds = array<i64: 1>, scalar_prefetch = 0 : i64, scratch_operands = 0 : i64, tpu.core_type = #tpu.core_type<tc>, window_params = [{pipeline_mode = #tpu.pipeline_mode<synchronous>, transform_indices = @transform_0, window_bounds = array<i64: 8, 256>}, {transform_indices = @transform_1, window_bounds = array<i64: 256, 512>}, {pipeline_mode = #tpu.pipeline_mode<synchronous>, transform_indices = @transform_2, window_bounds = array<i64: 8, 1>}, {pipeline_mode = #tpu.pipeline_mode<synchronous>, transform_indices = @transform_3, window_bounds = array<i64: 8, 1>}, {transform_indices = @transform_4, window_bounds = array<i64: 8, 512>}]} {
    %c0 = arith.constant 0 : index
    %c0_0 = arith.constant 0 : index
    %0 = vector.load %arg1[%c0, %c0_0] : memref<8x256xbf16, #tpu.memory_space<vmem>>, vector<8x256xbf16>
    %c0_1 = arith.constant 0 : index
    %c0_2 = arith.constant 0 : index
    %1 = vector.load %arg2[%c0_1, %c0_2] : memref<256x512xbf16, #tpu.memory_space<vmem>>, vector<256x512xbf16>
    %cst = arith.constant dense<0.000000e+00> : vector<8x512xf32>
    %2 = tpu.matmul %0, %1, %cst {dimension_numbers = #tpu.dot_dimension_numbers<[1], [0], [0], [1], [0, 0, 1, 1], [], []>} : vector<8x256xbf16>, vector<256x512xbf16>, vector<8x512xf32> -> vector<8x512xf32>
    %c0_3 = arith.constant 0 : index
    %c0_4 = arith.constant 0 : index
    %3 = vector.load %arg3[%c0_3, %c0_4] : memref<8x1xf32, #tpu.memory_space<vmem>>, vector<8x1xf32>
    %4 = vector.broadcast %3 : vector<8x1xf32> to vector<8x512xf32>
    %5 = arith.mulf %2, %4 : vector<8x512xf32>
    %c0_5 = arith.constant 0 : index
    %c0_6 = arith.constant 0 : index
    %6 = vector.load %arg4[%c0_5, %c0_6] : memref<8x1xf32, #tpu.memory_space<vmem>>, vector<8x1xf32>
    %7 = vector.broadcast %6 : vector<8x1xf32> to vector<8x512xf32>
    %8 = arith.addf %5, %7 : vector<8x512xf32>
    %cst_7 = arith.constant 0.000000e+00 : f32
    %9 = vector.broadcast %cst_7 : f32 to vector<8x512xf32>
    %10 = arith.maximumf %8, %9 : vector<8x512xf32>
    %c0_8 = arith.constant 0 : index
    %c0_9 = arith.constant 0 : index
    %11 = vector.load %arg5[%c0_8, %c0_9] : memref<8x512xf32, #tpu.memory_space<vmem>>, vector<8x512xf32>
    tpu.vector_store %arg5[%c0_8, %c0_9], %10 {strides = array<i32>} : memref<8x512xf32, #tpu.memory_space<vmem>>, vector<8x512xf32>,
    return
  }
  func.func @transform_0(%arg0: i32) -> (i32, i32) {
    %c0_i32 = arith.constant 0 : i32
    %c0_i32_0 = arith.constant 0 : i32
    %c0_i32_1 = arith.constant 0 : i32
    return %c0_i32, %c0_i32_0 : i32, i32
  }
  func.func @transform_1(%arg0: i32) -> (i32, i32) {
    %c0_i32 = arith.constant 0 : i32
    %c0_i32_0 = arith.constant 0 : i32
    return %c0_i32, %arg0 : i32, i32
  }
  func.func @transform_2(%arg0: i32) -> (i32, i32) {
    %c0_i32 = arith.constant 0 : i32
    %c0_i32_0 = arith.constant 0 : i32
    %c0_i32_1 = arith.constant 0 : i32
    return %c0_i32, %c0_i32_0 : i32, i32
  }
  func.func @transform_3(%arg0: i32) -> (i32, i32) {
    %c0_i32 = arith.constant 0 : i32
    %c0_i32_0 = arith.constant 0 : i32
    %c0_i32_1 = arith.constant 0 : i32
    return %c0_i32, %c0_i32_0 : i32, i32
  }
  func.func @transform_4(%arg0: i32) -> (i32, i32) {
    %c0_i32 = arith.constant 0 : i32
    %c0_i32_0 = arith.constant 0 : i32
    return %c0_i32, %arg0 : i32, i32
  }
}

module attributes {stable_mosaic.version = 11 : i64} {
  func.func @_maxpool_kernel(%arg0: i32, %arg1: memref<9x8x128xf32, #tpu.memory_space<vmem>>, %arg2: memref<8x128xf32, #tpu.memory_space<vmem>>) attributes {dimension_semantics = [#tpu.dimension_semantics<parallel>], iteration_bounds = array<i64: 1>, scalar_prefetch = 0 : i64, scratch_operands = 0 : i64, tpu.core_type = #tpu.core_type<tc>, window_params = [{transform_indices = @transform_0, window_bounds = array<i64: 9, 8, 128>}, {transform_indices = @transform_1, window_bounds = array<i64: 8, 128>}]} {
    %c0 = arith.constant 0 : index
    %c0_0 = arith.constant 0 : index
    %c0_1 = arith.constant 0 : index
    %0 = vector.load %arg1[%c0, %c0_0, %c0_1] : memref<9x8x128xf32, #tpu.memory_space<vmem>>, vector<9x8x128xf32>
    %cst = arith.constant dense<0xFF800000> : vector<8x128xf32>
    %1 = vector.multi_reduction <maximumf>, %0, %cst [0] : vector<9x8x128xf32> to vector<8x128xf32>
    %c0_2 = arith.constant 0 : index
    %c0_3 = arith.constant 0 : index
    %2 = vector.load %arg2[%c0_2, %c0_3] : memref<8x128xf32, #tpu.memory_space<vmem>>, vector<8x128xf32>
    tpu.vector_store %arg2[%c0_2, %c0_3], %1 {strides = array<i32>} : memref<8x128xf32, #tpu.memory_space<vmem>>, vector<8x128xf32>,
    return
  }
  func.func @transform_0(%arg0: i32) -> (i32, i32, i32) {
    %c0_i32 = arith.constant 0 : i32
    %c0_i32_0 = arith.constant 0 : i32
    %c0_i32_1 = arith.constant 0 : i32
    return %c0_i32, %c0_i32_0, %arg0 : i32, i32, i32
  }
  func.func @transform_1(%arg0: i32) -> (i32, i32) {
    %c0_i32 = arith.constant 0 : i32
    %c0_i32_0 = arith.constant 0 : i32
    return %c0_i32, %arg0 : i32, i32
  }
}

module attributes {stable_mosaic.version = 11 : i64} {
  func.func @_fused_conv_kernel(%arg0: i32, %arg1: memref<8x128xbf16, #tpu.memory_space<vmem>>, %arg2: memref<128x128xbf16, #tpu.memory_space<vmem>>, %arg3: memref<8x1xf32, #tpu.memory_space<vmem>>, %arg4: memref<8x1xf32, #tpu.memory_space<vmem>>, %arg5: memref<8x128xf32, #tpu.memory_space<vmem>>, %arg6: memref<8x128xf32, #tpu.memory_space<vmem>>) attributes {dimension_semantics = [#tpu.dimension_semantics<parallel>], iteration_bounds = array<i64: 1>, scalar_prefetch = 0 : i64, scratch_operands = 0 : i64, tpu.core_type = #tpu.core_type<tc>, window_params = [{pipeline_mode = #tpu.pipeline_mode<synchronous>, transform_indices = @transform_0, window_bounds = array<i64: 8, 128>}, {transform_indices = @transform_1, window_bounds = array<i64: 128, 128>}, {pipeline_mode = #tpu.pipeline_mode<synchronous>, transform_indices = @transform_2, window_bounds = array<i64: 8, 1>}, {pipeline_mode = #tpu.pipeline_mode<synchronous>, transform_indices = @transform_3, window_bounds = array<i64: 8, 1>}, {transform_indices = @transform_4, window_bounds = array<i64: 8, 128>}, {transform_indices = @transform_5, window_bounds = array<i64: 8, 128>}]} {
    %c0 = arith.constant 0 : index
    %c0_0 = arith.constant 0 : index
    %0 = vector.load %arg1[%c0, %c0_0] : memref<8x128xbf16, #tpu.memory_space<vmem>>, vector<8x128xbf16>
    %c0_1 = arith.constant 0 : index
    %c0_2 = arith.constant 0 : index
    %1 = vector.load %arg2[%c0_1, %c0_2] : memref<128x128xbf16, #tpu.memory_space<vmem>>, vector<128x128xbf16>
    %cst = arith.constant dense<0.000000e+00> : vector<8x128xf32>
    %2 = tpu.matmul %0, %1, %cst {dimension_numbers = #tpu.dot_dimension_numbers<[1], [0], [0], [1], [0, 0, 1, 1], [], []>} : vector<8x128xbf16>, vector<128x128xbf16>, vector<8x128xf32> -> vector<8x128xf32>
    %c0_3 = arith.constant 0 : index
    %c0_4 = arith.constant 0 : index
    %3 = vector.load %arg3[%c0_3, %c0_4] : memref<8x1xf32, #tpu.memory_space<vmem>>, vector<8x1xf32>
    %4 = vector.broadcast %3 : vector<8x1xf32> to vector<8x128xf32>
    %5 = arith.mulf %2, %4 : vector<8x128xf32>
    %c0_5 = arith.constant 0 : index
    %c0_6 = arith.constant 0 : index
    %6 = vector.load %arg4[%c0_5, %c0_6] : memref<8x1xf32, #tpu.memory_space<vmem>>, vector<8x1xf32>
    %7 = vector.broadcast %6 : vector<8x1xf32> to vector<8x128xf32>
    %8 = arith.addf %5, %7 : vector<8x128xf32>
    %c0_7 = arith.constant 0 : index
    %c0_8 = arith.constant 0 : index
    %9 = vector.load %arg5[%c0_7, %c0_8] : memref<8x128xf32, #tpu.memory_space<vmem>>, vector<8x128xf32>
    %10 = arith.addf %8, %9 : vector<8x128xf32>
    %cst_9 = arith.constant 0.000000e+00 : f32
    %11 = vector.broadcast %cst_9 : f32 to vector<8x128xf32>
    %12 = arith.maximumf %10, %11 : vector<8x128xf32>
    %c0_10 = arith.constant 0 : index
    %c0_11 = arith.constant 0 : index
    %13 = vector.load %arg6[%c0_10, %c0_11] : memref<8x128xf32, #tpu.memory_space<vmem>>, vector<8x128xf32>
    tpu.vector_store %arg6[%c0_10, %c0_11], %12 {strides = array<i32>} : memref<8x128xf32, #tpu.memory_space<vmem>>, vector<8x128xf32>,
    return
  }
  func.func @transform_0(%arg0: i32) -> (i32, i32) {
    %c0_i32 = arith.constant 0 : i32
    %c0_i32_0 = arith.constant 0 : i32
    %c0_i32_1 = arith.constant 0 : i32
    return %c0_i32, %c0_i32_0 : i32, i32
  }
  func.func @transform_1(%arg0: i32) -> (i32, i32) {
    %c0_i32 = arith.constant 0 : i32
    %c0_i32_0 = arith.constant 0 : i32
    return %c0_i32, %arg0 : i32, i32
  }
  func.func @transform_2(%arg0: i32) -> (i32, i32) {
    %c0_i32 = arith.constant 0 : i32
    %c0_i32_0 = arith.constant 0 : i32
    %c0_i32_1 = arith.constant 0 : i32
    return %c0_i32, %c0_i32_0 : i32, i32
  }
  func.func @transform_3(%arg0: i32) -> (i32, i32) {
    %c0_i32 = arith.constant 0 : i32
    %c0_i32_0 = arith.constant 0 : i32
    %c0_i32_1 = arith.constant 0 : i32
    return %c0_i32, %c0_i32_0 : i32, i32
  }
  func.func @transform_4(%arg0: i32) -> (i32, i32) {
    %c0_i32 = arith.constant 0 : i32
    %c0_i32_0 = arith.constant 0 : i32
    return %c0_i32, %arg0 : i32, i32
  }
  func.func @transform_5(%arg0: i32) -> (i32, i32) {
    %c0_i32 = arith.constant 0 : i32
    %c0_i32_0 = arith.constant 0 : i32
    return %c0_i32, %arg0 : i32, i32
  }
}

module attributes {stable_mosaic.version = 11 : i64} {
  func.func @_fused_conv_kernel(%arg0: i32, %arg1: memref<8x128xbf16, #tpu.memory_space<vmem>>, %arg2: memref<128x128xbf16, #tpu.memory_space<vmem>>, %arg3: memref<8x1xf32, #tpu.memory_space<vmem>>, %arg4: memref<8x1xf32, #tpu.memory_space<vmem>>, %arg5: memref<8x128xf32, #tpu.memory_space<vmem>>) attributes {dimension_semantics = [#tpu.dimension_semantics<parallel>], iteration_bounds = array<i64: 1>, scalar_prefetch = 0 : i64, scratch_operands = 0 : i64, tpu.core_type = #tpu.core_type<tc>, window_params = [{pipeline_mode = #tpu.pipeline_mode<synchronous>, transform_indices = @transform_0, window_bounds = array<i64: 8, 128>}, {transform_indices = @transform_1, window_bounds = array<i64: 128, 128>}, {pipeline_mode = #tpu.pipeline_mode<synchronous>, transform_indices = @transform_2, window_bounds = array<i64: 8, 1>}, {pipeline_mode = #tpu.pipeline_mode<synchronous>, transform_indices = @transform_3, window_bounds = array<i64: 8, 1>}, {transform_indices = @transform_4, window_bounds = array<i64: 8, 128>}]} {
    %c0 = arith.constant 0 : index
    %c0_0 = arith.constant 0 : index
    %0 = vector.load %arg1[%c0, %c0_0] : memref<8x128xbf16, #tpu.memory_space<vmem>>, vector<8x128xbf16>
    %c0_1 = arith.constant 0 : index
    %c0_2 = arith.constant 0 : index
    %1 = vector.load %arg2[%c0_1, %c0_2] : memref<128x128xbf16, #tpu.memory_space<vmem>>, vector<128x128xbf16>
    %cst = arith.constant dense<0.000000e+00> : vector<8x128xf32>
    %2 = tpu.matmul %0, %1, %cst {dimension_numbers = #tpu.dot_dimension_numbers<[1], [0], [0], [1], [0, 0, 1, 1], [], []>} : vector<8x128xbf16>, vector<128x128xbf16>, vector<8x128xf32> -> vector<8x128xf32>
    %c0_3 = arith.constant 0 : index
    %c0_4 = arith.constant 0 : index
    %3 = vector.load %arg3[%c0_3, %c0_4] : memref<8x1xf32, #tpu.memory_space<vmem>>, vector<8x1xf32>
    %4 = vector.broadcast %3 : vector<8x1xf32> to vector<8x128xf32>
    %5 = arith.mulf %2, %4 : vector<8x128xf32>
    %c0_5 = arith.constant 0 : index
    %c0_6 = arith.constant 0 : index
    %6 = vector.load %arg4[%c0_5, %c0_6] : memref<8x1xf32, #tpu.memory_space<vmem>>, vector<8x1xf32>
    %7 = vector.broadcast %6 : vector<8x1xf32> to vector<8x128xf32>
    %8 = arith.addf %5, %7 : vector<8x128xf32>
    %cst_7 = arith.constant 0.000000e+00 : f32
    %9 = vector.broadcast %cst_7 : f32 to vector<8x128xf32>
    %10 = arith.maximumf %8, %9 : vector<8x128xf32>
    %c0_8 = arith.constant 0 : index
    %c0_9 = arith.constant 0 : index
    %11 = vector.load %arg5[%c0_8, %c0_9] : memref<8x128xf32, #tpu.memory_space<vmem>>, vector<8x128xf32>
    tpu.vector_store %arg5[%c0_8, %c0_9], %10 {strides = array<i32>} : memref<8x128xf32, #tpu.memory_space<vmem>>, vector<8x128xf32>,
    return
  }
  func.func @transform_0(%arg0: i32) -> (i32, i32) {
    %c0_i32 = arith.constant 0 : i32
    %c0_i32_0 = arith.constant 0 : i32
    %c0_i32_1 = arith.constant 0 : i32
    return %c0_i32, %c0_i32_0 : i32, i32
  }
  func.func @transform_1(%arg0: i32) -> (i32, i32) {
    %c0_i32 = arith.constant 0 : i32
    %c0_i32_0 = arith.constant 0 : i32
    return %c0_i32, %arg0 : i32, i32
  }
  func.func @transform_2(%arg0: i32) -> (i32, i32) {
    %c0_i32 = arith.constant 0 : i32
    %c0_i32_0 = arith.constant 0 : i32
    %c0_i32_1 = arith.constant 0 : i32
    return %c0_i32, %c0_i32_0 : i32, i32
  }
  func.func @transform_3(%arg0: i32) -> (i32, i32) {
    %c0_i32 = arith.constant 0 : i32
    %c0_i32_0 = arith.constant 0 : i32
    %c0_i32_1 = arith.constant 0 : i32
    return %c0_i32, %c0_i32_0 : i32, i32
  }
  func.func @transform_4(%arg0: i32) -> (i32, i32) {
    %c0_i32 = arith.constant 0 : i32
    %c0_i32_0 = arith.constant 0 : i32
    return %c0_i32, %arg0 : i32, i32
  }
}

module attributes {stable_mosaic.version = 11 : i64} {
  func.func @_fused_conv_kernel(%arg0: i32, %arg1: memref<16x128xbf16, #tpu.memory_space<vmem>>, %arg2: memref<128x128xbf16, #tpu.memory_space<vmem>>, %arg3: memref<16x1xf32, #tpu.memory_space<vmem>>, %arg4: memref<16x1xf32, #tpu.memory_space<vmem>>, %arg5: memref<16x128xf32, #tpu.memory_space<vmem>>) attributes {dimension_semantics = [#tpu.dimension_semantics<parallel>], iteration_bounds = array<i64: 1>, scalar_prefetch = 0 : i64, scratch_operands = 0 : i64, tpu.core_type = #tpu.core_type<tc>, window_params = [{pipeline_mode = #tpu.pipeline_mode<synchronous>, transform_indices = @transform_0, window_bounds = array<i64: 16, 128>}, {transform_indices = @transform_1, window_bounds = array<i64: 128, 128>}, {pipeline_mode = #tpu.pipeline_mode<synchronous>, transform_indices = @transform_2, window_bounds = array<i64: 16, 1>}, {pipeline_mode = #tpu.pipeline_mode<synchronous>, transform_indices = @transform_3, window_bounds = array<i64: 16, 1>}, {transform_indices = @transform_4, window_bounds = array<i64: 16, 128>}]} {
    %c0 = arith.constant 0 : index
    %c0_0 = arith.constant 0 : index
    %0 = vector.load %arg1[%c0, %c0_0] : memref<16x128xbf16, #tpu.memory_space<vmem>>, vector<16x128xbf16>
    %c0_1 = arith.constant 0 : index
    %c0_2 = arith.constant 0 : index
    %1 = vector.load %arg2[%c0_1, %c0_2] : memref<128x128xbf16, #tpu.memory_space<vmem>>, vector<128x128xbf16>
    %cst = arith.constant dense<0.000000e+00> : vector<16x128xf32>
    %2 = tpu.matmul %0, %1, %cst {dimension_numbers = #tpu.dot_dimension_numbers<[1], [0], [0], [1], [0, 0, 1, 1], [], []>} : vector<16x128xbf16>, vector<128x128xbf16>, vector<16x128xf32> -> vector<16x128xf32>
    %c0_3 = arith.constant 0 : index
    %c0_4 = arith.constant 0 : index
    %3 = vector.load %arg3[%c0_3, %c0_4] : memref<16x1xf32, #tpu.memory_space<vmem>>, vector<16x1xf32>
    %4 = vector.broadcast %3 : vector<16x1xf32> to vector<16x128xf32>
    %5 = arith.mulf %2, %4 : vector<16x128xf32>
    %c0_5 = arith.constant 0 : index
    %c0_6 = arith.constant 0 : index
    %6 = vector.load %arg4[%c0_5, %c0_6] : memref<16x1xf32, #tpu.memory_space<vmem>>, vector<16x1xf32>
    %7 = vector.broadcast %6 : vector<16x1xf32> to vector<16x128xf32>
    %8 = arith.addf %5, %7 : vector<16x128xf32>
    %cst_7 = arith.constant 0.000000e+00 : f32
    %9 = vector.broadcast %cst_7 : f32 to vector<16x128xf32>
    %10 = arith.maximumf %8, %9 : vector<16x128xf32>
    %c0_8 = arith.constant 0 : index
    %c0_9 = arith.constant 0 : index
    %11 = vector.load %arg5[%c0_8, %c0_9] : memref<16x128xf32, #tpu.memory_space<vmem>>, vector<16x128xf32>
    tpu.vector_store %arg5[%c0_8, %c0_9], %10 {strides = array<i32>} : memref<16x128xf32, #tpu.memory_space<vmem>>, vector<16x128xf32>,
    return
  }
  func.func @transform_0(%arg0: i32) -> (i32, i32) {
    %c0_i32 = arith.constant 0 : i32
    %c0_i32_0 = arith.constant 0 : i32
    %c0_i32_1 = arith.constant 0 : i32
    return %c0_i32, %c0_i32_0 : i32, i32
  }
  func.func @transform_1(%arg0: i32) -> (i32, i32) {
    %c0_i32 = arith.constant 0 : i32
    %c0_i32_0 = arith.constant 0 : i32
    return %c0_i32, %arg0 : i32, i32
  }
  func.func @transform_2(%arg0: i32) -> (i32, i32) {
    %c0_i32 = arith.constant 0 : i32
    %c0_i32_0 = arith.constant 0 : i32
    %c0_i32_1 = arith.constant 0 : i32
    return %c0_i32, %c0_i32_0 : i32, i32
  }
  func.func @transform_3(%arg0: i32) -> (i32, i32) {
    %c0_i32 = arith.constant 0 : i32
    %c0_i32_0 = arith.constant 0 : i32
    %c0_i32_1 = arith.constant 0 : i32
    return %c0_i32, %c0_i32_0 : i32, i32
  }
  func.func @transform_4(%arg0: i32) -> (i32, i32) {
    %c0_i32 = arith.constant 0 : i32
    %c0_i32_0 = arith.constant 0 : i32
    return %c0_i32, %arg0 : i32, i32
  }
}

module attributes {stable_mosaic.version = 11 : i64} {
  func.func @_fused_conv_kernel(%arg0: i32, %arg1: memref<16x128xbf16, #tpu.memory_space<vmem>>, %arg2: memref<128x128xbf16, #tpu.memory_space<vmem>>, %arg3: memref<16x1xf32, #tpu.memory_space<vmem>>, %arg4: memref<16x1xf32, #tpu.memory_space<vmem>>, %arg5: memref<16x128xf32, #tpu.memory_space<vmem>>) attributes {dimension_semantics = [#tpu.dimension_semantics<parallel>], iteration_bounds = array<i64: 1>, scalar_prefetch = 0 : i64, scratch_operands = 0 : i64, tpu.core_type = #tpu.core_type<tc>, window_params = [{pipeline_mode = #tpu.pipeline_mode<synchronous>, transform_indices = @transform_0, window_bounds = array<i64: 16, 128>}, {transform_indices = @transform_1, window_bounds = array<i64: 128, 128>}, {pipeline_mode = #tpu.pipeline_mode<synchronous>, transform_indices = @transform_2, window_bounds = array<i64: 16, 1>}, {pipeline_mode = #tpu.pipeline_mode<synchronous>, transform_indices = @transform_3, window_bounds = array<i64: 16, 1>}, {transform_indices = @transform_4, window_bounds = array<i64: 16, 128>}]} {
    %c0 = arith.constant 0 : index
    %c0_0 = arith.constant 0 : index
    %0 = vector.load %arg1[%c0, %c0_0] : memref<16x128xbf16, #tpu.memory_space<vmem>>, vector<16x128xbf16>
    %c0_1 = arith.constant 0 : index
    %c0_2 = arith.constant 0 : index
    %1 = vector.load %arg2[%c0_1, %c0_2] : memref<128x128xbf16, #tpu.memory_space<vmem>>, vector<128x128xbf16>
    %cst = arith.constant dense<0.000000e+00> : vector<16x128xf32>
    %2 = tpu.matmul %0, %1, %cst {dimension_numbers = #tpu.dot_dimension_numbers<[1], [0], [0], [1], [0, 0, 1, 1], [], []>} : vector<16x128xbf16>, vector<128x128xbf16>, vector<16x128xf32> -> vector<16x128xf32>
    %c0_3 = arith.constant 0 : index
    %c0_4 = arith.constant 0 : index
    %3 = vector.load %arg3[%c0_3, %c0_4] : memref<16x1xf32, #tpu.memory_space<vmem>>, vector<16x1xf32>
    %4 = vector.broadcast %3 : vector<16x1xf32> to vector<16x128xf32>
    %5 = arith.mulf %2, %4 : vector<16x128xf32>
    %c0_5 = arith.constant 0 : index
    %c0_6 = arith.constant 0 : index
    %6 = vector.load %arg4[%c0_5, %c0_6] : memref<16x1xf32, #tpu.memory_space<vmem>>, vector<16x1xf32>
    %7 = vector.broadcast %6 : vector<16x1xf32> to vector<16x128xf32>
    %8 = arith.addf %5, %7 : vector<16x128xf32>
    %c0_7 = arith.constant 0 : index
    %c0_8 = arith.constant 0 : index
    %9 = vector.load %arg5[%c0_7, %c0_8] : memref<16x128xf32, #tpu.memory_space<vmem>>, vector<16x128xf32>
    tpu.vector_store %arg5[%c0_7, %c0_8], %8 {strides = array<i32>} : memref<16x128xf32, #tpu.memory_space<vmem>>, vector<16x128xf32>,
    return
  }
  func.func @transform_0(%arg0: i32) -> (i32, i32) {
    %c0_i32 = arith.constant 0 : i32
    %c0_i32_0 = arith.constant 0 : i32
    %c0_i32_1 = arith.constant 0 : i32
    return %c0_i32, %c0_i32_0 : i32, i32
  }
  func.func @transform_1(%arg0: i32) -> (i32, i32) {
    %c0_i32 = arith.constant 0 : i32
    %c0_i32_0 = arith.constant 0 : i32
    return %c0_i32, %arg0 : i32, i32
  }
  func.func @transform_2(%arg0: i32) -> (i32, i32) {
    %c0_i32 = arith.constant 0 : i32
    %c0_i32_0 = arith.constant 0 : i32
    %c0_i32_1 = arith.constant 0 : i32
    return %c0_i32, %c0_i32_0 : i32, i32
  }
  func.func @transform_3(%arg0: i32) -> (i32, i32) {
    %c0_i32 = arith.constant 0 : i32
    %c0_i32_0 = arith.constant 0 : i32
    %c0_i32_1 = arith.constant 0 : i32
    return %c0_i32, %c0_i32_0 : i32, i32
  }
  func.func @transform_4(%arg0: i32) -> (i32, i32) {
    %c0_i32 = arith.constant 0 : i32
    %c0_i32_0 = arith.constant 0 : i32
    return %c0_i32, %arg0 : i32, i32
  }
}

module attributes {stable_mosaic.version = 11 : i64} {
  func.func @_fused_conv_kernel(%arg0: i32, %arg1: memref<16x256xbf16, #tpu.memory_space<vmem>>, %arg2: memref<256x128xbf16, #tpu.memory_space<vmem>>, %arg3: memref<16x1xf32, #tpu.memory_space<vmem>>, %arg4: memref<16x1xf32, #tpu.memory_space<vmem>>, %arg5: memref<16x128xf32, #tpu.memory_space<vmem>>) attributes {dimension_semantics = [#tpu.dimension_semantics<parallel>], iteration_bounds = array<i64: 1>, scalar_prefetch = 0 : i64, scratch_operands = 0 : i64, tpu.core_type = #tpu.core_type<tc>, window_params = [{pipeline_mode = #tpu.pipeline_mode<synchronous>, transform_indices = @transform_0, window_bounds = array<i64: 16, 256>}, {transform_indices = @transform_1, window_bounds = array<i64: 256, 128>}, {pipeline_mode = #tpu.pipeline_mode<synchronous>, transform_indices = @transform_2, window_bounds = array<i64: 16, 1>}, {pipeline_mode = #tpu.pipeline_mode<synchronous>, transform_indices = @transform_3, window_bounds = array<i64: 16, 1>}, {transform_indices = @transform_4, window_bounds = array<i64: 16, 128>}]} {
    %c0 = arith.constant 0 : index
    %c0_0 = arith.constant 0 : index
    %0 = vector.load %arg1[%c0, %c0_0] : memref<16x256xbf16, #tpu.memory_space<vmem>>, vector<16x256xbf16>
    %c0_1 = arith.constant 0 : index
    %c0_2 = arith.constant 0 : index
    %1 = vector.load %arg2[%c0_1, %c0_2] : memref<256x128xbf16, #tpu.memory_space<vmem>>, vector<256x128xbf16>
    %cst = arith.constant dense<0.000000e+00> : vector<16x128xf32>
    %2 = tpu.matmul %0, %1, %cst {dimension_numbers = #tpu.dot_dimension_numbers<[1], [0], [0], [1], [0, 0, 1, 1], [], []>} : vector<16x256xbf16>, vector<256x128xbf16>, vector<16x128xf32> -> vector<16x128xf32>
    %c0_3 = arith.constant 0 : index
    %c0_4 = arith.constant 0 : index
    %3 = vector.load %arg3[%c0_3, %c0_4] : memref<16x1xf32, #tpu.memory_space<vmem>>, vector<16x1xf32>
    %4 = vector.broadcast %3 : vector<16x1xf32> to vector<16x128xf32>
    %5 = arith.mulf %2, %4 : vector<16x128xf32>
    %c0_5 = arith.constant 0 : index
    %c0_6 = arith.constant 0 : index
    %6 = vector.load %arg4[%c0_5, %c0_6] : memref<16x1xf32, #tpu.memory_space<vmem>>, vector<16x1xf32>
    %7 = vector.broadcast %6 : vector<16x1xf32> to vector<16x128xf32>
    %8 = arith.addf %5, %7 : vector<16x128xf32>
    %cst_7 = arith.constant 0.000000e+00 : f32
    %9 = vector.broadcast %cst_7 : f32 to vector<16x128xf32>
    %10 = arith.maximumf %8, %9 : vector<16x128xf32>
    %c0_8 = arith.constant 0 : index
    %c0_9 = arith.constant 0 : index
    %11 = vector.load %arg5[%c0_8, %c0_9] : memref<16x128xf32, #tpu.memory_space<vmem>>, vector<16x128xf32>
    tpu.vector_store %arg5[%c0_8, %c0_9], %10 {strides = array<i32>} : memref<16x128xf32, #tpu.memory_space<vmem>>, vector<16x128xf32>,
    return
  }
  func.func @transform_0(%arg0: i32) -> (i32, i32) {
    %c0_i32 = arith.constant 0 : i32
    %c0_i32_0 = arith.constant 0 : i32
    %c0_i32_1 = arith.constant 0 : i32
    return %c0_i32, %c0_i32_0 : i32, i32
  }
  func.func @transform_1(%arg0: i32) -> (i32, i32) {
    %c0_i32 = arith.constant 0 : i32
    %c0_i32_0 = arith.constant 0 : i32
    return %c0_i32, %arg0 : i32, i32
  }
  func.func @transform_2(%arg0: i32) -> (i32, i32) {
    %c0_i32 = arith.constant 0 : i32
    %c0_i32_0 = arith.constant 0 : i32
    %c0_i32_1 = arith.constant 0 : i32
    return %c0_i32, %c0_i32_0 : i32, i32
  }
  func.func @transform_3(%arg0: i32) -> (i32, i32) {
    %c0_i32 = arith.constant 0 : i32
    %c0_i32_0 = arith.constant 0 : i32
    %c0_i32_1 = arith.constant 0 : i32
    return %c0_i32, %c0_i32_0 : i32, i32
  }
  func.func @transform_4(%arg0: i32) -> (i32, i32) {
    %c0_i32 = arith.constant 0 : i32
    %c0_i32_0 = arith.constant 0 : i32
    return %c0_i32, %arg0 : i32, i32
  }
}

module attributes {stable_mosaic.version = 11 : i64} {
  func.func @_fused_conv_kernel(%arg0: i32, %arg1: memref<16x256xbf16, #tpu.memory_space<vmem>>, %arg2: memref<256x128xbf16, #tpu.memory_space<vmem>>, %arg3: memref<16x1xf32, #tpu.memory_space<vmem>>, %arg4: memref<16x1xf32, #tpu.memory_space<vmem>>, %arg5: memref<16x128xf32, #tpu.memory_space<vmem>>, %arg6: memref<16x128xf32, #tpu.memory_space<vmem>>) attributes {dimension_semantics = [#tpu.dimension_semantics<parallel>], iteration_bounds = array<i64: 1>, scalar_prefetch = 0 : i64, scratch_operands = 0 : i64, tpu.core_type = #tpu.core_type<tc>, window_params = [{pipeline_mode = #tpu.pipeline_mode<synchronous>, transform_indices = @transform_0, window_bounds = array<i64: 16, 256>}, {transform_indices = @transform_1, window_bounds = array<i64: 256, 128>}, {pipeline_mode = #tpu.pipeline_mode<synchronous>, transform_indices = @transform_2, window_bounds = array<i64: 16, 1>}, {pipeline_mode = #tpu.pipeline_mode<synchronous>, transform_indices = @transform_3, window_bounds = array<i64: 16, 1>}, {transform_indices = @transform_4, window_bounds = array<i64: 16, 128>}, {transform_indices = @transform_5, window_bounds = array<i64: 16, 128>}]} {
    %c0 = arith.constant 0 : index
    %c0_0 = arith.constant 0 : index
    %0 = vector.load %arg1[%c0, %c0_0] : memref<16x256xbf16, #tpu.memory_space<vmem>>, vector<16x256xbf16>
    %c0_1 = arith.constant 0 : index
    %c0_2 = arith.constant 0 : index
    %1 = vector.load %arg2[%c0_1, %c0_2] : memref<256x128xbf16, #tpu.memory_space<vmem>>, vector<256x128xbf16>
    %cst = arith.constant dense<0.000000e+00> : vector<16x128xf32>
    %2 = tpu.matmul %0, %1, %cst {dimension_numbers = #tpu.dot_dimension_numbers<[1], [0], [0], [1], [0, 0, 1, 1], [], []>} : vector<16x256xbf16>, vector<256x128xbf16>, vector<16x128xf32> -> vector<16x128xf32>
    %c0_3 = arith.constant 0 : index
    %c0_4 = arith.constant 0 : index
    %3 = vector.load %arg3[%c0_3, %c0_4] : memref<16x1xf32, #tpu.memory_space<vmem>>, vector<16x1xf32>
    %4 = vector.broadcast %3 : vector<16x1xf32> to vector<16x128xf32>
    %5 = arith.mulf %2, %4 : vector<16x128xf32>
    %c0_5 = arith.constant 0 : index
    %c0_6 = arith.constant 0 : index
    %6 = vector.load %arg4[%c0_5, %c0_6] : memref<16x1xf32, #tpu.memory_space<vmem>>, vector<16x1xf32>
    %7 = vector.broadcast %6 : vector<16x1xf32> to vector<16x128xf32>
    %8 = arith.addf %5, %7 : vector<16x128xf32>
    %c0_7 = arith.constant 0 : index
    %c0_8 = arith.constant 0 : index
    %9 = vector.load %arg5[%c0_7, %c0_8] : memref<16x128xf32, #tpu.memory_space<vmem>>, vector<16x128xf32>
    %10 = arith.addf %8, %9 : vector<16x128xf32>
    %cst_9 = arith.constant 0.000000e+00 : f32
    %11 = vector.broadcast %cst_9 : f32 to vector<16x128xf32>
    %12 = arith.maximumf %10, %11 : vector<16x128xf32>
    %c0_10 = arith.constant 0 : index
    %c0_11 = arith.constant 0 : index
    %13 = vector.load %arg6[%c0_10, %c0_11] : memref<16x128xf32, #tpu.memory_space<vmem>>, vector<16x128xf32>
    tpu.vector_store %arg6[%c0_10, %c0_11], %12 {strides = array<i32>} : memref<16x128xf32, #tpu.memory_space<vmem>>, vector<16x128xf32>,
    return
  }
  func.func @transform_0(%arg0: i32) -> (i32, i32) {
    %c0_i32 = arith.constant 0 : i32
    %c0_i32_0 = arith.constant 0 : i32
    %c0_i32_1 = arith.constant 0 : i32
    return %c0_i32, %c0_i32_0 : i32, i32
  }
  func.func @transform_1(%arg0: i32) -> (i32, i32) {
    %c0_i32 = arith.constant 0 : i32
    %c0_i32_0 = arith.constant 0 : i32
    return %c0_i32, %arg0 : i32, i32
  }
  func.func @transform_2(%arg0: i32) -> (i32, i32) {
    %c0_i32 = arith.constant 0 : i32
    %c0_i32_0 = arith.constant 0 : i32
    %c0_i32_1 = arith.constant 0 : i32
    return %c0_i32, %c0_i32_0 : i32, i32
  }
  func.func @transform_3(%arg0: i32) -> (i32, i32) {
    %c0_i32 = arith.constant 0 : i32
    %c0_i32_0 = arith.constant 0 : i32
    %c0_i32_1 = arith.constant 0 : i32
    return %c0_i32, %c0_i32_0 : i32, i32
  }
  func.func @transform_4(%arg0: i32) -> (i32, i32) {
    %c0_i32 = arith.constant 0 : i32
    %c0_i32_0 = arith.constant 0 : i32
    return %c0_i32, %arg0 : i32, i32
  }
  func.func @transform_5(%arg0: i32) -> (i32, i32) {
    %c0_i32 = arith.constant 0 : i32
    %c0_i32_0 = arith.constant 0 : i32
    return %c0_i32, %arg0 : i32, i32
  }
}

module attributes {stable_mosaic.version = 11 : i64} {
  func.func @_fused_conv_kernel(%arg0: i32, %arg1: memref<32x256xbf16, #tpu.memory_space<vmem>>, %arg2: memref<256x128xbf16, #tpu.memory_space<vmem>>, %arg3: memref<32x1xf32, #tpu.memory_space<vmem>>, %arg4: memref<32x1xf32, #tpu.memory_space<vmem>>, %arg5: memref<32x128xf32, #tpu.memory_space<vmem>>) attributes {dimension_semantics = [#tpu.dimension_semantics<parallel>], iteration_bounds = array<i64: 1>, scalar_prefetch = 0 : i64, scratch_operands = 0 : i64, tpu.core_type = #tpu.core_type<tc>, window_params = [{pipeline_mode = #tpu.pipeline_mode<synchronous>, transform_indices = @transform_0, window_bounds = array<i64: 32, 256>}, {transform_indices = @transform_1, window_bounds = array<i64: 256, 128>}, {pipeline_mode = #tpu.pipeline_mode<synchronous>, transform_indices = @transform_2, window_bounds = array<i64: 32, 1>}, {pipeline_mode = #tpu.pipeline_mode<synchronous>, transform_indices = @transform_3, window_bounds = array<i64: 32, 1>}, {transform_indices = @transform_4, window_bounds = array<i64: 32, 128>}]} {
    %c0 = arith.constant 0 : index
    %c0_0 = arith.constant 0 : index
    %0 = vector.load %arg1[%c0, %c0_0] : memref<32x256xbf16, #tpu.memory_space<vmem>>, vector<32x256xbf16>
    %c0_1 = arith.constant 0 : index
    %c0_2 = arith.constant 0 : index
    %1 = vector.load %arg2[%c0_1, %c0_2] : memref<256x128xbf16, #tpu.memory_space<vmem>>, vector<256x128xbf16>
    %cst = arith.constant dense<0.000000e+00> : vector<32x128xf32>
    %2 = tpu.matmul %0, %1, %cst {dimension_numbers = #tpu.dot_dimension_numbers<[1], [0], [0], [1], [0, 0, 1, 1], [], []>} : vector<32x256xbf16>, vector<256x128xbf16>, vector<32x128xf32> -> vector<32x128xf32>
    %c0_3 = arith.constant 0 : index
    %c0_4 = arith.constant 0 : index
    %3 = vector.load %arg3[%c0_3, %c0_4] : memref<32x1xf32, #tpu.memory_space<vmem>>, vector<32x1xf32>
    %4 = vector.broadcast %3 : vector<32x1xf32> to vector<32x128xf32>
    %5 = arith.mulf %2, %4 : vector<32x128xf32>
    %c0_5 = arith.constant 0 : index
    %c0_6 = arith.constant 0 : index
    %6 = vector.load %arg4[%c0_5, %c0_6] : memref<32x1xf32, #tpu.memory_space<vmem>>, vector<32x1xf32>
    %7 = vector.broadcast %6 : vector<32x1xf32> to vector<32x128xf32>
    %8 = arith.addf %5, %7 : vector<32x128xf32>
    %cst_7 = arith.constant 0.000000e+00 : f32
    %9 = vector.broadcast %cst_7 : f32 to vector<32x128xf32>
    %10 = arith.maximumf %8, %9 : vector<32x128xf32>
    %c0_8 = arith.constant 0 : index
    %c0_9 = arith.constant 0 : index
    %11 = vector.load %arg5[%c0_8, %c0_9] : memref<32x128xf32, #tpu.memory_space<vmem>>, vector<32x128xf32>
    tpu.vector_store %arg5[%c0_8, %c0_9], %10 {strides = array<i32>} : memref<32x128xf32, #tpu.memory_space<vmem>>, vector<32x128xf32>,
    return
  }
  func.func @transform_0(%arg0: i32) -> (i32, i32) {
    %c0_i32 = arith.constant 0 : i32
    %c0_i32_0 = arith.constant 0 : i32
    %c0_i32_1 = arith.constant 0 : i32
    return %c0_i32, %c0_i32_0 : i32, i32
  }
  func.func @transform_1(%arg0: i32) -> (i32, i32) {
    %c0_i32 = arith.constant 0 : i32
    %c0_i32_0 = arith.constant 0 : i32
    return %c0_i32, %arg0 : i32, i32
  }
  func.func @transform_2(%arg0: i32) -> (i32, i32) {
    %c0_i32 = arith.constant 0 : i32
    %c0_i32_0 = arith.constant 0 : i32
    %c0_i32_1 = arith.constant 0 : i32
    return %c0_i32, %c0_i32_0 : i32, i32
  }
  func.func @transform_3(%arg0: i32) -> (i32, i32) {
    %c0_i32 = arith.constant 0 : i32
    %c0_i32_0 = arith.constant 0 : i32
    %c0_i32_1 = arith.constant 0 : i32
    return %c0_i32, %c0_i32_0 : i32, i32
  }
  func.func @transform_4(%arg0: i32) -> (i32, i32) {
    %c0_i32 = arith.constant 0 : i32
    %c0_i32_0 = arith.constant 0 : i32
    return %c0_i32, %arg0 : i32, i32
  }
}

module attributes {stable_mosaic.version = 11 : i64} {
  func.func @_fused_conv_kernel(%arg0: i32, %arg1: memref<32x128xbf16, #tpu.memory_space<vmem>>, %arg2: memref<128x128xbf16, #tpu.memory_space<vmem>>, %arg3: memref<32x1xf32, #tpu.memory_space<vmem>>, %arg4: memref<32x1xf32, #tpu.memory_space<vmem>>, %arg5: memref<32x128xf32, #tpu.memory_space<vmem>>) attributes {dimension_semantics = [#tpu.dimension_semantics<parallel>], iteration_bounds = array<i64: 1>, scalar_prefetch = 0 : i64, scratch_operands = 0 : i64, tpu.core_type = #tpu.core_type<tc>, window_params = [{pipeline_mode = #tpu.pipeline_mode<synchronous>, transform_indices = @transform_0, window_bounds = array<i64: 32, 128>}, {transform_indices = @transform_1, window_bounds = array<i64: 128, 128>}, {pipeline_mode = #tpu.pipeline_mode<synchronous>, transform_indices = @transform_2, window_bounds = array<i64: 32, 1>}, {pipeline_mode = #tpu.pipeline_mode<synchronous>, transform_indices = @transform_3, window_bounds = array<i64: 32, 1>}, {transform_indices = @transform_4, window_bounds = array<i64: 32, 128>}]} {
    %c0 = arith.constant 0 : index
    %c0_0 = arith.constant 0 : index
    %0 = vector.load %arg1[%c0, %c0_0] : memref<32x128xbf16, #tpu.memory_space<vmem>>, vector<32x128xbf16>
    %c0_1 = arith.constant 0 : index
    %c0_2 = arith.constant 0 : index
    %1 = vector.load %arg2[%c0_1, %c0_2] : memref<128x128xbf16, #tpu.memory_space<vmem>>, vector<128x128xbf16>
    %cst = arith.constant dense<0.000000e+00> : vector<32x128xf32>
    %2 = tpu.matmul %0, %1, %cst {dimension_numbers = #tpu.dot_dimension_numbers<[1], [0], [0], [1], [0, 0, 1, 1], [], []>} : vector<32x128xbf16>, vector<128x128xbf16>, vector<32x128xf32> -> vector<32x128xf32>
    %c0_3 = arith.constant 0 : index
    %c0_4 = arith.constant 0 : index
    %3 = vector.load %arg3[%c0_3, %c0_4] : memref<32x1xf32, #tpu.memory_space<vmem>>, vector<32x1xf32>
    %4 = vector.broadcast %3 : vector<32x1xf32> to vector<32x128xf32>
    %5 = arith.mulf %2, %4 : vector<32x128xf32>
    %c0_5 = arith.constant 0 : index
    %c0_6 = arith.constant 0 : index
    %6 = vector.load %arg4[%c0_5, %c0_6] : memref<32x1xf32, #tpu.memory_space<vmem>>, vector<32x1xf32>
    %7 = vector.broadcast %6 : vector<32x1xf32> to vector<32x128xf32>
    %8 = arith.addf %5, %7 : vector<32x128xf32>
    %c0_7 = arith.constant 0 : index
    %c0_8 = arith.constant 0 : index
    %9 = vector.load %arg5[%c0_7, %c0_8] : memref<32x128xf32, #tpu.memory_space<vmem>>, vector<32x128xf32>
    tpu.vector_store %arg5[%c0_7, %c0_8], %8 {strides = array<i32>} : memref<32x128xf32, #tpu.memory_space<vmem>>, vector<32x128xf32>,
    return
  }
  func.func @transform_0(%arg0: i32) -> (i32, i32) {
    %c0_i32 = arith.constant 0 : i32
    %c0_i32_0 = arith.constant 0 : i32
    %c0_i32_1 = arith.constant 0 : i32
    return %c0_i32, %c0_i32_0 : i32, i32
  }
  func.func @transform_1(%arg0: i32) -> (i32, i32) {
    %c0_i32 = arith.constant 0 : i32
    %c0_i32_0 = arith.constant 0 : i32
    return %c0_i32, %arg0 : i32, i32
  }
  func.func @transform_2(%arg0: i32) -> (i32, i32) {
    %c0_i32 = arith.constant 0 : i32
    %c0_i32_0 = arith.constant 0 : i32
    %c0_i32_1 = arith.constant 0 : i32
    return %c0_i32, %c0_i32_0 : i32, i32
  }
  func.func @transform_3(%arg0: i32) -> (i32, i32) {
    %c0_i32 = arith.constant 0 : i32
    %c0_i32_0 = arith.constant 0 : i32
    %c0_i32_1 = arith.constant 0 : i32
    return %c0_i32, %c0_i32_0 : i32, i32
  }
  func.func @transform_4(%arg0: i32) -> (i32, i32) {
    %c0_i32 = arith.constant 0 : i32
    %c0_i32_0 = arith.constant 0 : i32
    return %c0_i32, %arg0 : i32, i32
  }
}

module attributes {stable_mosaic.version = 11 : i64} {
  func.func @_fused_conv_kernel(%arg0: i32, %arg1: memref<32x384xbf16, #tpu.memory_space<vmem>>, %arg2: memref<384x128xbf16, #tpu.memory_space<vmem>>, %arg3: memref<32x1xf32, #tpu.memory_space<vmem>>, %arg4: memref<32x1xf32, #tpu.memory_space<vmem>>, %arg5: memref<32x128xf32, #tpu.memory_space<vmem>>) attributes {dimension_semantics = [#tpu.dimension_semantics<parallel>], iteration_bounds = array<i64: 1>, scalar_prefetch = 0 : i64, scratch_operands = 0 : i64, tpu.core_type = #tpu.core_type<tc>, window_params = [{pipeline_mode = #tpu.pipeline_mode<synchronous>, transform_indices = @transform_0, window_bounds = array<i64: 32, 384>}, {transform_indices = @transform_1, window_bounds = array<i64: 384, 128>}, {pipeline_mode = #tpu.pipeline_mode<synchronous>, transform_indices = @transform_2, window_bounds = array<i64: 32, 1>}, {pipeline_mode = #tpu.pipeline_mode<synchronous>, transform_indices = @transform_3, window_bounds = array<i64: 32, 1>}, {transform_indices = @transform_4, window_bounds = array<i64: 32, 128>}]} {
    %c0 = arith.constant 0 : index
    %c0_0 = arith.constant 0 : index
    %0 = vector.load %arg1[%c0, %c0_0] : memref<32x384xbf16, #tpu.memory_space<vmem>>, vector<32x384xbf16>
    %c0_1 = arith.constant 0 : index
    %c0_2 = arith.constant 0 : index
    %1 = vector.load %arg2[%c0_1, %c0_2] : memref<384x128xbf16, #tpu.memory_space<vmem>>, vector<384x128xbf16>
    %cst = arith.constant dense<0.000000e+00> : vector<32x128xf32>
    %2 = tpu.matmul %0, %1, %cst {dimension_numbers = #tpu.dot_dimension_numbers<[1], [0], [0], [1], [0, 0, 1, 1], [], []>} : vector<32x384xbf16>, vector<384x128xbf16>, vector<32x128xf32> -> vector<32x128xf32>
    %c0_3 = arith.constant 0 : index
    %c0_4 = arith.constant 0 : index
    %3 = vector.load %arg3[%c0_3, %c0_4] : memref<32x1xf32, #tpu.memory_space<vmem>>, vector<32x1xf32>
    %4 = vector.broadcast %3 : vector<32x1xf32> to vector<32x128xf32>
    %5 = arith.mulf %2, %4 : vector<32x128xf32>
    %c0_5 = arith.constant 0 : index
    %c0_6 = arith.constant 0 : index
    %6 = vector.load %arg4[%c0_5, %c0_6] : memref<32x1xf32, #tpu.memory_space<vmem>>, vector<32x1xf32>
    %7 = vector.broadcast %6 : vector<32x1xf32> to vector<32x128xf32>
    %8 = arith.addf %5, %7 : vector<32x128xf32>
    %cst_7 = arith.constant 0.000000e+00 : f32
    %9 = vector.broadcast %cst_7 : f32 to vector<32x128xf32>
    %10 = arith.maximumf %8, %9 : vector<32x128xf32>
    %c0_8 = arith.constant 0 : index
    %c0_9 = arith.constant 0 : index
    %11 = vector.load %arg5[%c0_8, %c0_9] : memref<32x128xf32, #tpu.memory_space<vmem>>, vector<32x128xf32>
    tpu.vector_store %arg5[%c0_8, %c0_9], %10 {strides = array<i32>} : memref<32x128xf32, #tpu.memory_space<vmem>>, vector<32x128xf32>,
    return
  }
  func.func @transform_0(%arg0: i32) -> (i32, i32) {
    %c0_i32 = arith.constant 0 : i32
    %c0_i32_0 = arith.constant 0 : i32
    %c0_i32_1 = arith.constant 0 : i32
    return %c0_i32, %c0_i32_0 : i32, i32
  }
  func.func @transform_1(%arg0: i32) -> (i32, i32) {
    %c0_i32 = arith.constant 0 : i32
    %c0_i32_0 = arith.constant 0 : i32
    return %c0_i32, %arg0 : i32, i32
  }
  func.func @transform_2(%arg0: i32) -> (i32, i32) {
    %c0_i32 = arith.constant 0 : i32
    %c0_i32_0 = arith.constant 0 : i32
    %c0_i32_1 = arith.constant 0 : i32
    return %c0_i32, %c0_i32_0 : i32, i32
  }
  func.func @transform_3(%arg0: i32) -> (i32, i32) {
    %c0_i32 = arith.constant 0 : i32
    %c0_i32_0 = arith.constant 0 : i32
    %c0_i32_1 = arith.constant 0 : i32
    return %c0_i32, %c0_i32_0 : i32, i32
  }
  func.func @transform_4(%arg0: i32) -> (i32, i32) {
    %c0_i32 = arith.constant 0 : i32
    %c0_i32_0 = arith.constant 0 : i32
    return %c0_i32, %arg0 : i32, i32
  }
}

module attributes {stable_mosaic.version = 11 : i64} {
  func.func @_fused_conv_kernel(%arg0: i32, %arg1: memref<32x384xbf16, #tpu.memory_space<vmem>>, %arg2: memref<384x128xbf16, #tpu.memory_space<vmem>>, %arg3: memref<32x1xf32, #tpu.memory_space<vmem>>, %arg4: memref<32x1xf32, #tpu.memory_space<vmem>>, %arg5: memref<32x128xf32, #tpu.memory_space<vmem>>, %arg6: memref<32x128xf32, #tpu.memory_space<vmem>>) attributes {dimension_semantics = [#tpu.dimension_semantics<parallel>], iteration_bounds = array<i64: 1>, scalar_prefetch = 0 : i64, scratch_operands = 0 : i64, tpu.core_type = #tpu.core_type<tc>, window_params = [{pipeline_mode = #tpu.pipeline_mode<synchronous>, transform_indices = @transform_0, window_bounds = array<i64: 32, 384>}, {transform_indices = @transform_1, window_bounds = array<i64: 384, 128>}, {pipeline_mode = #tpu.pipeline_mode<synchronous>, transform_indices = @transform_2, window_bounds = array<i64: 32, 1>}, {pipeline_mode = #tpu.pipeline_mode<synchronous>, transform_indices = @transform_3, window_bounds = array<i64: 32, 1>}, {transform_indices = @transform_4, window_bounds = array<i64: 32, 128>}, {transform_indices = @transform_5, window_bounds = array<i64: 32, 128>}]} {
    %c0 = arith.constant 0 : index
    %c0_0 = arith.constant 0 : index
    %0 = vector.load %arg1[%c0, %c0_0] : memref<32x384xbf16, #tpu.memory_space<vmem>>, vector<32x384xbf16>
    %c0_1 = arith.constant 0 : index
    %c0_2 = arith.constant 0 : index
    %1 = vector.load %arg2[%c0_1, %c0_2] : memref<384x128xbf16, #tpu.memory_space<vmem>>, vector<384x128xbf16>
    %cst = arith.constant dense<0.000000e+00> : vector<32x128xf32>
    %2 = tpu.matmul %0, %1, %cst {dimension_numbers = #tpu.dot_dimension_numbers<[1], [0], [0], [1], [0, 0, 1, 1], [], []>} : vector<32x384xbf16>, vector<384x128xbf16>, vector<32x128xf32> -> vector<32x128xf32>
    %c0_3 = arith.constant 0 : index
    %c0_4 = arith.constant 0 : index
    %3 = vector.load %arg3[%c0_3, %c0_4] : memref<32x1xf32, #tpu.memory_space<vmem>>, vector<32x1xf32>
    %4 = vector.broadcast %3 : vector<32x1xf32> to vector<32x128xf32>
    %5 = arith.mulf %2, %4 : vector<32x128xf32>
    %c0_5 = arith.constant 0 : index
    %c0_6 = arith.constant 0 : index
    %6 = vector.load %arg4[%c0_5, %c0_6] : memref<32x1xf32, #tpu.memory_space<vmem>>, vector<32x1xf32>
    %7 = vector.broadcast %6 : vector<32x1xf32> to vector<32x128xf32>
    %8 = arith.addf %5, %7 : vector<32x128xf32>
    %c0_7 = arith.constant 0 : index
    %c0_8 = arith.constant 0 : index
    %9 = vector.load %arg5[%c0_7, %c0_8] : memref<32x128xf32, #tpu.memory_space<vmem>>, vector<32x128xf32>
    %10 = arith.addf %8, %9 : vector<32x128xf32>
    %cst_9 = arith.constant 0.000000e+00 : f32
    %11 = vector.broadcast %cst_9 : f32 to vector<32x128xf32>
    %12 = arith.maximumf %10, %11 : vector<32x128xf32>
    %c0_10 = arith.constant 0 : index
    %c0_11 = arith.constant 0 : index
    %13 = vector.load %arg6[%c0_10, %c0_11] : memref<32x128xf32, #tpu.memory_space<vmem>>, vector<32x128xf32>
    tpu.vector_store %arg6[%c0_10, %c0_11], %12 {strides = array<i32>} : memref<32x128xf32, #tpu.memory_space<vmem>>, vector<32x128xf32>,
    return
  }
  func.func @transform_0(%arg0: i32) -> (i32, i32) {
    %c0_i32 = arith.constant 0 : i32
    %c0_i32_0 = arith.constant 0 : i32
    %c0_i32_1 = arith.constant 0 : i32
    return %c0_i32, %c0_i32_0 : i32, i32
  }
  func.func @transform_1(%arg0: i32) -> (i32, i32) {
    %c0_i32 = arith.constant 0 : i32
    %c0_i32_0 = arith.constant 0 : i32
    return %c0_i32, %arg0 : i32, i32
  }
  func.func @transform_2(%arg0: i32) -> (i32, i32) {
    %c0_i32 = arith.constant 0 : i32
    %c0_i32_0 = arith.constant 0 : i32
    %c0_i32_1 = arith.constant 0 : i32
    return %c0_i32, %c0_i32_0 : i32, i32
  }
  func.func @transform_3(%arg0: i32) -> (i32, i32) {
    %c0_i32 = arith.constant 0 : i32
    %c0_i32_0 = arith.constant 0 : i32
    %c0_i32_1 = arith.constant 0 : i32
    return %c0_i32, %c0_i32_0 : i32, i32
  }
  func.func @transform_4(%arg0: i32) -> (i32, i32) {
    %c0_i32 = arith.constant 0 : i32
    %c0_i32_0 = arith.constant 0 : i32
    return %c0_i32, %arg0 : i32, i32
  }
  func.func @transform_5(%arg0: i32) -> (i32, i32) {
    %c0_i32 = arith.constant 0 : i32
    %c0_i32_0 = arith.constant 0 : i32
    return %c0_i32, %arg0 : i32, i32
  }
}

module attributes {stable_mosaic.version = 11 : i64} {
  func.func @_fused_conv_kernel(%arg0: i32, %arg1: memref<64x384xbf16, #tpu.memory_space<vmem>>, %arg2: memref<384x128xbf16, #tpu.memory_space<vmem>>, %arg3: memref<64x1xf32, #tpu.memory_space<vmem>>, %arg4: memref<64x1xf32, #tpu.memory_space<vmem>>, %arg5: memref<64x128xf32, #tpu.memory_space<vmem>>) attributes {dimension_semantics = [#tpu.dimension_semantics<parallel>], iteration_bounds = array<i64: 1>, scalar_prefetch = 0 : i64, scratch_operands = 0 : i64, tpu.core_type = #tpu.core_type<tc>, window_params = [{pipeline_mode = #tpu.pipeline_mode<synchronous>, transform_indices = @transform_0, window_bounds = array<i64: 64, 384>}, {transform_indices = @transform_1, window_bounds = array<i64: 384, 128>}, {pipeline_mode = #tpu.pipeline_mode<synchronous>, transform_indices = @transform_2, window_bounds = array<i64: 64, 1>}, {pipeline_mode = #tpu.pipeline_mode<synchronous>, transform_indices = @transform_3, window_bounds = array<i64: 64, 1>}, {transform_indices = @transform_4, window_bounds = array<i64: 64, 128>}]} {
    %c0 = arith.constant 0 : index
    %c0_0 = arith.constant 0 : index
    %0 = vector.load %arg1[%c0, %c0_0] : memref<64x384xbf16, #tpu.memory_space<vmem>>, vector<64x384xbf16>
    %c0_1 = arith.constant 0 : index
    %c0_2 = arith.constant 0 : index
    %1 = vector.load %arg2[%c0_1, %c0_2] : memref<384x128xbf16, #tpu.memory_space<vmem>>, vector<384x128xbf16>
    %cst = arith.constant dense<0.000000e+00> : vector<64x128xf32>
    %2 = tpu.matmul %0, %1, %cst {dimension_numbers = #tpu.dot_dimension_numbers<[1], [0], [0], [1], [0, 0, 1, 1], [], []>} : vector<64x384xbf16>, vector<384x128xbf16>, vector<64x128xf32> -> vector<64x128xf32>
    %c0_3 = arith.constant 0 : index
    %c0_4 = arith.constant 0 : index
    %3 = vector.load %arg3[%c0_3, %c0_4] : memref<64x1xf32, #tpu.memory_space<vmem>>, vector<64x1xf32>
    %4 = vector.broadcast %3 : vector<64x1xf32> to vector<64x128xf32>
    %5 = arith.mulf %2, %4 : vector<64x128xf32>
    %c0_5 = arith.constant 0 : index
    %c0_6 = arith.constant 0 : index
    %6 = vector.load %arg4[%c0_5, %c0_6] : memref<64x1xf32, #tpu.memory_space<vmem>>, vector<64x1xf32>
    %7 = vector.broadcast %6 : vector<64x1xf32> to vector<64x128xf32>
    %8 = arith.addf %5, %7 : vector<64x128xf32>
    %cst_7 = arith.constant 0.000000e+00 : f32
    %9 = vector.broadcast %cst_7 : f32 to vector<64x128xf32>
    %10 = arith.maximumf %8, %9 : vector<64x128xf32>
    %c0_8 = arith.constant 0 : index
    %c0_9 = arith.constant 0 : index
    %11 = vector.load %arg5[%c0_8, %c0_9] : memref<64x128xf32, #tpu.memory_space<vmem>>, vector<64x128xf32>
    tpu.vector_store %arg5[%c0_8, %c0_9], %10 {strides = array<i32>} : memref<64x128xf32, #tpu.memory_space<vmem>>, vector<64x128xf32>,
    return
  }
  func.func @transform_0(%arg0: i32) -> (i32, i32) {
    %c0_i32 = arith.constant 0 : i32
    %c0_i32_0 = arith.constant 0 : i32
    %c0_i32_1 = arith.constant 0 : i32
    return %c0_i32, %c0_i32_0 : i32, i32
  }
  func.func @transform_1(%arg0: i32) -> (i32, i32) {
    %c0_i32 = arith.constant 0 : i32
    %c0_i32_0 = arith.constant 0 : i32
    return %c0_i32, %arg0 : i32, i32
  }
  func.func @transform_2(%arg0: i32) -> (i32, i32) {
    %c0_i32 = arith.constant 0 : i32
    %c0_i32_0 = arith.constant 0 : i32
    %c0_i32_1 = arith.constant 0 : i32
    return %c0_i32, %c0_i32_0 : i32, i32
  }
  func.func @transform_3(%arg0: i32) -> (i32, i32) {
    %c0_i32 = arith.constant 0 : i32
    %c0_i32_0 = arith.constant 0 : i32
    %c0_i32_1 = arith.constant 0 : i32
    return %c0_i32, %c0_i32_0 : i32, i32
  }
  func.func @transform_4(%arg0: i32) -> (i32, i32) {
    %c0_i32 = arith.constant 0 : i32
    %c0_i32_0 = arith.constant 0 : i32
    return %c0_i32, %arg0 : i32, i32
  }
}

module attributes {stable_mosaic.version = 11 : i64} {
  func.func @_fused_conv_kernel(%arg0: i32, %arg1: memref<64x128xbf16, #tpu.memory_space<vmem>>, %arg2: memref<128x128xbf16, #tpu.memory_space<vmem>>, %arg3: memref<64x1xf32, #tpu.memory_space<vmem>>, %arg4: memref<64x1xf32, #tpu.memory_space<vmem>>, %arg5: memref<64x128xf32, #tpu.memory_space<vmem>>) attributes {dimension_semantics = [#tpu.dimension_semantics<parallel>], iteration_bounds = array<i64: 1>, scalar_prefetch = 0 : i64, scratch_operands = 0 : i64, tpu.core_type = #tpu.core_type<tc>, window_params = [{pipeline_mode = #tpu.pipeline_mode<synchronous>, transform_indices = @transform_0, window_bounds = array<i64: 64, 128>}, {transform_indices = @transform_1, window_bounds = array<i64: 128, 128>}, {pipeline_mode = #tpu.pipeline_mode<synchronous>, transform_indices = @transform_2, window_bounds = array<i64: 64, 1>}, {pipeline_mode = #tpu.pipeline_mode<synchronous>, transform_indices = @transform_3, window_bounds = array<i64: 64, 1>}, {transform_indices = @transform_4, window_bounds = array<i64: 64, 128>}]} {
    %c0 = arith.constant 0 : index
    %c0_0 = arith.constant 0 : index
    %0 = vector.load %arg1[%c0, %c0_0] : memref<64x128xbf16, #tpu.memory_space<vmem>>, vector<64x128xbf16>
    %c0_1 = arith.constant 0 : index
    %c0_2 = arith.constant 0 : index
    %1 = vector.load %arg2[%c0_1, %c0_2] : memref<128x128xbf16, #tpu.memory_space<vmem>>, vector<128x128xbf16>
    %cst = arith.constant dense<0.000000e+00> : vector<64x128xf32>
    %2 = tpu.matmul %0, %1, %cst {dimension_numbers = #tpu.dot_dimension_numbers<[1], [0], [0], [1], [0, 0, 1, 1], [], []>} : vector<64x128xbf16>, vector<128x128xbf16>, vector<64x128xf32> -> vector<64x128xf32>
    %c0_3 = arith.constant 0 : index
    %c0_4 = arith.constant 0 : index
    %3 = vector.load %arg3[%c0_3, %c0_4] : memref<64x1xf32, #tpu.memory_space<vmem>>, vector<64x1xf32>
    %4 = vector.broadcast %3 : vector<64x1xf32> to vector<64x128xf32>
    %5 = arith.mulf %2, %4 : vector<64x128xf32>
    %c0_5 = arith.constant 0 : index
    %c0_6 = arith.constant 0 : index
    %6 = vector.load %arg4[%c0_5, %c0_6] : memref<64x1xf32, #tpu.memory_space<vmem>>, vector<64x1xf32>
    %7 = vector.broadcast %6 : vector<64x1xf32> to vector<64x128xf32>
    %8 = arith.addf %5, %7 : vector<64x128xf32>
    %c0_7 = arith.constant 0 : index
    %c0_8 = arith.constant 0 : index
    %9 = vector.load %arg5[%c0_7, %c0_8] : memref<64x128xf32, #tpu.memory_space<vmem>>, vector<64x128xf32>
    tpu.vector_store %arg5[%c0_7, %c0_8], %8 {strides = array<i32>} : memref<64x128xf32, #tpu.memory_space<vmem>>, vector<64x128xf32>,
    return
  }
  func.func @transform_0(%arg0: i32) -> (i32, i32) {
    %c0_i32 = arith.constant 0 : i32
    %c0_i32_0 = arith.constant 0 : i32
    %c0_i32_1 = arith.constant 0 : i32
    return %c0_i32, %c0_i32_0 : i32, i32
  }
  func.func @transform_1(%arg0: i32) -> (i32, i32) {
    %c0_i32 = arith.constant 0 : i32
    %c0_i32_0 = arith.constant 0 : i32
    return %c0_i32, %arg0 : i32, i32
  }
  func.func @transform_2(%arg0: i32) -> (i32, i32) {
    %c0_i32 = arith.constant 0 : i32
    %c0_i32_0 = arith.constant 0 : i32
    %c0_i32_1 = arith.constant 0 : i32
    return %c0_i32, %c0_i32_0 : i32, i32
  }
  func.func @transform_3(%arg0: i32) -> (i32, i32) {
    %c0_i32 = arith.constant 0 : i32
    %c0_i32_0 = arith.constant 0 : i32
    %c0_i32_1 = arith.constant 0 : i32
    return %c0_i32, %c0_i32_0 : i32, i32
  }
  func.func @transform_4(%arg0: i32) -> (i32, i32) {
    %c0_i32 = arith.constant 0 : i32
    %c0_i32_0 = arith.constant 0 : i32
    return %c0_i32, %arg0 : i32, i32
  }
}

module attributes {stable_mosaic.version = 11 : i64} {
  func.func @_fused_conv_kernel(%arg0: i32, %arg1: memref<64x640xbf16, #tpu.memory_space<vmem>>, %arg2: memref<640x128xbf16, #tpu.memory_space<vmem>>, %arg3: memref<64x1xf32, #tpu.memory_space<vmem>>, %arg4: memref<64x1xf32, #tpu.memory_space<vmem>>, %arg5: memref<64x128xf32, #tpu.memory_space<vmem>>, %arg6: memref<64x128xf32, #tpu.memory_space<vmem>>) attributes {dimension_semantics = [#tpu.dimension_semantics<parallel>], iteration_bounds = array<i64: 1>, scalar_prefetch = 0 : i64, scratch_operands = 0 : i64, tpu.core_type = #tpu.core_type<tc>, window_params = [{pipeline_mode = #tpu.pipeline_mode<synchronous>, transform_indices = @transform_0, window_bounds = array<i64: 64, 640>}, {transform_indices = @transform_1, window_bounds = array<i64: 640, 128>}, {pipeline_mode = #tpu.pipeline_mode<synchronous>, transform_indices = @transform_2, window_bounds = array<i64: 64, 1>}, {pipeline_mode = #tpu.pipeline_mode<synchronous>, transform_indices = @transform_3, window_bounds = array<i64: 64, 1>}, {transform_indices = @transform_4, window_bounds = array<i64: 64, 128>}, {transform_indices = @transform_5, window_bounds = array<i64: 64, 128>}]} {
    %c0 = arith.constant 0 : index
    %c0_0 = arith.constant 0 : index
    %0 = vector.load %arg1[%c0, %c0_0] : memref<64x640xbf16, #tpu.memory_space<vmem>>, vector<64x640xbf16>
    %c0_1 = arith.constant 0 : index
    %c0_2 = arith.constant 0 : index
    %1 = vector.load %arg2[%c0_1, %c0_2] : memref<640x128xbf16, #tpu.memory_space<vmem>>, vector<640x128xbf16>
    %cst = arith.constant dense<0.000000e+00> : vector<64x128xf32>
    %2 = tpu.matmul %0, %1, %cst {dimension_numbers = #tpu.dot_dimension_numbers<[1], [0], [0], [1], [0, 0, 1, 1], [], []>} : vector<64x640xbf16>, vector<640x128xbf16>, vector<64x128xf32> -> vector<64x128xf32>
    %c0_3 = arith.constant 0 : index
    %c0_4 = arith.constant 0 : index
    %3 = vector.load %arg3[%c0_3, %c0_4] : memref<64x1xf32, #tpu.memory_space<vmem>>, vector<64x1xf32>
    %4 = vector.broadcast %3 : vector<64x1xf32> to vector<64x128xf32>
    %5 = arith.mulf %2, %4 : vector<64x128xf32>
    %c0_5 = arith.constant 0 : index
    %c0_6 = arith.constant 0 : index
    %6 = vector.load %arg4[%c0_5, %c0_6] : memref<64x1xf32, #tpu.memory_space<vmem>>, vector<64x1xf32>
    %7 = vector.broadcast %6 : vector<64x1xf32> to vector<64x128xf32>
    %8 = arith.addf %5, %7 : vector<64x128xf32>
    %c0_7 = arith.constant 0 : index
    %c0_8 = arith.constant 0 : index
    %9 = vector.load %arg5[%c0_7, %c0_8] : memref<64x128xf32, #tpu.memory_space<vmem>>, vector<64x128xf32>
    %10 = arith.addf %8, %9 : vector<64x128xf32>
    %cst_9 = arith.constant 0.000000e+00 : f32
    %11 = vector.broadcast %cst_9 : f32 to vector<64x128xf32>
    %12 = arith.maximumf %10, %11 : vector<64x128xf32>
    %c0_10 = arith.constant 0 : index
    %c0_11 = arith.constant 0 : index
    %13 = vector.load %arg6[%c0_10, %c0_11] : memref<64x128xf32, #tpu.memory_space<vmem>>, vector<64x128xf32>
    tpu.vector_store %arg6[%c0_10, %c0_11], %12 {strides = array<i32>} : memref<64x128xf32, #tpu.memory_space<vmem>>, vector<64x128xf32>,
    return
  }
  func.func @transform_0(%arg0: i32) -> (i32, i32) {
    %c0_i32 = arith.constant 0 : i32
    %c0_i32_0 = arith.constant 0 : i32
    %c0_i32_1 = arith.constant 0 : i32
    return %c0_i32, %c0_i32_0 : i32, i32
  }
  func.func @transform_1(%arg0: i32) -> (i32, i32) {
    %c0_i32 = arith.constant 0 : i32
    %c0_i32_0 = arith.constant 0 : i32
    return %c0_i32, %arg0 : i32, i32
  }
  func.func @transform_2(%arg0: i32) -> (i32, i32) {
    %c0_i32 = arith.constant 0 : i32
    %c0_i32_0 = arith.constant 0 : i32
    %c0_i32_1 = arith.constant 0 : i32
    return %c0_i32, %c0_i32_0 : i32, i32
  }
  func.func @transform_3(%arg0: i32) -> (i32, i32) {
    %c0_i32 = arith.constant 0 : i32
    %c0_i32_0 = arith.constant 0 : i32
    %c0_i32_1 = arith.constant 0 : i32
    return %c0_i32, %c0_i32_0 : i32, i32
  }
  func.func @transform_4(%arg0: i32) -> (i32, i32) {
    %c0_i32 = arith.constant 0 : i32
    %c0_i32_0 = arith.constant 0 : i32
    return %c0_i32, %arg0 : i32, i32
  }
  func.func @transform_5(%arg0: i32) -> (i32, i32) {
    %c0_i32 = arith.constant 0 : i32
    %c0_i32_0 = arith.constant 0 : i32
    return %c0_i32, %arg0 : i32, i32
  }
}

module attributes {stable_mosaic.version = 11 : i64} {
  func.func @_fused_conv_kernel(%arg0: i32, %arg1: memref<64x640xbf16, #tpu.memory_space<vmem>>, %arg2: memref<640x128xbf16, #tpu.memory_space<vmem>>, %arg3: memref<64x1xf32, #tpu.memory_space<vmem>>, %arg4: memref<64x1xf32, #tpu.memory_space<vmem>>, %arg5: memref<64x128xf32, #tpu.memory_space<vmem>>) attributes {dimension_semantics = [#tpu.dimension_semantics<parallel>], iteration_bounds = array<i64: 1>, scalar_prefetch = 0 : i64, scratch_operands = 0 : i64, tpu.core_type = #tpu.core_type<tc>, window_params = [{pipeline_mode = #tpu.pipeline_mode<synchronous>, transform_indices = @transform_0, window_bounds = array<i64: 64, 640>}, {transform_indices = @transform_1, window_bounds = array<i64: 640, 128>}, {pipeline_mode = #tpu.pipeline_mode<synchronous>, transform_indices = @transform_2, window_bounds = array<i64: 64, 1>}, {pipeline_mode = #tpu.pipeline_mode<synchronous>, transform_indices = @transform_3, window_bounds = array<i64: 64, 1>}, {transform_indices = @transform_4, window_bounds = array<i64: 64, 128>}]} {
    %c0 = arith.constant 0 : index
    %c0_0 = arith.constant 0 : index
    %0 = vector.load %arg1[%c0, %c0_0] : memref<64x640xbf16, #tpu.memory_space<vmem>>, vector<64x640xbf16>
    %c0_1 = arith.constant 0 : index
    %c0_2 = arith.constant 0 : index
    %1 = vector.load %arg2[%c0_1, %c0_2] : memref<640x128xbf16, #tpu.memory_space<vmem>>, vector<640x128xbf16>
    %cst = arith.constant dense<0.000000e+00> : vector<64x128xf32>
    %2 = tpu.matmul %0, %1, %cst {dimension_numbers = #tpu.dot_dimension_numbers<[1], [0], [0], [1], [0, 0, 1, 1], [], []>} : vector<64x640xbf16>, vector<640x128xbf16>, vector<64x128xf32> -> vector<64x128xf32>
    %c0_3 = arith.constant 0 : index
    %c0_4 = arith.constant 0 : index
    %3 = vector.load %arg3[%c0_3, %c0_4] : memref<64x1xf32, #tpu.memory_space<vmem>>, vector<64x1xf32>
    %4 = vector.broadcast %3 : vector<64x1xf32> to vector<64x128xf32>
    %5 = arith.mulf %2, %4 : vector<64x128xf32>
    %c0_5 = arith.constant 0 : index
    %c0_6 = arith.constant 0 : index
    %6 = vector.load %arg4[%c0_5, %c0_6] : memref<64x1xf32, #tpu.memory_space<vmem>>, vector<64x1xf32>
    %7 = vector.broadcast %6 : vector<64x1xf32> to vector<64x128xf32>
    %8 = arith.addf %5, %7 : vector<64x128xf32>
    %cst_7 = arith.constant 0.000000e+00 : f32
    %9 = vector.broadcast %cst_7 : f32 to vector<64x128xf32>
    %10 = arith.maximumf %8, %9 : vector<64x128xf32>
    %c0_8 = arith.constant 0 : index
    %c0_9 = arith.constant 0 : index
    %11 = vector.load %arg5[%c0_8, %c0_9] : memref<64x128xf32, #tpu.memory_space<vmem>>, vector<64x128xf32>
    tpu.vector_store %arg5[%c0_8, %c0_9], %10 {strides = array<i32>} : memref<64x128xf32, #tpu.memory_space<vmem>>, vector<64x128xf32>,
    return
  }
  func.func @transform_0(%arg0: i32) -> (i32, i32) {
    %c0_i32 = arith.constant 0 : i32
    %c0_i32_0 = arith.constant 0 : i32
    %c0_i32_1 = arith.constant 0 : i32
    return %c0_i32, %c0_i32_0 : i32, i32
  }
  func.func @transform_1(%arg0: i32) -> (i32, i32) {
    %c0_i32 = arith.constant 0 : i32
    %c0_i32_0 = arith.constant 0 : i32
    return %c0_i32, %arg0 : i32, i32
  }
  func.func @transform_2(%arg0: i32) -> (i32, i32) {
    %c0_i32 = arith.constant 0 : i32
    %c0_i32_0 = arith.constant 0 : i32
    %c0_i32_1 = arith.constant 0 : i32
    return %c0_i32, %c0_i32_0 : i32, i32
  }
  func.func @transform_3(%arg0: i32) -> (i32, i32) {
    %c0_i32 = arith.constant 0 : i32
    %c0_i32_0 = arith.constant 0 : i32
    %c0_i32_1 = arith.constant 0 : i32
    return %c0_i32, %c0_i32_0 : i32, i32
  }
  func.func @transform_4(%arg0: i32) -> (i32, i32) {
    %c0_i32 = arith.constant 0 : i32
    %c0_i32_0 = arith.constant 0 : i32
    return %c0_i32, %arg0 : i32, i32
  }
}

</mosaic_0001>

<llo_original>
// kernel: _lambda_.21
$region0: #{_lambda_.21}
  #allocation0 [shape = 'u32[]', space=smem, size = 0x4, offset = 0x4, fixed_abs, tag = 'smem constant byte address 0x4 - core index']
  #allocation1 [shape = 'u32[144,128]{1,0:T(1,128)}', space=vmem, size = 0x12000, scoped, tag = 'internal scratch']
  %s0 = inlined_call_operand.vmem [shape: bf16[8,256], index: 0, kind: input, shape index: {}]
  %s1 = inlined_call_operand.vmem [shape: bf16[256,512], index: 1, kind: input, shape index: {}]
  %s2 = inlined_call_operand.vmem [shape: f32[8,1], index: 2, kind: input, shape index: {}]
  %s3 = inlined_call_operand.vmem [shape: f32[8,1], index: 3, kind: input, shape index: {}]
  %s4 = inlined_call_operand.vmem [shape: f32[8,512], index: 4, kind: output, shape index: {}]
  %s5 = sld [smem:[#allocation0]]
  $region26: #{_lambda_.21} parent=0
    _
  %s7 = ssub.s32 1, %s5
  %s8 = scalar_select 0, %s7, %s5
  // Predicated region
  $region2: #{_lambda_.21} parent=0 // pred_check
    _
  $region3: #{_lambda_.21} parent=0 // pred_check_branch
    %10 = sbr.rel (0) target = $region5
  $region4: #{_lambda_.21} parent=0 // pred_region
    _
  $region5: #{_lambda_.21} parent=0 // pred_fallthru
    _
  // Predicated region
  $region6: #{_lambda_.21} parent=0 // pred_check
    _
  $region7: #{_lambda_.21} parent=0 // pred_check_branch
    %12 = sbr.rel (0) target = $region9
  $region8: #{_lambda_.21} parent=0 // pred_region
    _
  $region9: #{_lambda_.21} parent=0 // pred_fallthru
    _
  // Predicated region
  $region10: #{_lambda_.21} parent=0 // pred_check
    _
  $region11: #{_lambda_.21} parent=0 // pred_check_branch
    %14 = sbr.rel (0) target = $region13
  $region12: #{_lambda_.21} parent=0 // pred_region
    _
  $region13: #{_lambda_.21} parent=0 // pred_fallthru
    _
  // Predicated region
  $region14: #{_lambda_.21} parent=0 // pred_check
    _
  $region15: #{_lambda_.21} parent=0 // pred_check_branch
    %16 = sbr.rel (0) target = $region17
  $region16: #{_lambda_.21} parent=0 // pred_region
    _
  $region17: #{_lambda_.21} parent=0 // pred_fallthru
    _
  %v17 = vld [vmem:[%s0] sm:$0xff]
  %v18 = vld [vmem:[%s1] sm:$0xff]
  %v19 = vld [vmem:[%s1 + $0x8] sm:$0xff]
  %v20 = vld [vmem:[%s1 + $0x10] sm:$0xff]
  %v21 = vld [vmem:[%s1 + $0x18] sm:$0xff]
  %v22 = vld [vmem:[%s1 + $0x20] sm:$0xff]
  %v23 = vld [vmem:[%s1 + $0x28] sm:$0xff]
  %v24 = vld [vmem:[%s1 + $0x30] sm:$0xff]
  %v25 = vld [vmem:[%s1 + $0x38] sm:$0xff]
  %v26 = vld [vmem:[%s1 + $0x40] sm:$0xff]
  %v27 = vld [vmem:[%s1 + $0x48] sm:$0xff]
  %v28 = vld [vmem:[%s1 + $0x50] sm:$0xff]
  %v29 = vld [vmem:[%s1 + $0x58] sm:$0xff]
  %v30 = vld [vmem:[%s1 + $0x60] sm:$0xff]
  %v31 = vld [vmem:[%s1 + $0x68] sm:$0xff]
  %v32 = vld [vmem:[%s1 + $0x70] sm:$0xff]
  %v33 = vld [vmem:[%s1 + $0x78] sm:$0xff]
  %v34 = vld [vmem:[%s1 + $0x80] sm:$0xff]
  %v35 = vld [vmem:[%s1 + $0x88] sm:$0xff]
  %v36 = vld [vmem:[%s1 + $0x90] sm:$0xff]
  %v37 = vld [vmem:[%s1 + $0x98] sm:$0xff]
  %v38 = vld [vmem:[%s1 + $0xa0] sm:$0xff]
  %v39 = vld [vmem:[%s1 + $0xa8] sm:$0xff]
  %v40 = vld [vmem:[%s1 + $0xb0] sm:$0xff]
  %v41 = vld [vmem:[%s1 + $0xb8] sm:$0xff]
  %v42 = vld [vmem:[%s1 + $0xc0] sm:$0xff]
  %v43 = vld [vmem:[%s1 + $0xc8] sm:$0xff]
  %v44 = vld [vmem:[%s1 + $0xd0] sm:$0xff]
  %v45 = vld [vmem:[%s1 + $0xd8] sm:$0xff]
  %v46 = vld [vmem:[%s1 + $0xe0] sm:$0xff]
  %v47 = vld [vmem:[%s1 + $0xe8] sm:$0xff]
  %v48 = vld [vmem:[%s1 + $0xf0] sm:$0xff]
  %v49 = vld [vmem:[%s1 + $0xf8] sm:$0xff]
  %v50 = vld [vmem:[%s1 + $0x100] sm:$0xff]
  %v51 = vld [vmem:[%s1 + $0x108] sm:$0xff]
  %v52 = vld [vmem:[%s1 + $0x110] sm:$0xff]
  %v53 = vld [vmem:[%s1 + $0x118] sm:$0xff]
  %v54 = vld [vmem:[%s1 + $0x120] sm:$0xff]
  %v55 = vld [vmem:[%s1 + $0x128] sm:$0xff]
  %v56 = vld [vmem:[%s1 + $0x130] sm:$0xff]
  %v57 = vld [vmem:[%s1 + $0x138] sm:$0xff]
  %v58 = vld [vmem:[%s1 + $0x140] sm:$0xff]
  %v59 = vld [vmem:[%s1 + $0x148] sm:$0xff]
  %v60 = vld [vmem:[%s1 + $0x150] sm:$0xff]
  %v61 = vld [vmem:[%s1 + $0x158] sm:$0xff]
  %v62 = vld [vmem:[%s1 + $0x160] sm:$0xff]
  %v63 = vld [vmem:[%s1 + $0x168] sm:$0xff]
  %v64 = vld [vmem:[%s1 + $0x170] sm:$0xff]
  %v65 = vld [vmem:[%s1 + $0x178] sm:$0xff]
  %v66 = vld [vmem:[%s1 + $0x180] sm:$0xff]
  %v67 = vld [vmem:[%s1 + $0x188] sm:$0xff]
  %v68 = vld [vmem:[%s1 + $0x190] sm:$0xff]
  %v69 = vld [vmem:[%s1 + $0x198] sm:$0xff]
  %v70 = vld [vmem:[%s1 + $0x1a0] sm:$0xff]
  %v71 = vld [vmem:[%s1 + $0x1a8] sm:$0xff]
  %v72 = vld [vmem:[%s1 + $0x1b0] sm:$0xff]
  %v73 = vld [vmem:[%s1 + $0x1b8] sm:$0xff]
  %v74 = vld [vmem:[%s1 + $0x1c0] sm:$0xff]
  %v75 = vld [vmem:[%s1 + $0x1c8] sm:$0xff]
  %v76 = vld [vmem:[%s1 + $0x1d0] sm:$0xff]
  %v77 = vld [vmem:[%s1 + $0x1d8] sm:$0xff]
  %v78 = vld [vmem:[%s1 + $0x1e0] sm:$0xff]
  %v79 = vld [vmem:[%s1 + $0x1e8] sm:$0xff]
  %v80 = vld [vmem:[%s1 + $0x1f0] sm:$0xff]
  %v81 = vld [vmem:[%s1 + $0x1f8] sm:$0xff]
  %v83 = vunpack.c.l.b16 %v17
  %v84 = vunpack.c.h.b16 %v17
  %v85 = vpack.c.b16 %v83, %v83
  %v86 = vpack.c.b16 %v84, %v84
  %v153 = vunpack.c.l.b16 %v18
  %v154 = vunpack.c.h.b16 %v18
  %v155 = vunpack.c.l.b16 %v19
  %v156 = vunpack.c.h.b16 %v19
  %v157 = vunpack.c.l.b16 %v20
  %v158 = vunpack.c.h.b16 %v20
  %v159 = vunpack.c.l.b16 %v21
  %v160 = vunpack.c.h.b16 %v21
  %v161 = vunpack.c.l.b16 %v22
  %v162 = vunpack.c.h.b16 %v22
  %v163 = vunpack.c.l.b16 %v23
  %v164 = vunpack.c.h.b16 %v23
  %v165 = vunpack.c.l.b16 %v24
  %v166 = vunpack.c.h.b16 %v24
  %v167 = vunpack.c.l.b16 %v25
  %v168 = vunpack.c.h.b16 %v25
  %v169 = vunpack.c.l.b16 %v26
  %v170 = vunpack.c.h.b16 %v26
  %v171 = vunpack.c.l.b16 %v27
  %v172 = vunpack.c.h.b16 %v27
  %v173 = vunpack.c.l.b16 %v28
  %v174 = vunpack.c.h.b16 %v28
  %v175 = vunpack.c.l.b16 %v29
  %v176 = vunpack.c.h.b16 %v29
  %v177 = vunpack.c.l.b16 %v30
  %v178 = vunpack.c.h.b16 %v30
  %v179 = vunpack.c.l.b16 %v31
  %v180 = vunpack.c.h.b16 %v31
  %v181 = vunpack.c.l.b16 %v32
  %v182 = vunpack.c.h.b16 %v32
  %v183 = vunpack.c.l.b16 %v33
  %v184 = vunpack.c.h.b16 %v33
  %v185 = vunpack.c.l.b16 %v34
  %v186 = vunpack.c.h.b16 %v34
  %v187 = vunpack.c.l.b16 %v35
  %v188 = vunpack.c.h.b16 %v35
  %v189 = vunpack.c.l.b16 %v36
  %v190 = vunpack.c.h.b16 %v36
  %v191 = vunpack.c.l.b16 %v37
  %v192 = vunpack.c.h.b16 %v37
  %v193 = vunpack.c.l.b16 %v38
  %v194 = vunpack.c.h.b16 %v38
  %v195 = vunpack.c.l.b16 %v39
  %v196 = vunpack.c.h.b16 %v39
  %v197 = vunpack.c.l.b16 %v40
  %v198 = vunpack.c.h.b16 %v40
  %v199 = vunpack.c.l.b16 %v41
  %v200 = vunpack.c.h.b16 %v41
  %v201 = vunpack.c.l.b16 %v42
  %v202 = vunpack.c.h.b16 %v42
  %v203 = vunpack.c.l.b16 %v43
  %v204 = vunpack.c.h.b16 %v43
  %v205 = vunpack.c.l.b16 %v44
  %v206 = vunpack.c.h.b16 %v44
  %v207 = vunpack.c.l.b16 %v45
  %v208 = vunpack.c.h.b16 %v45
  %v209 = vunpack.c.l.b16 %v46
  %v210 = vunpack.c.h.b16 %v46
  %v211 = vunpack.c.l.b16 %v47
  %v212 = vunpack.c.h.b16 %v47
  %v213 = vunpack.c.l.b16 %v48
  %v214 = vunpack.c.h.b16 %v48
  %v215 = vunpack.c.l.b16 %v49
  %v216 = vunpack.c.h.b16 %v49
  %v217 = vunpack.c.l.b16 %v50
  %v218 = vunpack.c.h.b16 %v50
  %v219 = vunpack.c.l.b16 %v51
  %v220 = vunpack.c.h.b16 %v51
  %v221 = vunpack.c.l.b16 %v52
  %v222 = vunpack.c.h.b16 %v52
  %v223 = vunpack.c.l.b16 %v53
  %v224 = vunpack.c.h.b16 %v53
  %v225 = vunpack.c.l.b16 %v54
  %v226 = vunpack.c.h.b16 %v54
  %v227 = vunpack.c.l.b16 %v55
  %v228 = vunpack.c.h.b16 %v55
  %v229 = vunpack.c.l.b16 %v56
  %v230 = vunpack.c.h.b16 %v56
  %v231 = vunpack.c.l.b16 %v57
  %v232 = vunpack.c.h.b16 %v57
  %v233 = vunpack.c.l.b16 %v58
  %v234 = vunpack.c.h.b16 %v58
  %v235 = vunpack.c.l.b16 %v59
  %v236 = vunpack.c.h.b16 %v59
  %v237 = vunpack.c.l.b16 %v60
  %v238 = vunpack.c.h.b16 %v60
  %v239 = vunpack.c.l.b16 %v61
  %v240 = vunpack.c.h.b16 %v61
  %v241 = vunpack.c.l.b16 %v62
  %v242 = vunpack.c.h.b16 %v62
  %v243 = vunpack.c.l.b16 %v63
  %v244 = vunpack.c.h.b16 %v63
  %v245 = vunpack.c.l.b16 %v64
  %v246 = vunpack.c.h.b16 %v64
  %v247 = vunpack.c.l.b16 %v65
  %v248 = vunpack.c.h.b16 %v65
  %v249 = vunpack.c.l.b16 %v66
  %v250 = vunpack.c.h.b16 %v66
  %v251 = vunpack.c.l.b16 %v67
  %v252 = vunpack.c.h.b16 %v67
  %v253 = vunpack.c.l.b16 %v68
  %v254 = vunpack.c.h.b16 %v68
  %v255 = vunpack.c.l.b16 %v69
  %v256 = vunpack.c.h.b16 %v69
  %v257 = vunpack.c.l.b16 %v70
  %v258 = vunpack.c.h.b16 %v70
  %v259 = vunpack.c.l.b16 %v71
  %v260 = vunpack.c.h.b16 %v71
  %v261 = vunpack.c.l.b16 %v72
  %v262 = vunpack.c.h.b16 %v72
  %v263 = vunpack.c.l.b16 %v73
  %v264 = vunpack.c.h.b16 %v73
  %v265 = vunpack.c.l.b16 %v74
  %v266 = vunpack.c.h.b16 %v74
  %v267 = vunpack.c.l.b16 %v75
  %v268 = vunpack.c.h.b16 %v75
  %v269 = vunpack.c.l.b16 %v76
  %v270 = vunpack.c.h.b16 %v76
  %v271 = vunpack.c.l.b16 %v77
  %v272 = vunpack.c.h.b16 %v77
  %v273 = vunpack.c.l.b16 %v78
  %v274 = vunpack.c.h.b16 %v78
  %v275 = vunpack.c.l.b16 %v79
  %v276 = vunpack.c.h.b16 %v79
  %v277 = vunpack.c.l.b16 %v80
  %v278 = vunpack.c.h.b16 %v80
  %v279 = vunpack.c.l.b16 %v81
  %v280 = vunpack.c.h.b16 %v81
  %v281 = vpack.c.b16 %v157, %v153
  %v282 = vpack.c.b16 %v158, %v154
  %v283 = vpack.c.b16 %v159, %v155
  %v284 = vpack.c.b16 %v160, %v156
  %v285 = vpack.c.b16 %v165, %v161
  %v286 = vpack.c.b16 %v166, %v162
  %v287 = vpack.c.b16 %v167, %v163
  %v288 = vpack.c.b16 %v168, %v164
  %v289 = vpack.c.b16 %v173, %v169
  %v290 = vpack.c.b16 %v174, %v170
  %v291 = vpack.c.b16 %v175, %v171
  %v292 = vpack.c.b16 %v176, %v172
  %v293 = vpack.c.b16 %v181, %v177
  %v294 = vpack.c.b16 %v182, %v178
  %v295 = vpack.c.b16 %v183, %v179
  %v296 = vpack.c.b16 %v184, %v180
  %v297 = vpack.c.b16 %v189, %v185
  %v298 = vpack.c.b16 %v190, %v186
  %v299 = vpack.c.b16 %v191, %v187
  %v300 = vpack.c.b16 %v192, %v188
  %v301 = vpack.c.b16 %v197, %v193
  %v302 = vpack.c.b16 %v198, %v194
  %v303 = vpack.c.b16 %v199, %v195
  %v304 = vpack.c.b16 %v200, %v196
  %v305 = vpack.c.b16 %v205, %v201
  %v306 = vpack.c.b16 %v206, %v202
  %v307 = vpack.c.b16 %v207, %v203
  %v308 = vpack.c.b16 %v208, %v204
  %v309 = vpack.c.b16 %v213, %v209
  %v310 = vpack.c.b16 %v214, %v210
  %v311 = vpack.c.b16 %v215, %v211
  %v312 = vpack.c.b16 %v216, %v212
  %v313 = vpack.c.b16 %v221, %v217
  %v314 = vpack.c.b16 %v222, %v218
  %v315 = vpack.c.b16 %v223, %v219
  %v316 = vpack.c.b16 %v224, %v220
  %v317 = vpack.c.b16 %v229, %v225
  %v318 = vpack.c.b16 %v230, %v226
  %v319 = vpack.c.b16 %v231, %v227
  %v320 = vpack.c.b16 %v232, %v228
  %v321 = vpack.c.b16 %v237, %v233
  %v322 = vpack.c.b16 %v238, %v234
  %v323 = vpack.c.b16 %v239, %v235
  %v324 = vpack.c.b16 %v240, %v236
  %v325 = vpack.c.b16 %v245, %v241
  %v326 = vpack.c.b16 %v246, %v242
  %v327 = vpack.c.b16 %v247, %v243
  %v328 = vpack.c.b16 %v248, %v244
  %v329 = vpack.c.b16 %v253, %v249
  %v330 = vpack.c.b16 %v254, %v250
  %v331 = vpack.c.b16 %v255, %v251
  %v332 = vpack.c.b16 %v256, %v252
  %v333 = vpack.c.b16 %v261, %v257
  %v334 = vpack.c.b16 %v262, %v258
  %v335 = vpack.c.b16 %v263, %v259
  %v336 = vpack.c.b16 %v264, %v260
  %v337 = vpack.c.b16 %v269, %v265
  %v338 = vpack.c.b16 %v270, %v266
  %v339 = vpack.c.b16 %v271, %v267
  %v340 = vpack.c.b16 %v272, %v268
  %v341 = vpack.c.b16 %v277, %v273
  %v342 = vpack.c.b16 %v278, %v274
  %v343 = vpack.c.b16 %v279, %v275
  %v344 = vpack.c.b16 %v280, %v276
  %409 = vmatprep.subr.bf16.mxu0 %v282
  %410 = vmatpush1.bf16.msra.mxu0 %v281
  %411 = vmatprep.subr.bf16.mxu0 %v286
  %412 = vmatpush1.bf16.msra.mxu0 %v285
  %413 = vmatprep.subr.bf16.mxu0 %v290
  %414 = vmatpush1.bf16.msra.mxu0 %v289
  %415 = vmatprep.subr.bf16.mxu0 %v294
  %416 = vmatpush1.bf16.msra.mxu0 %v293
  %417 = vmatprep.subr.bf16.mxu0 %v298
  %418 = vmatpush1.bf16.msra.mxu0 %v297
  %419 = vmatprep.subr.bf16.mxu0 %v302
  %420 = vmatpush1.bf16.msra.mxu0 %v301
  %421 = vmatprep.subr.bf16.mxu0 %v306
  %422 = vmatpush1.bf16.msra.mxu0 %v305
  %423 = vmatprep.subr.bf16.mxu0 %v310
  %424 = vmatpush1.bf16.msra.mxu0 %v309
  %425 = vmatprep.subr.bf16.mxu0 %v314
  %426 = vmatpush1.bf16.msra.mxu0 %v313
  %427 = vmatprep.subr.bf16.mxu0 %v318
  %428 = vmatpush1.bf16.msra.mxu0 %v317
  %429 = vmatprep.subr.bf16.mxu0 %v322
  %430 = vmatpush1.bf16.msra.mxu0 %v321
  %431 = vmatprep.subr.bf16.mxu0 %v326
  %432 = vmatpush1.bf16.msra.mxu0 %v325
  %433 = vmatprep.subr.bf16.mxu0 %v330
  %434 = vmatpush1.bf16.msra.mxu0 %v329
  %435 = vmatprep.subr.bf16.mxu0 %v334
  %436 = vmatpush1.bf16.msra.mxu0 %v333
  %437 = vmatprep.subr.bf16.mxu0 %v338
  %438 = vmatpush1.bf16.msra.mxu0 %v337
  %439 = vmatprep.subr.bf16.mxu0 %v342
  %440 = vmatpush1.bf16.msra.mxu0 %v341
  %441 = vmatprep.mubr.bf16.mxu0 %v86
  %442 = vmatmul.mubr.bf16.gmra.mrb[0].mxu0 %v85
  %v443 = vpop.f32.mrb[0].mxu0
  %v444 = vadd.f32 0.0, %v443
  %v445 = vpop.f32.mrb[0].mxu0
  %v446 = vadd.f32 0.0, %v445
  %v447 = vpop.f32.mrb[0].mxu0
  %v448 = vpop.f32.mrb[0].mxu0
  %449 = vdwg.mxu0
  %450 = vmatprep.subr.bf16.mxu0 %v284
  %451 = vmatpush1.bf16.msra.mxu0 %v283
  %452 = vmatprep.subr.bf16.mxu0 %v288
  %453 = vmatpush1.bf16.msra.mxu0 %v287
  %454 = vmatprep.subr.bf16.mxu0 %v292
  %455 = vmatpush1.bf16.msra.mxu0 %v291
  %456 = vmatprep.subr.bf16.mxu0 %v296
  %457 = vmatpush1.bf16.msra.mxu0 %v295
  %458 = vmatprep.subr.bf16.mxu0 %v300
  %459 = vmatpush1.bf16.msra.mxu0 %v299
  %460 = vmatprep.subr.bf16.mxu0 %v304
  %461 = vmatpush1.bf16.msra.mxu0 %v303
  %462 = vmatprep.subr.bf16.mxu0 %v308
  %463 = vmatpush1.bf16.msra.mxu0 %v307
  %464 = vmatprep.subr.bf16.mxu0 %v312
  %465 = vmatpush1.bf16.msra.mxu0 %v311
  %466 = vmatprep.subr.bf16.mxu0 %v316
  %467 = vmatpush1.bf16.msra.mxu0 %v315
  %468 = vmatprep.subr.bf16.mxu0 %v320
  %469 = vmatpush1.bf16.msra.mxu0 %v319
  %470 = vmatprep.subr.bf16.mxu0 %v324
  %471 = vmatpush1.bf16.msra.mxu0 %v323
  %472 = vmatprep.subr.bf16.mxu0 %v328
  %473 = vmatpush1.bf16.msra.mxu0 %v327
  %474 = vmatprep.subr.bf16.mxu0 %v332
  %475 = vmatpush1.bf16.msra.mxu0 %v331
  %476 = vmatprep.subr.bf16.mxu0 %v336
  %477 = vmatpush1.bf16.msra.mxu0 %v335
  %478 = vmatprep.subr.bf16.mxu0 %v340
  %479 = vmatpush1.bf16.msra.mxu0 %v339
  %480 = vmatprep.subr.bf16.mxu0 %v344
  %481 = vmatpush1.bf16.msra.mxu0 %v343
  %482 = vmatprep.mubr.bf16.mxu0 %v86
  %483 = vmatmul.mubr.bf16.gmra.mrb[0].mxu0 %v85
  %v484 = vpop.f32.mrb[0].mxu0
  %v485 = vadd.f32 0.0, %v484
  %v486 = vpop.f32.mrb[0].mxu0
  %v487 = vadd.f32 0.0, %v486
  %v488 = vpop.f32.mrb[0].mxu0
  %v489 = vpop.f32.mrb[0].mxu0
  %490 = vdwg.mxu0
  %v491 = vld [vmem:[%s2] sm:$0xff]
  %493 = vset.pattern.permute.xlu0 0
  %494 = vperm.xlu0 %493, %v491
  %v495 = vpop.permute.xlu0 %494
  %v497 = vmul.f32 %v444, %v495
  %v498 = vmul.f32 %v446, %v495
  %v499 = vmul.f32 %v485, %v495
  %v500 = vmul.f32 %v487, %v495
  %v501 = vld [vmem:[%s3] sm:$0xff]
  %503 = vset.pattern.permute.xlu0 0
  %504 = vperm.xlu0 %503, %v501
  %v505 = vpop.permute.xlu0 %504
  %v507 = vadd.f32 %v497, %v505
  %v508 = vadd.f32 %v498, %v505
  %v509 = vadd.f32 %v499, %v505
  %v510 = vadd.f32 %v500, %v505
  %v511 = vmax.f32 %v507, 0.0
  %v512 = vmax.f32 %v508, 0.0
  %v513 = vmax.f32 %v509, 0.0
  %v514 = vmax.f32 %v510, 0.0
  %515 = vst [vmem:[%s4] sm:$0xff] %v511
  %516 = vst [vmem:[%s4 + $0x8] sm:$0xff] %v512
  %517 = vst [vmem:[%s4 + $0x10] sm:$0xff] %v513
  %518 = vst [vmem:[%s4 + $0x18] sm:$0xff] %v514
  // Predicated region
  $region18: #{_lambda_.21} parent=0 // pred_check
    _
  $region19: #{_lambda_.21} parent=0 // pred_check_branch
    %520 = sbr.rel (0) target = $region21
  $region20: #{_lambda_.21} parent=0 // pred_region
    _
  $region21: #{_lambda_.21} parent=0 // pred_fallthru
    _
  // Predicated region
  $region22: #{_lambda_.21} parent=0 // pred_check
    _
  $region23: #{_lambda_.21} parent=0 // pred_check_branch
    %522 = sbr.rel (0) target = $region25
  $region24: #{_lambda_.21} parent=0 // pred_region
    _
  $region25: #{_lambda_.21} parent=0 // pred_fallthru
    _

// kernel: _lambda_.22
$region0: #{_lambda_.22}
  #allocation0 [shape = 'u32[]', space=smem, size = 0x4, offset = 0x4, fixed_abs, tag = 'smem constant byte address 0x4 - core index']
  #allocation1 [shape = 'u32[144,128]{1,0:T(1,128)}', space=vmem, size = 0x12000, scoped, tag = 'internal scratch']
  %s0 = inlined_call_operand.vmem [shape: f32[9,8,128], index: 0, kind: input, shape index: {}]
  %s1 = inlined_call_operand.vmem [shape: f32[8,128], index: 1, kind: output, shape index: {}]
  %s2 = sld [smem:[#allocation0]]
  $region14: #{_lambda_.22} parent=0
    _
  %s4 = ssub.s32 1, %s2
  %s5 = scalar_select 0, %s4, %s2
  // Predicated region
  $region2: #{_lambda_.22} parent=0 // pred_check
    _
  $region3: #{_lambda_.22} parent=0 // pred_check_branch
    %7 = sbr.rel (0) target = $region5
  $region4: #{_lambda_.22} parent=0 // pred_region
    _
  $region5: #{_lambda_.22} parent=0 // pred_fallthru
    _
  %v8 = vld [vmem:[%s0] sm:$0xff]
  %v9 = vld [vmem:[%s0 + $0x8] sm:$0xff]
  %v10 = vld [vmem:[%s0 + $0x10] sm:$0xff]
  %v11 = vld [vmem:[%s0 + $0x18] sm:$0xff]
  %v12 = vld [vmem:[%s0 + $0x20] sm:$0xff]
  %v13 = vld [vmem:[%s0 + $0x28] sm:$0xff]
  %v14 = vld [vmem:[%s0 + $0x30] sm:$0xff]
  %v15 = vld [vmem:[%s0 + $0x38] sm:$0xff]
  %v16 = vld [vmem:[%s0 + $0x40] sm:$0xff]
  %v17 = vmax.f32 %v8, %v12
  %v18 = vmax.f32 %v9, %v13
  %v19 = vmax.f32 %v10, %v14
  %v20 = vmax.f32 %v11, %v15
  %v21 = vmax.f32 %v17, %v16
  %v22 = vmax.f32 %v21, %v18
  %v23 = vmax.f32 %v19, %v20
  %v24 = vmax.f32 %v22, %v23
  %25 = vst [vmem:[%s1] sm:$0xff] %v24
  // Predicated region
  $region6: #{_lambda_.22} parent=0 // pred_check
    _
  $region7: #{_lambda_.22} parent=0 // pred_check_branch
    %27 = sbr.rel (0) target = $region9
  $region8: #{_lambda_.22} parent=0 // pred_region
    _
  $region9: #{_lambda_.22} parent=0 // pred_fallthru
    _
  // Predicated region
  $region10: #{_lambda_.22} parent=0 // pred_check
    _
  $region11: #{_lambda_.22} parent=0 // pred_check_branch
    %29 = sbr.rel (0) target = $region13
  $region12: #{_lambda_.22} parent=0 // pred_region
    _
  $region13: #{_lambda_.22} parent=0 // pred_fallthru
    _

// kernel: _lambda_.24
$region0: #{_lambda_.24}
  #allocation0 [shape = 'u32[]', space=smem, size = 0x4, offset = 0x4, fixed_abs, tag = 'smem constant byte address 0x4 - core index']
  #allocation1 [shape = 'u32[144,128]{1,0:T(1,128)}', space=vmem, size = 0x12000, scoped, tag = 'internal scratch']
  %s0 = inlined_call_operand.vmem [shape: bf16[8,128], index: 0, kind: input, shape index: {}]
  %s1 = inlined_call_operand.vmem [shape: bf16[128,128], index: 1, kind: input, shape index: {}]
  %s2 = inlined_call_operand.vmem [shape: f32[8,1], index: 2, kind: input, shape index: {}]
  %s3 = inlined_call_operand.vmem [shape: f32[8,1], index: 3, kind: input, shape index: {}]
  %s4 = inlined_call_operand.vmem [shape: f32[8,128], index: 4, kind: input, shape index: {}]
  %s5 = inlined_call_operand.vmem [shape: f32[8,128], index: 5, kind: output, shape index: {}]
  %s6 = sld [smem:[#allocation0]]
  $region30: #{_lambda_.24} parent=0
    _
  %s8 = ssub.s32 1, %s6
  %s9 = scalar_select 0, %s8, %s6
  // Predicated region
  $region2: #{_lambda_.24} parent=0 // pred_check
    _
  $region3: #{_lambda_.24} parent=0 // pred_check_branch
    %11 = sbr.rel (0) target = $region5
  $region4: #{_lambda_.24} parent=0 // pred_region
    _
  $region5: #{_lambda_.24} parent=0 // pred_fallthru
    _
  // Predicated region
  $region6: #{_lambda_.24} parent=0 // pred_check
    _
  $region7: #{_lambda_.24} parent=0 // pred_check_branch
    %13 = sbr.rel (0) target = $region9
  $region8: #{_lambda_.24} parent=0 // pred_region
    _
  $region9: #{_lambda_.24} parent=0 // pred_fallthru
    _
  // Predicated region
  $region10: #{_lambda_.24} parent=0 // pred_check
    _
  $region11: #{_lambda_.24} parent=0 // pred_check_branch
    %15 = sbr.rel (0) target = $region13
  $region12: #{_lambda_.24} parent=0 // pred_region
    _
  $region13: #{_lambda_.24} parent=0 // pred_fallthru
    _
  // Predicated region
  $region14: #{_lambda_.24} parent=0 // pred_check
    _
  $region15: #{_lambda_.24} parent=0 // pred_check_branch
    %17 = sbr.rel (0) target = $region17
  $region16: #{_lambda_.24} parent=0 // pred_region
    _
  $region17: #{_lambda_.24} parent=0 // pred_fallthru
    _
  // Predicated region
  $region18: #{_lambda_.24} parent=0 // pred_check
    _
  $region19: #{_lambda_.24} parent=0 // pred_check_branch
    %19 = sbr.rel (0) target = $region21
  $region20: #{_lambda_.24} parent=0 // pred_region
    _
  $region21: #{_lambda_.24} parent=0 // pred_fallthru
    _
  %v21 = vld [vmem:[%s0] sm:$0xf]
  %v22 = vld [vmem:[%s1] sm:$0xf]
  %v23 = vld [vmem:[%s1 + $0x4] sm:$0xf]
  %v24 = vld [vmem:[%s1 + $0x8] sm:$0xf]
  %v25 = vld [vmem:[%s1 + $0xc] sm:$0xf]
  %v26 = vld [vmem:[%s1 + $0x10] sm:$0xf]
  %v27 = vld [vmem:[%s1 + $0x14] sm:$0xf]
  %v28 = vld [vmem:[%s1 + $0x18] sm:$0xf]
  %v29 = vld [vmem:[%s1 + $0x1c] sm:$0xf]
  %v30 = vld [vmem:[%s1 + $0x20] sm:$0xf]
  %v31 = vld [vmem:[%s1 + $0x24] sm:$0xf]
  %v32 = vld [vmem:[%s1 + $0x28] sm:$0xf]
  %v33 = vld [vmem:[%s1 + $0x2c] sm:$0xf]
  %v34 = vld [vmem:[%s1 + $0x30] sm:$0xf]
  %v35 = vld [vmem:[%s1 + $0x34] sm:$0xf]
  %v36 = vld [vmem:[%s1 + $0x38] sm:$0xf]
  %v37 = vld [vmem:[%s1 + $0x3c] sm:$0xf]
  %v54 = vunpack.c.l.b16 %v22
  %v55 = vunpack.c.l.b16 %v23
  %v56 = vunpack.c.l.b16 %v24
  %v57 = vunpack.c.l.b16 %v25
  %v58 = vunpack.c.l.b16 %v26
  %v59 = vunpack.c.l.b16 %v27
  %v60 = vunpack.c.l.b16 %v28
  %v61 = vunpack.c.l.b16 %v29
  %v62 = vunpack.c.l.b16 %v30
  %v63 = vunpack.c.l.b16 %v31
  %v64 = vunpack.c.l.b16 %v32
  %v65 = vunpack.c.l.b16 %v33
  %v66 = vunpack.c.l.b16 %v34
  %v67 = vunpack.c.l.b16 %v35
  %v68 = vunpack.c.l.b16 %v36
  %v69 = vunpack.c.l.b16 %v37
  %v70 = vpack.c.b16 %v55, %v54
  %v71 = vpack.c.b16 %v57, %v56
  %v72 = vpack.c.b16 %v59, %v58
  %v73 = vpack.c.b16 %v61, %v60
  %v74 = vpack.c.b16 %v63, %v62
  %v75 = vpack.c.b16 %v65, %v64
  %v76 = vpack.c.b16 %v67, %v66
  %v77 = vpack.c.b16 %v69, %v68
  %86 = vmatprep.subr.bf16.mxu0 0
  %87 = vmatpush1.bf16.msra.mxu0 %v70
  %88 = vmatprep.subr.bf16.mxu0 0
  %89 = vmatpush1.bf16.msra.mxu0 %v71
  %90 = vmatprep.subr.bf16.mxu0 0
  %91 = vmatpush1.bf16.msra.mxu0 %v72
  %92 = vmatprep.subr.bf16.mxu0 0
  %93 = vmatpush1.bf16.msra.mxu0 %v73
  %94 = vmatprep.subr.bf16.mxu0 0
  %95 = vmatpush1.bf16.msra.mxu0 %v74
  %96 = vmatprep.subr.bf16.mxu0 0
  %97 = vmatpush1.bf16.msra.mxu0 %v75
  %98 = vmatprep.subr.bf16.mxu0 0
  %99 = vmatpush1.bf16.msra.mxu0 %v76
  %100 = vmatprep.subr.bf16.mxu0 0
  %101 = vmatpush1.bf16.msra.mxu0 %v77
  %102 = vmatprep.subr.bf16.mxu0 0
  %103 = vmatpush1.bf16.msra.mxu0 0
  %104 = vmatprep.subr.bf16.mxu0 0
  %105 = vmatpush1.bf16.msra.mxu0 0
  %106 = vmatprep.subr.bf16.mxu0 0
  %107 = vmatpush1.bf16.msra.mxu0 0
  %108 = vmatprep.subr.bf16.mxu0 0
  %109 = vmatpush1.bf16.msra.mxu0 0
  %110 = vmatprep.subr.bf16.mxu0 0
  %111 = vmatpush1.bf16.msra.mxu0 0
  %112 = vmatprep.subr.bf16.mxu0 0
  %113 = vmatpush1.bf16.msra.mxu0 0
  %114 = vmatprep.subr.bf16.mxu0 0
  %115 = vmatpush1.bf16.msra.mxu0 0
  %116 = vmatprep.subr.bf16.mxu0 0
  %117 = vmatpush1.bf16.msra.mxu0 0
  %118 = vmatprep.mubr.bf16.mxu0 0
  %119 = vmatmul.mubr.bf16.gmra.mrb[0].mxu0 %v21
  %v120 = vpop.f32.mrb[0].mxu0
  %v121 = vadd.f32 0.0, %v120
  %v122 = vpop.f32.mrb[0].mxu0
  %v123 = vpop.f32.mrb[0].mxu0
  %v124 = vpop.f32.mrb[0].mxu0
  %125 = vdwg.mxu0
  %v126 = vld [vmem:[%s2] sm:$0xff]
  %128 = vset.pattern.permute.xlu0 0
  %129 = vperm.xlu0 %128, %v126
  %v130 = vpop.permute.xlu0 %129
  %v132 = vmul.f32 %v121, %v130
  %v133 = vld [vmem:[%s3] sm:$0xff]
  %135 = vset.pattern.permute.xlu0 0
  %136 = vperm.xlu0 %135, %v133
  %v137 = vpop.permute.xlu0 %136
  %v139 = vadd.f32 %v132, %v137
  %v140 = vld [vmem:[%s4] sm:$0xff]
  %v141 = vadd.f32 %v139, %v140
  %v142 = vmax.f32 %v141, 0.0
  %143 = vst [vmem:[%s5] sm:$0xff] %v142
  // Predicated region
  $region22: #{_lambda_.24} parent=0 // pred_check
    _
  $region23: #{_lambda_.24} parent=0 // pred_check_branch
    %145 = sbr.rel (0) target = $region25
  $region24: #{_lambda_.24} parent=0 // pred_region
    _
  $region25: #{_lambda_.24} parent=0 // pred_fallthru
    _
  // Predicated region
  $region26: #{_lambda_.24} parent=0 // pred_check
    _
  $region27: #{_lambda_.24} parent=0 // pred_check_branch
    %147 = sbr.rel (0) target = $region29
  $region28: #{_lambda_.24} parent=0 // pred_region
    _
  $region29: #{_lambda_.24} parent=0 // pred_fallthru
    _

// kernel: _lambda_.23
$region0: #{_lambda_.23}
  #allocation0 [shape = 'u32[]', space=smem, size = 0x4, offset = 0x4, fixed_abs, tag = 'smem constant byte address 0x4 - core index']
  #allocation1 [shape = 'u32[144,128]{1,0:T(1,128)}', space=vmem, size = 0x12000, scoped, tag = 'internal scratch']
  %s0 = inlined_call_operand.vmem [shape: bf16[8,128], index: 0, kind: input, shape index: {}]
  %s1 = inlined_call_operand.vmem [shape: bf16[128,128], index: 1, kind: input, shape index: {}]
  %s2 = inlined_call_operand.vmem [shape: f32[8,1], index: 2, kind: input, shape index: {}]
  %s3 = inlined_call_operand.vmem [shape: f32[8,1], index: 3, kind: input, shape index: {}]
  %s4 = inlined_call_operand.vmem [shape: f32[8,128], index: 4, kind: output, shape index: {}]
  %s5 = sld [smem:[#allocation0]]
  $region26: #{_lambda_.23} parent=0
    _
  %s7 = ssub.s32 1, %s5
  %s8 = scalar_select 0, %s7, %s5
  // Predicated region
  $region2: #{_lambda_.23} parent=0 // pred_check
    _
  $region3: #{_lambda_.23} parent=0 // pred_check_branch
    %10 = sbr.rel (0) target = $region5
  $region4: #{_lambda_.23} parent=0 // pred_region
    _
  $region5: #{_lambda_.23} parent=0 // pred_fallthru
    _
  // Predicated region
  $region6: #{_lambda_.23} parent=0 // pred_check
    _
  $region7: #{_lambda_.23} parent=0 // pred_check_branch
    %12 = sbr.rel (0) target = $region9
  $region8: #{_lambda_.23} parent=0 // pred_region
    _
  $region9: #{_lambda_.23} parent=0 // pred_fallthru
    _
  // Predicated region
  $region10: #{_lambda_.23} parent=0 // pred_check
    _
  $region11: #{_lambda_.23} parent=0 // pred_check_branch
    %14 = sbr.rel (0) target = $region13
  $region12: #{_lambda_.23} parent=0 // pred_region
    _
  $region13: #{_lambda_.23} parent=0 // pred_fallthru
    _
  // Predicated region
  $region14: #{_lambda_.23} parent=0 // pred_check
    _
  $region15: #{_lambda_.23} parent=0 // pred_check_branch
    %16 = sbr.rel (0) target = $region17
  $region16: #{_lambda_.23} parent=0 // pred_region
    _
  $region17: #{_lambda_.23} parent=0 // pred_fallthru
    _
  %v18 = vld [vmem:[%s0] sm:$0xf]
  %v19 = vld [vmem:[%s1] sm:$0xf]
  %v20 = vld [vmem:[%s1 + $0x4] sm:$0xf]
  %v21 = vld [vmem:[%s1 + $0x8] sm:$0xf]
  %v22 = vld [vmem:[%s1 + $0xc] sm:$0xf]
  %v23 = vld [vmem:[%s1 + $0x10] sm:$0xf]
  %v24 = vld [vmem:[%s1 + $0x14] sm:$0xf]
  %v25 = vld [vmem:[%s1 + $0x18] sm:$0xf]
  %v26 = vld [vmem:[%s1 + $0x1c] sm:$0xf]
  %v27 = vld [vmem:[%s1 + $0x20] sm:$0xf]
  %v28 = vld [vmem:[%s1 + $0x24] sm:$0xf]
  %v29 = vld [vmem:[%s1 + $0x28] sm:$0xf]
  %v30 = vld [vmem:[%s1 + $0x2c] sm:$0xf]
  %v31 = vld [vmem:[%s1 + $0x30] sm:$0xf]
  %v32 = vld [vmem:[%s1 + $0x34] sm:$0xf]
  %v33 = vld [vmem:[%s1 + $0x38] sm:$0xf]
  %v34 = vld [vmem:[%s1 + $0x3c] sm:$0xf]
  %v51 = vunpack.c.l.b16 %v19
  %v52 = vunpack.c.l.b16 %v20
  %v53 = vunpack.c.l.b16 %v21
  %v54 = vunpack.c.l.b16 %v22
  %v55 = vunpack.c.l.b16 %v23
  %v56 = vunpack.c.l.b16 %v24
  %v57 = vunpack.c.l.b16 %v25
  %v58 = vunpack.c.l.b16 %v26
  %v59 = vunpack.c.l.b16 %v27
  %v60 = vunpack.c.l.b16 %v28
  %v61 = vunpack.c.l.b16 %v29
  %v62 = vunpack.c.l.b16 %v30
  %v63 = vunpack.c.l.b16 %v31
  %v64 = vunpack.c.l.b16 %v32
  %v65 = vunpack.c.l.b16 %v33
  %v66 = vunpack.c.l.b16 %v34
  %v67 = vpack.c.b16 %v52, %v51
  %v68 = vpack.c.b16 %v54, %v53
  %v69 = vpack.c.b16 %v56, %v55
  %v70 = vpack.c.b16 %v58, %v57
  %v71 = vpack.c.b16 %v60, %v59
  %v72 = vpack.c.b16 %v62, %v61
  %v73 = vpack.c.b16 %v64, %v63
  %v74 = vpack.c.b16 %v66, %v65
  %83 = vmatprep.subr.bf16.mxu0 0
  %84 = vmatpush1.bf16.msra.mxu0 %v67
  %85 = vmatprep.subr.bf16.mxu0 0
  %86 = vmatpush1.bf16.msra.mxu0 %v68
  %87 = vmatprep.subr.bf16.mxu0 0
  %88 = vmatpush1.bf16.msra.mxu0 %v69
  %89 = vmatprep.subr.bf16.mxu0 0
  %90 = vmatpush1.bf16.msra.mxu0 %v70
  %91 = vmatprep.subr.bf16.mxu0 0
  %92 = vmatpush1.bf16.msra.mxu0 %v71
  %93 = vmatprep.subr.bf16.mxu0 0
  %94 = vmatpush1.bf16.msra.mxu0 %v72
  %95 = vmatprep.subr.bf16.mxu0 0
  %96 = vmatpush1.bf16.msra.mxu0 %v73
  %97 = vmatprep.subr.bf16.mxu0 0
  %98 = vmatpush1.bf16.msra.mxu0 %v74
  %99 = vmatprep.subr.bf16.mxu0 0
  %100 = vmatpush1.bf16.msra.mxu0 0
  %101 = vmatprep.subr.bf16.mxu0 0
  %102 = vmatpush1.bf16.msra.mxu0 0
  %103 = vmatprep.subr.bf16.mxu0 0
  %104 = vmatpush1.bf16.msra.mxu0 0
  %105 = vmatprep.subr.bf16.mxu0 0
  %106 = vmatpush1.bf16.msra.mxu0 0
  %107 = vmatprep.subr.bf16.mxu0 0
  %108 = vmatpush1.bf16.msra.mxu0 0
  %109 = vmatprep.subr.bf16.mxu0 0
  %110 = vmatpush1.bf16.msra.mxu0 0
  %111 = vmatprep.subr.bf16.mxu0 0
  %112 = vmatpush1.bf16.msra.mxu0 0
  %113 = vmatprep.subr.bf16.mxu0 0
  %114 = vmatpush1.bf16.msra.mxu0 0
  %115 = vmatprep.mubr.bf16.mxu0 0
  %116 = vmatmul.mubr.bf16.gmra.mrb[0].mxu0 %v18
  %v117 = vpop.f32.mrb[0].mxu0
  %v118 = vadd.f32 0.0, %v117
  %v119 = vpop.f32.mrb[0].mxu0
  %v120 = vpop.f32.mrb[0].mxu0
  %v121 = vpop.f32.mrb[0].mxu0
  %122 = vdwg.mxu0
  %v123 = vld [vmem:[%s2] sm:$0xff]
  %125 = vset.pattern.permute.xlu0 0
  %126 = vperm.xlu0 %125, %v123
  %v127 = vpop.permute.xlu0 %126
  %v129 = vmul.f32 %v118, %v127
  %v130 = vld [vmem:[%s3] sm:$0xff]
  %132 = vset.pattern.permute.xlu0 0
  %133 = vperm.xlu0 %132, %v130
  %v134 = vpop.permute.xlu0 %133
  %v136 = vadd.f32 %v129, %v134
  %v137 = vmax.f32 %v136, 0.0
  %138 = vst [vmem:[%s4] sm:$0xff] %v137
  // Predicated region
  $region18: #{_lambda_.23} parent=0 // pred_check
    _
  $region19: #{_lambda_.23} parent=0 // pred_check_branch
    %140 = sbr.rel (0) target = $region21
  $region20: #{_lambda_.23} parent=0 // pred_region
    _
  $region21: #{_lambda_.23} parent=0 // pred_fallthru
    _
  // Predicated region
  $region22: #{_lambda_.23} parent=0 // pred_check
    _
  $region23: #{_lambda_.23} parent=0 // pred_check_branch
    %142 = sbr.rel (0) target = $region25
  $region24: #{_lambda_.23} parent=0 // pred_region
    _
  $region25: #{_lambda_.23} parent=0 // pred_fallthru
    _

// kernel: _lambda_.28
$region0: #{_lambda_.28}
  #allocation0 [shape = 'u32[]', space=smem, size = 0x4, offset = 0x4, fixed_abs, tag = 'smem constant byte address 0x4 - core index']
  #allocation1 [shape = 'u32[144,128]{1,0:T(1,128)}', space=vmem, size = 0x12000, scoped, tag = 'internal scratch']
  %s0 = inlined_call_operand.vmem [shape: bf16[16,128], index: 0, kind: input, shape index: {}]
  %s1 = inlined_call_operand.vmem [shape: bf16[128,128], index: 1, kind: input, shape index: {}]
  %s2 = inlined_call_operand.vmem [shape: f32[16,1], index: 2, kind: input, shape index: {}]
  %s3 = inlined_call_operand.vmem [shape: f32[16,1], index: 3, kind: input, shape index: {}]
  %s4 = inlined_call_operand.vmem [shape: f32[16,128], index: 4, kind: output, shape index: {}]
  %s5 = sld [smem:[#allocation0]]
  $region26: #{_lambda_.28} parent=0
    _
  %s7 = ssub.s32 1, %s5
  %s8 = scalar_select 0, %s7, %s5
  // Predicated region
  $region2: #{_lambda_.28} parent=0 // pred_check
    _
  $region3: #{_lambda_.28} parent=0 // pred_check_branch
    %10 = sbr.rel (0) target = $region5
  $region4: #{_lambda_.28} parent=0 // pred_region
    _
  $region5: #{_lambda_.28} parent=0 // pred_fallthru
    _
  // Predicated region
  $region6: #{_lambda_.28} parent=0 // pred_check
    _
  $region7: #{_lambda_.28} parent=0 // pred_check_branch
    %12 = sbr.rel (0) target = $region9
  $region8: #{_lambda_.28} parent=0 // pred_region
    _
  $region9: #{_lambda_.28} parent=0 // pred_fallthru
    _
  // Predicated region
  $region10: #{_lambda_.28} parent=0 // pred_check
    _
  $region11: #{_lambda_.28} parent=0 // pred_check_branch
    %14 = sbr.rel (0) target = $region13
  $region12: #{_lambda_.28} parent=0 // pred_region
    _
  $region13: #{_lambda_.28} parent=0 // pred_fallthru
    _
  // Predicated region
  $region14: #{_lambda_.28} parent=0 // pred_check
    _
  $region15: #{_lambda_.28} parent=0 // pred_check_branch
    %16 = sbr.rel (0) target = $region17
  $region16: #{_lambda_.28} parent=0 // pred_region
    _
  $region17: #{_lambda_.28} parent=0 // pred_fallthru
    _
  %v18 = vld [vmem:[%s0] sm:$0xf]
  %v19 = vld [vmem:[%s0 + $0x4] sm:$0xf]
  %v20 = vld [vmem:[%s1] sm:$0xf]
  %v21 = vld [vmem:[%s1 + $0x4] sm:$0xf]
  %v22 = vld [vmem:[%s1 + $0x8] sm:$0xf]
  %v23 = vld [vmem:[%s1 + $0xc] sm:$0xf]
  %v24 = vld [vmem:[%s1 + $0x10] sm:$0xf]
  %v25 = vld [vmem:[%s1 + $0x14] sm:$0xf]
  %v26 = vld [vmem:[%s1 + $0x18] sm:$0xf]
  %v27 = vld [vmem:[%s1 + $0x1c] sm:$0xf]
  %v28 = vld [vmem:[%s1 + $0x20] sm:$0xf]
  %v29 = vld [vmem:[%s1 + $0x24] sm:$0xf]
  %v30 = vld [vmem:[%s1 + $0x28] sm:$0xf]
  %v31 = vld [vmem:[%s1 + $0x2c] sm:$0xf]
  %v32 = vld [vmem:[%s1 + $0x30] sm:$0xf]
  %v33 = vld [vmem:[%s1 + $0x34] sm:$0xf]
  %v34 = vld [vmem:[%s1 + $0x38] sm:$0xf]
  %v35 = vld [vmem:[%s1 + $0x3c] sm:$0xf]
  %v38 = vunpack.c.l.b16 %v18
  %v39 = vunpack.c.l.b16 %v19
  %v40 = vpack.c.b16 %v39, %v38
  %v58 = vunpack.c.l.b16 %v20
  %v59 = vunpack.c.l.b16 %v21
  %v60 = vunpack.c.l.b16 %v22
  %v61 = vunpack.c.l.b16 %v23
  %v62 = vunpack.c.l.b16 %v24
  %v63 = vunpack.c.l.b16 %v25
  %v64 = vunpack.c.l.b16 %v26
  %v65 = vunpack.c.l.b16 %v27
  %v66 = vunpack.c.l.b16 %v28
  %v67 = vunpack.c.l.b16 %v29
  %v68 = vunpack.c.l.b16 %v30
  %v69 = vunpack.c.l.b16 %v31
  %v70 = vunpack.c.l.b16 %v32
  %v71 = vunpack.c.l.b16 %v33
  %v72 = vunpack.c.l.b16 %v34
  %v73 = vunpack.c.l.b16 %v35
  %v74 = vpack.c.b16 %v59, %v58
  %v75 = vpack.c.b16 %v61, %v60
  %v76 = vpack.c.b16 %v63, %v62
  %v77 = vpack.c.b16 %v65, %v64
  %v78 = vpack.c.b16 %v67, %v66
  %v79 = vpack.c.b16 %v69, %v68
  %v80 = vpack.c.b16 %v71, %v70
  %v81 = vpack.c.b16 %v73, %v72
  %90 = vmatprep.subr.bf16.mxu0 0
  %91 = vmatpush1.bf16.msra.mxu0 %v74
  %92 = vmatprep.subr.bf16.mxu0 0
  %93 = vmatpush1.bf16.msra.mxu0 %v75
  %94 = vmatprep.subr.bf16.mxu0 0
  %95 = vmatpush1.bf16.msra.mxu0 %v76
  %96 = vmatprep.subr.bf16.mxu0 0
  %97 = vmatpush1.bf16.msra.mxu0 %v77
  %98 = vmatprep.subr.bf16.mxu0 0
  %99 = vmatpush1.bf16.msra.mxu0 %v78
  %100 = vmatprep.subr.bf16.mxu0 0
  %101 = vmatpush1.bf16.msra.mxu0 %v79
  %102 = vmatprep.subr.bf16.mxu0 0
  %103 = vmatpush1.bf16.msra.mxu0 %v80
  %104 = vmatprep.subr.bf16.mxu0 0
  %105 = vmatpush1.bf16.msra.mxu0 %v81
  %106 = vmatprep.subr.bf16.mxu0 0
  %107 = vmatpush1.bf16.msra.mxu0 0
  %108 = vmatprep.subr.bf16.mxu0 0
  %109 = vmatpush1.bf16.msra.mxu0 0
  %110 = vmatprep.subr.bf16.mxu0 0
  %111 = vmatpush1.bf16.msra.mxu0 0
  %112 = vmatprep.subr.bf16.mxu0 0
  %113 = vmatpush1.bf16.msra.mxu0 0
  %114 = vmatprep.subr.bf16.mxu0 0
  %115 = vmatpush1.bf16.msra.mxu0 0
  %116 = vmatprep.subr.bf16.mxu0 0
  %117 = vmatpush1.bf16.msra.mxu0 0
  %118 = vmatprep.subr.bf16.mxu0 0
  %119 = vmatpush1.bf16.msra.mxu0 0
  %120 = vmatprep.subr.bf16.mxu0 0
  %121 = vmatpush1.bf16.msra.mxu0 0
  %122 = vmatprep.mubr.bf16.mxu0 0
  %123 = vmatmul.mubr.bf16.gmra.mrb[0].mxu0 %v40
  %v124 = vpop.f32.mrb[0].mxu0
  %v125 = vadd.f32 0.0, %v124
  %v126 = vpop.f32.mrb[0].mxu0
  %v127 = vpop.f32.mrb[0].mxu0
  %v128 = vadd.f32 0.0, %v127
  %v129 = vpop.f32.mrb[0].mxu0
  %130 = vdwg.mxu0
  %v131 = vld [vmem:[%s2] sm:$0xff]
  %v132 = vld [vmem:[%s2 + $0x8] sm:$0xff]
  %134 = vset.pattern.permute.xlu0 0
  %135 = vperm.xlu0 %134, %v131
  %v136 = vpop.permute.xlu0 %135
  %139 = vset.pattern.permute.xlu0 0
  %140 = vperm.xlu0 %139, %v132
  %v141 = vpop.permute.xlu0 %140
  %v143 = vmul.f32 %v125, %v136
  %v144 = vmul.f32 %v128, %v141
  %v145 = vld [vmem:[%s3] sm:$0xff]
  %v146 = vld [vmem:[%s3 + $0x8] sm:$0xff]
  %148 = vset.pattern.permute.xlu0 0
  %149 = vperm.xlu0 %148, %v145
  %v150 = vpop.permute.xlu0 %149
  %153 = vset.pattern.permute.xlu0 0
  %154 = vperm.xlu0 %153, %v146
  %v155 = vpop.permute.xlu0 %154
  %v157 = vadd.f32 %v143, %v150
  %v158 = vadd.f32 %v144, %v155
  %v159 = vmax.f32 %v157, 0.0
  %v160 = vmax.f32 %v158, 0.0
  %161 = vst [vmem:[%s4] sm:$0xff] %v159
  %162 = vst [vmem:[%s4 + $0x8] sm:$0xff] %v160
  // Predicated region
  $region18: #{_lambda_.28} parent=0 // pred_check
    _
  $region19: #{_lambda_.28} parent=0 // pred_check_branch
    %164 = sbr.rel (0) target = $region21
  $region20: #{_lambda_.28} parent=0 // pred_region
    _
  $region21: #{_lambda_.28} parent=0 // pred_fallthru
    _
  // Predicated region
  $region22: #{_lambda_.28} parent=0 // pred_check
    _
  $region23: #{_lambda_.28} parent=0 // pred_check_branch
    %166 = sbr.rel (0) target = $region25
  $region24: #{_lambda_.28} parent=0 // pred_region
    _
  $region25: #{_lambda_.28} parent=0 // pred_fallthru
    _

// kernel: _lambda_.27
$region0: #{_lambda_.27}
  #allocation0 [shape = 'u32[]', space=smem, size = 0x4, offset = 0x4, fixed_abs, tag = 'smem constant byte address 0x4 - core index']
  #allocation1 [shape = 'u32[144,128]{1,0:T(1,128)}', space=vmem, size = 0x12000, scoped, tag = 'internal scratch']
  %s0 = inlined_call_operand.vmem [shape: bf16[16,128], index: 0, kind: input, shape index: {}]
  %s1 = inlined_call_operand.vmem [shape: bf16[128,128], index: 1, kind: input, shape index: {}]
  %s2 = inlined_call_operand.vmem [shape: f32[16,1], index: 2, kind: input, shape index: {}]
  %s3 = inlined_call_operand.vmem [shape: f32[16,1], index: 3, kind: input, shape index: {}]
  %s4 = inlined_call_operand.vmem [shape: f32[16,128], index: 4, kind: output, shape index: {}]
  %s5 = sld [smem:[#allocation0]]
  $region26: #{_lambda_.27} parent=0
    _
  %s7 = ssub.s32 1, %s5
  %s8 = scalar_select 0, %s7, %s5
  // Predicated region
  $region2: #{_lambda_.27} parent=0 // pred_check
    _
  $region3: #{_lambda_.27} parent=0 // pred_check_branch
    %10 = sbr.rel (0) target = $region5
  $region4: #{_lambda_.27} parent=0 // pred_region
    _
  $region5: #{_lambda_.27} parent=0 // pred_fallthru
    _
  // Predicated region
  $region6: #{_lambda_.27} parent=0 // pred_check
    _
  $region7: #{_lambda_.27} parent=0 // pred_check_branch
    %12 = sbr.rel (0) target = $region9
  $region8: #{_lambda_.27} parent=0 // pred_region
    _
  $region9: #{_lambda_.27} parent=0 // pred_fallthru
    _
  // Predicated region
  $region10: #{_lambda_.27} parent=0 // pred_check
    _
  $region11: #{_lambda_.27} parent=0 // pred_check_branch
    %14 = sbr.rel (0) target = $region13
  $region12: #{_lambda_.27} parent=0 // pred_region
    _
  $region13: #{_lambda_.27} parent=0 // pred_fallthru
    _
  // Predicated region
  $region14: #{_lambda_.27} parent=0 // pred_check
    _
  $region15: #{_lambda_.27} parent=0 // pred_check_branch
    %16 = sbr.rel (0) target = $region17
  $region16: #{_lambda_.27} parent=0 // pred_region
    _
  $region17: #{_lambda_.27} parent=0 // pred_fallthru
    _
  %v18 = vld [vmem:[%s0] sm:$0xf]
  %v19 = vld [vmem:[%s0 + $0x4] sm:$0xf]
  %v20 = vld [vmem:[%s1] sm:$0xf]
  %v21 = vld [vmem:[%s1 + $0x4] sm:$0xf]
  %v22 = vld [vmem:[%s1 + $0x8] sm:$0xf]
  %v23 = vld [vmem:[%s1 + $0xc] sm:$0xf]
  %v24 = vld [vmem:[%s1 + $0x10] sm:$0xf]
  %v25 = vld [vmem:[%s1 + $0x14] sm:$0xf]
  %v26 = vld [vmem:[%s1 + $0x18] sm:$0xf]
  %v27 = vld [vmem:[%s1 + $0x1c] sm:$0xf]
  %v28 = vld [vmem:[%s1 + $0x20] sm:$0xf]
  %v29 = vld [vmem:[%s1 + $0x24] sm:$0xf]
  %v30 = vld [vmem:[%s1 + $0x28] sm:$0xf]
  %v31 = vld [vmem:[%s1 + $0x2c] sm:$0xf]
  %v32 = vld [vmem:[%s1 + $0x30] sm:$0xf]
  %v33 = vld [vmem:[%s1 + $0x34] sm:$0xf]
  %v34 = vld [vmem:[%s1 + $0x38] sm:$0xf]
  %v35 = vld [vmem:[%s1 + $0x3c] sm:$0xf]
  %v38 = vunpack.c.l.b16 %v18
  %v39 = vunpack.c.l.b16 %v19
  %v40 = vpack.c.b16 %v39, %v38
  %v58 = vunpack.c.l.b16 %v20
  %v59 = vunpack.c.l.b16 %v21
  %v60 = vunpack.c.l.b16 %v22
  %v61 = vunpack.c.l.b16 %v23
  %v62 = vunpack.c.l.b16 %v24
  %v63 = vunpack.c.l.b16 %v25
  %v64 = vunpack.c.l.b16 %v26
  %v65 = vunpack.c.l.b16 %v27
  %v66 = vunpack.c.l.b16 %v28
  %v67 = vunpack.c.l.b16 %v29
  %v68 = vunpack.c.l.b16 %v30
  %v69 = vunpack.c.l.b16 %v31
  %v70 = vunpack.c.l.b16 %v32
  %v71 = vunpack.c.l.b16 %v33
  %v72 = vunpack.c.l.b16 %v34
  %v73 = vunpack.c.l.b16 %v35
  %v74 = vpack.c.b16 %v59, %v58
  %v75 = vpack.c.b16 %v61, %v60
  %v76 = vpack.c.b16 %v63, %v62
  %v77 = vpack.c.b16 %v65, %v64
  %v78 = vpack.c.b16 %v67, %v66
  %v79 = vpack.c.b16 %v69, %v68
  %v80 = vpack.c.b16 %v71, %v70
  %v81 = vpack.c.b16 %v73, %v72
  %90 = vmatprep.subr.bf16.mxu0 0
  %91 = vmatpush1.bf16.msra.mxu0 %v74
  %92 = vmatprep.subr.bf16.mxu0 0
  %93 = vmatpush1.bf16.msra.mxu0 %v75
  %94 = vmatprep.subr.bf16.mxu0 0
  %95 = vmatpush1.bf16.msra.mxu0 %v76
  %96 = vmatprep.subr.bf16.mxu0 0
  %97 = vmatpush1.bf16.msra.mxu0 %v77
  %98 = vmatprep.subr.bf16.mxu0 0
  %99 = vmatpush1.bf16.msra.mxu0 %v78
  %100 = vmatprep.subr.bf16.mxu0 0
  %101 = vmatpush1.bf16.msra.mxu0 %v79
  %102 = vmatprep.subr.bf16.mxu0 0
  %103 = vmatpush1.bf16.msra.mxu0 %v80
  %104 = vmatprep.subr.bf16.mxu0 0
  %105 = vmatpush1.bf16.msra.mxu0 %v81
  %106 = vmatprep.subr.bf16.mxu0 0
  %107 = vmatpush1.bf16.msra.mxu0 0
  %108 = vmatprep.subr.bf16.mxu0 0
  %109 = vmatpush1.bf16.msra.mxu0 0
  %110 = vmatprep.subr.bf16.mxu0 0
  %111 = vmatpush1.bf16.msra.mxu0 0
  %112 = vmatprep.subr.bf16.mxu0 0
  %113 = vmatpush1.bf16.msra.mxu0 0
  %114 = vmatprep.subr.bf16.mxu0 0
  %115 = vmatpush1.bf16.msra.mxu0 0
  %116 = vmatprep.subr.bf16.mxu0 0
  %117 = vmatpush1.bf16.msra.mxu0 0
  %118 = vmatprep.subr.bf16.mxu0 0
  %119 = vmatpush1.bf16.msra.mxu0 0
  %120 = vmatprep.subr.bf16.mxu0 0
  %121 = vmatpush1.bf16.msra.mxu0 0
  %122 = vmatprep.mubr.bf16.mxu0 0
  %123 = vmatmul.mubr.bf16.gmra.mrb[0].mxu0 %v40
  %v124 = vpop.f32.mrb[0].mxu0
  %v125 = vadd.f32 0.0, %v124
  %v126 = vpop.f32.mrb[0].mxu0
  %v127 = vpop.f32.mrb[0].mxu0
  %v128 = vadd.f32 0.0, %v127
  %v129 = vpop.f32.mrb[0].mxu0
  %130 = vdwg.mxu0
  %v131 = vld [vmem:[%s2] sm:$0xff]
  %v132 = vld [vmem:[%s2 + $0x8] sm:$0xff]
  %134 = vset.pattern.permute.xlu0 0
  %135 = vperm.xlu0 %134, %v131
  %v136 = vpop.permute.xlu0 %135
  %139 = vset.pattern.permute.xlu0 0
  %140 = vperm.xlu0 %139, %v132
  %v141 = vpop.permute.xlu0 %140
  %v143 = vmul.f32 %v125, %v136
  %v144 = vmul.f32 %v128, %v141
  %v145 = vld [vmem:[%s3] sm:$0xff]
  %v146 = vld [vmem:[%s3 + $0x8] sm:$0xff]
  %148 = vset.pattern.permute.xlu0 0
  %149 = vperm.xlu0 %148, %v145
  %v150 = vpop.permute.xlu0 %149
  %153 = vset.pattern.permute.xlu0 0
  %154 = vperm.xlu0 %153, %v146
  %v155 = vpop.permute.xlu0 %154
  %v157 = vadd.f32 %v143, %v150
  %v158 = vadd.f32 %v144, %v155
  %159 = vst [vmem:[%s4] sm:$0xff] %v157
  %160 = vst [vmem:[%s4 + $0x8] sm:$0xff] %v158
  // Predicated region
  $region18: #{_lambda_.27} parent=0 // pred_check
    _
  $region19: #{_lambda_.27} parent=0 // pred_check_branch
    %162 = sbr.rel (0) target = $region21
  $region20: #{_lambda_.27} parent=0 // pred_region
    _
  $region21: #{_lambda_.27} parent=0 // pred_fallthru
    _
  // Predicated region
  $region22: #{_lambda_.27} parent=0 // pred_check
    _
  $region23: #{_lambda_.27} parent=0 // pred_check_branch
    %164 = sbr.rel (0) target = $region25
  $region24: #{_lambda_.27} parent=0 // pred_region
    _
  $region25: #{_lambda_.27} parent=0 // pred_fallthru
    _

// kernel: _lambda_.30
$region0: #{_lambda_.30}
  #allocation0 [shape = 'u32[]', space=smem, size = 0x4, offset = 0x4, fixed_abs, tag = 'smem constant byte address 0x4 - core index']
  #allocation1 [shape = 'u32[144,128]{1,0:T(1,128)}', space=vmem, size = 0x12000, scoped, tag = 'internal scratch']
  %s0 = inlined_call_operand.vmem [shape: bf16[16,256], index: 0, kind: input, shape index: {}]
  %s1 = inlined_call_operand.vmem [shape: bf16[256,128], index: 1, kind: input, shape index: {}]
  %s2 = inlined_call_operand.vmem [shape: f32[16,1], index: 2, kind: input, shape index: {}]
  %s3 = inlined_call_operand.vmem [shape: f32[16,1], index: 3, kind: input, shape index: {}]
  %s4 = inlined_call_operand.vmem [shape: f32[16,128], index: 4, kind: output, shape index: {}]
  %s5 = sld [smem:[#allocation0]]
  $region26: #{_lambda_.30} parent=0
    _
  %s7 = ssub.s32 1, %s5
  %s8 = scalar_select 0, %s7, %s5
  // Predicated region
  $region2: #{_lambda_.30} parent=0 // pred_check
    _
  $region3: #{_lambda_.30} parent=0 // pred_check_branch
    %10 = sbr.rel (0) target = $region5
  $region4: #{_lambda_.30} parent=0 // pred_region
    _
  $region5: #{_lambda_.30} parent=0 // pred_fallthru
    _
  // Predicated region
  $region6: #{_lambda_.30} parent=0 // pred_check
    _
  $region7: #{_lambda_.30} parent=0 // pred_check_branch
    %12 = sbr.rel (0) target = $region9
  $region8: #{_lambda_.30} parent=0 // pred_region
    _
  $region9: #{_lambda_.30} parent=0 // pred_fallthru
    _
  // Predicated region
  $region10: #{_lambda_.30} parent=0 // pred_check
    _
  $region11: #{_lambda_.30} parent=0 // pred_check_branch
    %14 = sbr.rel (0) target = $region13
  $region12: #{_lambda_.30} parent=0 // pred_region
    _
  $region13: #{_lambda_.30} parent=0 // pred_fallthru
    _
  // Predicated region
  $region14: #{_lambda_.30} parent=0 // pred_check
    _
  $region15: #{_lambda_.30} parent=0 // pred_check_branch
    %16 = sbr.rel (0) target = $region17
  $region16: #{_lambda_.30} parent=0 // pred_region
    _
  $region17: #{_lambda_.30} parent=0 // pred_fallthru
    _
  %v18 = vld [vmem:[%s0] sm:$0xff]
  %v19 = vld [vmem:[%s0 + $0x8] sm:$0xff]
  %v20 = vld [vmem:[%s1] sm:$0xf]
  %v21 = vld [vmem:[%s1 + $0x4] sm:$0xf]
  %v22 = vld [vmem:[%s1 + $0x8] sm:$0xf]
  %v23 = vld [vmem:[%s1 + $0xc] sm:$0xf]
  %v24 = vld [vmem:[%s1 + $0x10] sm:$0xf]
  %v25 = vld [vmem:[%s1 + $0x14] sm:$0xf]
  %v26 = vld [vmem:[%s1 + $0x18] sm:$0xf]
  %v27 = vld [vmem:[%s1 + $0x1c] sm:$0xf]
  %v28 = vld [vmem:[%s1 + $0x20] sm:$0xf]
  %v29 = vld [vmem:[%s1 + $0x24] sm:$0xf]
  %v30 = vld [vmem:[%s1 + $0x28] sm:$0xf]
  %v31 = vld [vmem:[%s1 + $0x2c] sm:$0xf]
  %v32 = vld [vmem:[%s1 + $0x30] sm:$0xf]
  %v33 = vld [vmem:[%s1 + $0x34] sm:$0xf]
  %v34 = vld [vmem:[%s1 + $0x38] sm:$0xf]
  %v35 = vld [vmem:[%s1 + $0x3c] sm:$0xf]
  %v36 = vld [vmem:[%s1 + $0x40] sm:$0xf]
  %v37 = vld [vmem:[%s1 + $0x44] sm:$0xf]
  %v38 = vld [vmem:[%s1 + $0x48] sm:$0xf]
  %v39 = vld [vmem:[%s1 + $0x4c] sm:$0xf]
  %v40 = vld [vmem:[%s1 + $0x50] sm:$0xf]
  %v41 = vld [vmem:[%s1 + $0x54] sm:$0xf]
  %v42 = vld [vmem:[%s1 + $0x58] sm:$0xf]
  %v43 = vld [vmem:[%s1 + $0x5c] sm:$0xf]
  %v44 = vld [vmem:[%s1 + $0x60] sm:$0xf]
  %v45 = vld [vmem:[%s1 + $0x64] sm:$0xf]
  %v46 = vld [vmem:[%s1 + $0x68] sm:$0xf]
  %v47 = vld [vmem:[%s1 + $0x6c] sm:$0xf]
  %v48 = vld [vmem:[%s1 + $0x70] sm:$0xf]
  %v49 = vld [vmem:[%s1 + $0x74] sm:$0xf]
  %v50 = vld [vmem:[%s1 + $0x78] sm:$0xf]
  %v51 = vld [vmem:[%s1 + $0x7c] sm:$0xf]
  %v54 = vunpack.c.l.b16 %v18
  %v55 = vunpack.c.h.b16 %v18
  %v56 = vunpack.c.l.b16 %v19
  %v57 = vunpack.c.h.b16 %v19
  %v58 = vpack.c.b16 %v56, %v54
  %v59 = vpack.c.b16 %v57, %v55
  %v94 = vunpack.c.l.b16 %v20
  %v95 = vunpack.c.l.b16 %v21
  %v96 = vunpack.c.l.b16 %v22
  %v97 = vunpack.c.l.b16 %v23
  %v98 = vunpack.c.l.b16 %v24
  %v99 = vunpack.c.l.b16 %v25
  %v100 = vunpack.c.l.b16 %v26
  %v101 = vunpack.c.l.b16 %v27
  %v102 = vunpack.c.l.b16 %v28
  %v103 = vunpack.c.l.b16 %v29
  %v104 = vunpack.c.l.b16 %v30
  %v105 = vunpack.c.l.b16 %v31
  %v106 = vunpack.c.l.b16 %v32
  %v107 = vunpack.c.l.b16 %v33
  %v108 = vunpack.c.l.b16 %v34
  %v109 = vunpack.c.l.b16 %v35
  %v110 = vunpack.c.l.b16 %v36
  %v111 = vunpack.c.l.b16 %v37
  %v112 = vunpack.c.l.b16 %v38
  %v113 = vunpack.c.l.b16 %v39
  %v114 = vunpack.c.l.b16 %v40
  %v115 = vunpack.c.l.b16 %v41
  %v116 = vunpack.c.l.b16 %v42
  %v117 = vunpack.c.l.b16 %v43
  %v118 = vunpack.c.l.b16 %v44
  %v119 = vunpack.c.l.b16 %v45
  %v120 = vunpack.c.l.b16 %v46
  %v121 = vunpack.c.l.b16 %v47
  %v122 = vunpack.c.l.b16 %v48
  %v123 = vunpack.c.l.b16 %v49
  %v124 = vunpack.c.l.b16 %v50
  %v125 = vunpack.c.l.b16 %v51
  %v126 = vpack.c.b16 %v95, %v94
  %v127 = vpack.c.b16 %v97, %v96
  %v128 = vpack.c.b16 %v99, %v98
  %v129 = vpack.c.b16 %v101, %v100
  %v130 = vpack.c.b16 %v103, %v102
  %v131 = vpack.c.b16 %v105, %v104
  %v132 = vpack.c.b16 %v107, %v106
  %v133 = vpack.c.b16 %v109, %v108
  %v134 = vpack.c.b16 %v111, %v110
  %v135 = vpack.c.b16 %v113, %v112
  %v136 = vpack.c.b16 %v115, %v114
  %v137 = vpack.c.b16 %v117, %v116
  %v138 = vpack.c.b16 %v119, %v118
  %v139 = vpack.c.b16 %v121, %v120
  %v140 = vpack.c.b16 %v123, %v122
  %v141 = vpack.c.b16 %v125, %v124
  %158 = vmatprep.subr.bf16.mxu0 0
  %159 = vmatpush1.bf16.msra.mxu0 %v126
  %160 = vmatprep.subr.bf16.mxu0 0
  %161 = vmatpush1.bf16.msra.mxu0 %v127
  %162 = vmatprep.subr.bf16.mxu0 0
  %163 = vmatpush1.bf16.msra.mxu0 %v128
  %164 = vmatprep.subr.bf16.mxu0 0
  %165 = vmatpush1.bf16.msra.mxu0 %v129
  %166 = vmatprep.subr.bf16.mxu0 0
  %167 = vmatpush1.bf16.msra.mxu0 %v130
  %168 = vmatprep.subr.bf16.mxu0 0
  %169 = vmatpush1.bf16.msra.mxu0 %v131
  %170 = vmatprep.subr.bf16.mxu0 0
  %171 = vmatpush1.bf16.msra.mxu0 %v132
  %172 = vmatprep.subr.bf16.mxu0 0
  %173 = vmatpush1.bf16.msra.mxu0 %v133
  %174 = vmatprep.subr.bf16.mxu0 0
  %175 = vmatpush1.bf16.msra.mxu0 %v134
  %176 = vmatprep.subr.bf16.mxu0 0
  %177 = vmatpush1.bf16.msra.mxu0 %v135
  %178 = vmatprep.subr.bf16.mxu0 0
  %179 = vmatpush1.bf16.msra.mxu0 %v136
  %180 = vmatprep.subr.bf16.mxu0 0
  %181 = vmatpush1.bf16.msra.mxu0 %v137
  %182 = vmatprep.subr.bf16.mxu0 0
  %183 = vmatpush1.bf16.msra.mxu0 %v138
  %184 = vmatprep.subr.bf16.mxu0 0
  %185 = vmatpush1.bf16.msra.mxu0 %v139
  %186 = vmatprep.subr.bf16.mxu0 0
  %187 = vmatpush1.bf16.msra.mxu0 %v140
  %188 = vmatprep.subr.bf16.mxu0 0
  %189 = vmatpush1.bf16.msra.mxu0 %v141
  %190 = vmatprep.mubr.bf16.mxu0 %v59
  %191 = vmatmul.mubr.bf16.gmra.mrb[0].mxu0 %v58
  %v192 = vpop.f32.mrb[0].mxu0
  %v193 = vadd.f32 0.0, %v192
  %v194 = vpop.f32.mrb[0].mxu0
  %v195 = vpop.f32.mrb[0].mxu0
  %v196 = vadd.f32 0.0, %v195
  %v197 = vpop.f32.mrb[0].mxu0
  %198 = vdwg.mxu0
  %v199 = vld [vmem:[%s2] sm:$0xff]
  %v200 = vld [vmem:[%s2 + $0x8] sm:$0xff]
  %202 = vset.pattern.permute.xlu0 0
  %203 = vperm.xlu0 %202, %v199
  %v204 = vpop.permute.xlu0 %203
  %207 = vset.pattern.permute.xlu0 0
  %208 = vperm.xlu0 %207, %v200
  %v209 = vpop.permute.xlu0 %208
  %v211 = vmul.f32 %v193, %v204
  %v212 = vmul.f32 %v196, %v209
  %v213 = vld [vmem:[%s3] sm:$0xff]
  %v214 = vld [vmem:[%s3 + $0x8] sm:$0xff]
  %216 = vset.pattern.permute.xlu0 0
  %217 = vperm.xlu0 %216, %v213
  %v218 = vpop.permute.xlu0 %217
  %221 = vset.pattern.permute.xlu0 0
  %222 = vperm.xlu0 %221, %v214
  %v223 = vpop.permute.xlu0 %222
  %v225 = vadd.f32 %v211, %v218
  %v226 = vadd.f32 %v212, %v223
  %v227 = vmax.f32 %v225, 0.0
  %v228 = vmax.f32 %v226, 0.0
  %229 = vst [vmem:[%s4] sm:$0xff] %v227
  %230 = vst [vmem:[%s4 + $0x8] sm:$0xff] %v228
  // Predicated region
  $region18: #{_lambda_.30} parent=0 // pred_check
    _
  $region19: #{_lambda_.30} parent=0 // pred_check_branch
    %232 = sbr.rel (0) target = $region21
  $region20: #{_lambda_.30} parent=0 // pred_region
    _
  $region21: #{_lambda_.30} parent=0 // pred_fallthru
    _
  // Predicated region
  $region22: #{_lambda_.30} parent=0 // pred_check
    _
  $region23: #{_lambda_.30} parent=0 // pred_check_branch
    %234 = sbr.rel (0) target = $region25
  $region24: #{_lambda_.30} parent=0 // pred_region
    _
  $region25: #{_lambda_.30} parent=0 // pred_fallthru
    _

// kernel: _lambda_.29
$region0: #{_lambda_.29}
  #allocation0 [shape = 'u32[]', space=smem, size = 0x4, offset = 0x4, fixed_abs, tag = 'smem constant byte address 0x4 - core index']
  #allocation1 [shape = 'u32[144,128]{1,0:T(1,128)}', space=vmem, size = 0x12000, scoped, tag = 'internal scratch']
  %s0 = inlined_call_operand.vmem [shape: bf16[16,256], index: 0, kind: input, shape index: {}]
  %s1 = inlined_call_operand.vmem [shape: bf16[256,128], index: 1, kind: input, shape index: {}]
  %s2 = inlined_call_operand.vmem [shape: f32[16,1], index: 2, kind: input, shape index: {}]
  %s3 = inlined_call_operand.vmem [shape: f32[16,1], index: 3, kind: input, shape index: {}]
  %s4 = inlined_call_operand.vmem [shape: f32[16,128], index: 4, kind: input, shape index: {}]
  %s5 = inlined_call_operand.vmem [shape: f32[16,128], index: 5, kind: output, shape index: {}]
  %s6 = sld [smem:[#allocation0]]
  $region30: #{_lambda_.29} parent=0
    _
  %s8 = ssub.s32 1, %s6
  %s9 = scalar_select 0, %s8, %s6
  // Predicated region
  $region2: #{_lambda_.29} parent=0 // pred_check
    _
  $region3: #{_lambda_.29} parent=0 // pred_check_branch
    %11 = sbr.rel (0) target = $region5
  $region4: #{_lambda_.29} parent=0 // pred_region
    _
  $region5: #{_lambda_.29} parent=0 // pred_fallthru
    _
  // Predicated region
  $region6: #{_lambda_.29} parent=0 // pred_check
    _
  $region7: #{_lambda_.29} parent=0 // pred_check_branch
    %13 = sbr.rel (0) target = $region9
  $region8: #{_lambda_.29} parent=0 // pred_region
    _
  $region9: #{_lambda_.29} parent=0 // pred_fallthru
    _
  // Predicated region
  $region10: #{_lambda_.29} parent=0 // pred_check
    _
  $region11: #{_lambda_.29} parent=0 // pred_check_branch
    %15 = sbr.rel (0) target = $region13
  $region12: #{_lambda_.29} parent=0 // pred_region
    _
  $region13: #{_lambda_.29} parent=0 // pred_fallthru
    _
  // Predicated region
  $region14: #{_lambda_.29} parent=0 // pred_check
    _
  $region15: #{_lambda_.29} parent=0 // pred_check_branch
    %17 = sbr.rel (0) target = $region17
  $region16: #{_lambda_.29} parent=0 // pred_region
    _
  $region17: #{_lambda_.29} parent=0 // pred_fallthru
    _
  // Predicated region
  $region18: #{_lambda_.29} parent=0 // pred_check
    _
  $region19: #{_lambda_.29} parent=0 // pred_check_branch
    %19 = sbr.rel (0) target = $region21
  $region20: #{_lambda_.29} parent=0 // pred_region
    _
  $region21: #{_lambda_.29} parent=0 // pred_fallthru
    _
  %v21 = vld [vmem:[%s0] sm:$0xff]
  %v22 = vld [vmem:[%s0 + $0x8] sm:$0xff]
  %v23 = vld [vmem:[%s1] sm:$0xf]
  %v24 = vld [vmem:[%s1 + $0x4] sm:$0xf]
  %v25 = vld [vmem:[%s1 + $0x8] sm:$0xf]
  %v26 = vld [vmem:[%s1 + $0xc] sm:$0xf]
  %v27 = vld [vmem:[%s1 + $0x10] sm:$0xf]
  %v28 = vld [vmem:[%s1 + $0x14] sm:$0xf]
  %v29 = vld [vmem:[%s1 + $0x18] sm:$0xf]
  %v30 = vld [vmem:[%s1 + $0x1c] sm:$0xf]
  %v31 = vld [vmem:[%s1 + $0x20] sm:$0xf]
  %v32 = vld [vmem:[%s1 + $0x24] sm:$0xf]
  %v33 = vld [vmem:[%s1 + $0x28] sm:$0xf]
  %v34 = vld [vmem:[%s1 + $0x2c] sm:$0xf]
  %v35 = vld [vmem:[%s1 + $0x30] sm:$0xf]
  %v36 = vld [vmem:[%s1 + $0x34] sm:$0xf]
  %v37 = vld [vmem:[%s1 + $0x38] sm:$0xf]
  %v38 = vld [vmem:[%s1 + $0x3c] sm:$0xf]
  %v39 = vld [vmem:[%s1 + $0x40] sm:$0xf]
  %v40 = vld [vmem:[%s1 + $0x44] sm:$0xf]
  %v41 = vld [vmem:[%s1 + $0x48] sm:$0xf]
  %v42 = vld [vmem:[%s1 + $0x4c] sm:$0xf]
  %v43 = vld [vmem:[%s1 + $0x50] sm:$0xf]
  %v44 = vld [vmem:[%s1 + $0x54] sm:$0xf]
  %v45 = vld [vmem:[%s1 + $0x58] sm:$0xf]
  %v46 = vld [vmem:[%s1 + $0x5c] sm:$0xf]
  %v47 = vld [vmem:[%s1 + $0x60] sm:$0xf]
  %v48 = vld [vmem:[%s1 + $0x64] sm:$0xf]
  %v49 = vld [vmem:[%s1 + $0x68] sm:$0xf]
  %v50 = vld [vmem:[%s1 + $0x6c] sm:$0xf]
  %v51 = vld [vmem:[%s1 + $0x70] sm:$0xf]
  %v52 = vld [vmem:[%s1 + $0x74] sm:$0xf]
  %v53 = vld [vmem:[%s1 + $0x78] sm:$0xf]
  %v54 = vld [vmem:[%s1 + $0x7c] sm:$0xf]
  %v57 = vunpack.c.l.b16 %v21
  %v58 = vunpack.c.h.b16 %v21
  %v59 = vunpack.c.l.b16 %v22
  %v60 = vunpack.c.h.b16 %v22
  %v61 = vpack.c.b16 %v59, %v57
  %v62 = vpack.c.b16 %v60, %v58
  %v97 = vunpack.c.l.b16 %v23
  %v98 = vunpack.c.l.b16 %v24
  %v99 = vunpack.c.l.b16 %v25
  %v100 = vunpack.c.l.b16 %v26
  %v101 = vunpack.c.l.b16 %v27
  %v102 = vunpack.c.l.b16 %v28
  %v103 = vunpack.c.l.b16 %v29
  %v104 = vunpack.c.l.b16 %v30
  %v105 = vunpack.c.l.b16 %v31
  %v106 = vunpack.c.l.b16 %v32
  %v107 = vunpack.c.l.b16 %v33
  %v108 = vunpack.c.l.b16 %v34
  %v109 = vunpack.c.l.b16 %v35
  %v110 = vunpack.c.l.b16 %v36
  %v111 = vunpack.c.l.b16 %v37
  %v112 = vunpack.c.l.b16 %v38
  %v113 = vunpack.c.l.b16 %v39
  %v114 = vunpack.c.l.b16 %v40
  %v115 = vunpack.c.l.b16 %v41
  %v116 = vunpack.c.l.b16 %v42
  %v117 = vunpack.c.l.b16 %v43
  %v118 = vunpack.c.l.b16 %v44
  %v119 = vunpack.c.l.b16 %v45
  %v120 = vunpack.c.l.b16 %v46
  %v121 = vunpack.c.l.b16 %v47
  %v122 = vunpack.c.l.b16 %v48
  %v123 = vunpack.c.l.b16 %v49
  %v124 = vunpack.c.l.b16 %v50
  %v125 = vunpack.c.l.b16 %v51
  %v126 = vunpack.c.l.b16 %v52
  %v127 = vunpack.c.l.b16 %v53
  %v128 = vunpack.c.l.b16 %v54
  %v129 = vpack.c.b16 %v98, %v97
  %v130 = vpack.c.b16 %v100, %v99
  %v131 = vpack.c.b16 %v102, %v101
  %v132 = vpack.c.b16 %v104, %v103
  %v133 = vpack.c.b16 %v106, %v105
  %v134 = vpack.c.b16 %v108, %v107
  %v135 = vpack.c.b16 %v110, %v109
  %v136 = vpack.c.b16 %v112, %v111
  %v137 = vpack.c.b16 %v114, %v113
  %v138 = vpack.c.b16 %v116, %v115
  %v139 = vpack.c.b16 %v118, %v117
  %v140 = vpack.c.b16 %v120, %v119
  %v141 = vpack.c.b16 %v122, %v121
  %v142 = vpack.c.b16 %v124, %v123
  %v143 = vpack.c.b16 %v126, %v125
  %v144 = vpack.c.b16 %v128, %v127
  %161 = vmatprep.subr.bf16.mxu0 0
  %162 = vmatpush1.bf16.msra.mxu0 %v129
  %163 = vmatprep.subr.bf16.mxu0 0
  %164 = vmatpush1.bf16.msra.mxu0 %v130
  %165 = vmatprep.subr.bf16.mxu0 0
  %166 = vmatpush1.bf16.msra.mxu0 %v131
  %167 = vmatprep.subr.bf16.mxu0 0
  %168 = vmatpush1.bf16.msra.mxu0 %v132
  %169 = vmatprep.subr.bf16.mxu0 0
  %170 = vmatpush1.bf16.msra.mxu0 %v133
  %171 = vmatprep.subr.bf16.mxu0 0
  %172 = vmatpush1.bf16.msra.mxu0 %v134
  %173 = vmatprep.subr.bf16.mxu0 0
  %174 = vmatpush1.bf16.msra.mxu0 %v135
  %175 = vmatprep.subr.bf16.mxu0 0
  %176 = vmatpush1.bf16.msra.mxu0 %v136
  %177 = vmatprep.subr.bf16.mxu0 0
  %178 = vmatpush1.bf16.msra.mxu0 %v137
  %179 = vmatprep.subr.bf16.mxu0 0
  %180 = vmatpush1.bf16.msra.mxu0 %v138
  %181 = vmatprep.subr.bf16.mxu0 0
  %182 = vmatpush1.bf16.msra.mxu0 %v139
  %183 = vmatprep.subr.bf16.mxu0 0
  %184 = vmatpush1.bf16.msra.mxu0 %v140
  %185 = vmatprep.subr.bf16.mxu0 0
  %186 = vmatpush1.bf16.msra.mxu0 %v141
  %187 = vmatprep.subr.bf16.mxu0 0
  %188 = vmatpush1.bf16.msra.mxu0 %v142
  %189 = vmatprep.subr.bf16.mxu0 0
  %190 = vmatpush1.bf16.msra.mxu0 %v143
  %191 = vmatprep.subr.bf16.mxu0 0
  %192 = vmatpush1.bf16.msra.mxu0 %v144
  %193 = vmatprep.mubr.bf16.mxu0 %v62
  %194 = vmatmul.mubr.bf16.gmra.mrb[0].mxu0 %v61
  %v195 = vpop.f32.mrb[0].mxu0
  %v196 = vadd.f32 0.0, %v195
  %v197 = vpop.f32.mrb[0].mxu0
  %v198 = vpop.f32.mrb[0].mxu0
  %v199 = vadd.f32 0.0, %v198
  %v200 = vpop.f32.mrb[0].mxu0
  %201 = vdwg.mxu0
  %v202 = vld [vmem:[%s2] sm:$0xff]
  %v203 = vld [vmem:[%s2 + $0x8] sm:$0xff]
  %205 = vset.pattern.permute.xlu0 0
  %206 = vperm.xlu0 %205, %v202
  %v207 = vpop.permute.xlu0 %206
  %210 = vset.pattern.permute.xlu0 0
  %211 = vperm.xlu0 %210, %v203
  %v212 = vpop.permute.xlu0 %211
  %v214 = vmul.f32 %v196, %v207
  %v215 = vmul.f32 %v199, %v212
  %v216 = vld [vmem:[%s3] sm:$0xff]
  %v217 = vld [vmem:[%s3 + $0x8] sm:$0xff]
  %219 = vset.pattern.permute.xlu0 0
  %220 = vperm.xlu0 %219, %v216
  %v221 = vpop.permute.xlu0 %220
  %224 = vset.pattern.permute.xlu0 0
  %225 = vperm.xlu0 %224, %v217
  %v226 = vpop.permute.xlu0 %225
  %v228 = vadd.f32 %v214, %v221
  %v229 = vadd.f32 %v215, %v226
  %v230 = vld [vmem:[%s4] sm:$0xff]
  %v231 = vld [vmem:[%s4 + $0x8] sm:$0xff]
  %v232 = vadd.f32 %v228, %v230
  %v233 = vadd.f32 %v229, %v231
  %v234 = vmax.f32 %v232, 0.0
  %v235 = vmax.f32 %v233, 0.0
  %236 = vst [vmem:[%s5] sm:$0xff] %v234
  %237 = vst [vmem:[%s5 + $0x8] sm:$0xff] %v235
  // Predicated region
  $region22: #{_lambda_.29} parent=0 // pred_check
    _
  $region23: #{_lambda_.29} parent=0 // pred_check_branch
    %239 = sbr.rel (0) target = $region25
  $region24: #{_lambda_.29} parent=0 // pred_region
    _
  $region25: #{_lambda_.29} parent=0 // pred_fallthru
    _
  // Predicated region
  $region26: #{_lambda_.29} parent=0 // pred_check
    _
  $region27: #{_lambda_.29} parent=0 // pred_check_branch
    %241 = sbr.rel (0) target = $region29
  $region28: #{_lambda_.29} parent=0 // pred_region
    _
  $region29: #{_lambda_.29} parent=0 // pred_fallthru
    _

// kernel: _lambda_.33
$region0: #{_lambda_.33}
  #allocation0 [shape = 'u32[]', space=smem, size = 0x4, offset = 0x4, fixed_abs, tag = 'smem constant byte address 0x4 - core index']
  #allocation1 [shape = 'u32[144,128]{1,0:T(1,128)}', space=vmem, size = 0x12000, scoped, tag = 'internal scratch']
  %s0 = inlined_call_operand.vmem [shape: bf16[32,256], index: 0, kind: input, shape index: {}]
  %s1 = inlined_call_operand.vmem [shape: bf16[256,128], index: 1, kind: input, shape index: {}]
  %s2 = inlined_call_operand.vmem [shape: f32[32,1], index: 2, kind: input, shape index: {}]
  %s3 = inlined_call_operand.vmem [shape: f32[32,1], index: 3, kind: input, shape index: {}]
  %s4 = inlined_call_operand.vmem [shape: f32[32,128], index: 4, kind: output, shape index: {}]
  %s5 = sld [smem:[#allocation0]]
  $region26: #{_lambda_.33} parent=0
    _
  %s7 = ssub.s32 1, %s5
  %s8 = scalar_select 0, %s7, %s5
  // Predicated region
  $region2: #{_lambda_.33} parent=0 // pred_check
    _
  $region3: #{_lambda_.33} parent=0 // pred_check_branch
    %10 = sbr.rel (0) target = $region5
  $region4: #{_lambda_.33} parent=0 // pred_region
    _
  $region5: #{_lambda_.33} parent=0 // pred_fallthru
    _
  // Predicated region
  $region6: #{_lambda_.33} parent=0 // pred_check
    _
  $region7: #{_lambda_.33} parent=0 // pred_check_branch
    %12 = sbr.rel (0) target = $region9
  $region8: #{_lambda_.33} parent=0 // pred_region
    _
  $region9: #{_lambda_.33} parent=0 // pred_fallthru
    _
  // Predicated region
  $region10: #{_lambda_.33} parent=0 // pred_check
    _
  $region11: #{_lambda_.33} parent=0 // pred_check_branch
    %14 = sbr.rel (0) target = $region13
  $region12: #{_lambda_.33} parent=0 // pred_region
    _
  $region13: #{_lambda_.33} parent=0 // pred_fallthru
    _
  // Predicated region
  $region14: #{_lambda_.33} parent=0 // pred_check
    _
  $region15: #{_lambda_.33} parent=0 // pred_check_branch
    %16 = sbr.rel (0) target = $region17
  $region16: #{_lambda_.33} parent=0 // pred_region
    _
  $region17: #{_lambda_.33} parent=0 // pred_fallthru
    _
  %v18 = vld [vmem:[%s0] sm:$0xff]
  %v19 = vld [vmem:[%s0 + $0x8] sm:$0xff]
  %v20 = vld [vmem:[%s0 + $0x10] sm:$0xff]
  %v21 = vld [vmem:[%s0 + $0x18] sm:$0xff]
  %v22 = vld [vmem:[%s1] sm:$0xf]
  %v23 = vld [vmem:[%s1 + $0x4] sm:$0xf]
  %v24 = vld [vmem:[%s1 + $0x8] sm:$0xf]
  %v25 = vld [vmem:[%s1 + $0xc] sm:$0xf]
  %v26 = vld [vmem:[%s1 + $0x10] sm:$0xf]
  %v27 = vld [vmem:[%s1 + $0x14] sm:$0xf]
  %v28 = vld [vmem:[%s1 + $0x18] sm:$0xf]
  %v29 = vld [vmem:[%s1 + $0x1c] sm:$0xf]
  %v30 = vld [vmem:[%s1 + $0x20] sm:$0xf]
  %v31 = vld [vmem:[%s1 + $0x24] sm:$0xf]
  %v32 = vld [vmem:[%s1 + $0x28] sm:$0xf]
  %v33 = vld [vmem:[%s1 + $0x2c] sm:$0xf]
  %v34 = vld [vmem:[%s1 + $0x30] sm:$0xf]
  %v35 = vld [vmem:[%s1 + $0x34] sm:$0xf]
  %v36 = vld [vmem:[%s1 + $0x38] sm:$0xf]
  %v37 = vld [vmem:[%s1 + $0x3c] sm:$0xf]
  %v38 = vld [vmem:[%s1 + $0x40] sm:$0xf]
  %v39 = vld [vmem:[%s1 + $0x44] sm:$0xf]
  %v40 = vld [vmem:[%s1 + $0x48] sm:$0xf]
  %v41 = vld [vmem:[%s1 + $0x4c] sm:$0xf]
  %v42 = vld [vmem:[%s1 + $0x50] sm:$0xf]
  %v43 = vld [vmem:[%s1 + $0x54] sm:$0xf]
  %v44 = vld [vmem:[%s1 + $0x58] sm:$0xf]
  %v45 = vld [vmem:[%s1 + $0x5c] sm:$0xf]
  %v46 = vld [vmem:[%s1 + $0x60] sm:$0xf]
  %v47 = vld [vmem:[%s1 + $0x64] sm:$0xf]
  %v48 = vld [vmem:[%s1 + $0x68] sm:$0xf]
  %v49 = vld [vmem:[%s1 + $0x6c] sm:$0xf]
  %v50 = vld [vmem:[%s1 + $0x70] sm:$0xf]
  %v51 = vld [vmem:[%s1 + $0x74] sm:$0xf]
  %v52 = vld [vmem:[%s1 + $0x78] sm:$0xf]
  %v53 = vld [vmem:[%s1 + $0x7c] sm:$0xf]
  %v58 = vunpack.c.l.b16 %v18
  %v59 = vunpack.c.h.b16 %v18
  %v60 = vunpack.c.l.b16 %v19
  %v61 = vunpack.c.h.b16 %v19
  %v62 = vunpack.c.l.b16 %v20
  %v63 = vunpack.c.h.b16 %v20
  %v64 = vunpack.c.l.b16 %v21
  %v65 = vunpack.c.h.b16 %v21
  %v66 = vpack.c.b16 %v60, %v58
  %v67 = vpack.c.b16 %v61, %v59
  %v68 = vpack.c.b16 %v64, %v62
  %v69 = vpack.c.b16 %v65, %v63
  %v106 = vunpack.c.l.b16 %v22
  %v107 = vunpack.c.l.b16 %v23
  %v108 = vunpack.c.l.b16 %v24
  %v109 = vunpack.c.l.b16 %v25
  %v110 = vunpack.c.l.b16 %v26
  %v111 = vunpack.c.l.b16 %v27
  %v112 = vunpack.c.l.b16 %v28
  %v113 = vunpack.c.l.b16 %v29
  %v114 = vunpack.c.l.b16 %v30
  %v115 = vunpack.c.l.b16 %v31
  %v116 = vunpack.c.l.b16 %v32
  %v117 = vunpack.c.l.b16 %v33
  %v118 = vunpack.c.l.b16 %v34
  %v119 = vunpack.c.l.b16 %v35
  %v120 = vunpack.c.l.b16 %v36
  %v121 = vunpack.c.l.b16 %v37
  %v122 = vunpack.c.l.b16 %v38
  %v123 = vunpack.c.l.b16 %v39
  %v124 = vunpack.c.l.b16 %v40
  %v125 = vunpack.c.l.b16 %v41
  %v126 = vunpack.c.l.b16 %v42
  %v127 = vunpack.c.l.b16 %v43
  %v128 = vunpack.c.l.b16 %v44
  %v129 = vunpack.c.l.b16 %v45
  %v130 = vunpack.c.l.b16 %v46
  %v131 = vunpack.c.l.b16 %v47
  %v132 = vunpack.c.l.b16 %v48
  %v133 = vunpack.c.l.b16 %v49
  %v134 = vunpack.c.l.b16 %v50
  %v135 = vunpack.c.l.b16 %v51
  %v136 = vunpack.c.l.b16 %v52
  %v137 = vunpack.c.l.b16 %v53
  %v138 = vpack.c.b16 %v107, %v106
  %v139 = vpack.c.b16 %v109, %v108
  %v140 = vpack.c.b16 %v111, %v110
  %v141 = vpack.c.b16 %v113, %v112
  %v142 = vpack.c.b16 %v115, %v114
  %v143 = vpack.c.b16 %v117, %v116
  %v144 = vpack.c.b16 %v119, %v118
  %v145 = vpack.c.b16 %v121, %v120
  %v146 = vpack.c.b16 %v123, %v122
  %v147 = vpack.c.b16 %v125, %v124
  %v148 = vpack.c.b16 %v127, %v126
  %v149 = vpack.c.b16 %v129, %v128
  %v150 = vpack.c.b16 %v131, %v130
  %v151 = vpack.c.b16 %v133, %v132
  %v152 = vpack.c.b16 %v135, %v134
  %v153 = vpack.c.b16 %v137, %v136
  %170 = vmatprep.subr.bf16.mxu0 0
  %171 = vmatpush1.bf16.msra.mxu0 %v138
  %172 = vmatprep.subr.bf16.mxu0 0
  %173 = vmatpush1.bf16.msra.mxu0 %v139
  %174 = vmatprep.subr.bf16.mxu0 0
  %175 = vmatpush1.bf16.msra.mxu0 %v140
  %176 = vmatprep.subr.bf16.mxu0 0
  %177 = vmatpush1.bf16.msra.mxu0 %v141
  %178 = vmatprep.subr.bf16.mxu0 0
  %179 = vmatpush1.bf16.msra.mxu0 %v142
  %180 = vmatprep.subr.bf16.mxu0 0
  %181 = vmatpush1.bf16.msra.mxu0 %v143
  %182 = vmatprep.subr.bf16.mxu0 0
  %183 = vmatpush1.bf16.msra.mxu0 %v144
  %184 = vmatprep.subr.bf16.mxu0 0
  %185 = vmatpush1.bf16.msra.mxu0 %v145
  %186 = vmatprep.subr.bf16.mxu0 0
  %187 = vmatpush1.bf16.msra.mxu0 %v146
  %188 = vmatprep.subr.bf16.mxu0 0
  %189 = vmatpush1.bf16.msra.mxu0 %v147
  %190 = vmatprep.subr.bf16.mxu0 0
  %191 = vmatpush1.bf16.msra.mxu0 %v148
  %192 = vmatprep.subr.bf16.mxu0 0
  %193 = vmatpush1.bf16.msra.mxu0 %v149
  %194 = vmatprep.subr.bf16.mxu0 0
  %195 = vmatpush1.bf16.msra.mxu0 %v150
  %196 = vmatprep.subr.bf16.mxu0 0
  %197 = vmatpush1.bf16.msra.mxu0 %v151
  %198 = vmatprep.subr.bf16.mxu0 0
  %199 = vmatpush1.bf16.msra.mxu0 %v152
  %200 = vmatprep.subr.bf16.mxu0 0
  %201 = vmatpush1.bf16.msra.mxu0 %v153
  %202 = vmatprep.mubr.bf16.mxu0 %v67
  %203 = vmatmul.mubr.bf16.gmra.mrb[0].mxu0 %v66
  %v204 = vpop.f32.mrb[0].mxu0
  %v205 = vadd.f32 0.0, %v204
  %v206 = vpop.f32.mrb[0].mxu0
  %v207 = vpop.f32.mrb[0].mxu0
  %v208 = vadd.f32 0.0, %v207
  %v209 = vpop.f32.mrb[0].mxu0
  %210 = vmatprep.mubr.bf16.mxu0 %v69
  %211 = vmatmul.mubr.bf16.gmra.mrb[0].mxu0 %v68
  %v212 = vpop.f32.mrb[0].mxu0
  %v213 = vadd.f32 0.0, %v212
  %v214 = vpop.f32.mrb[0].mxu0
  %v215 = vpop.f32.mrb[0].mxu0
  %v216 = vadd.f32 0.0, %v215
  %v217 = vpop.f32.mrb[0].mxu0
  %218 = vdwg.mxu0
  %v219 = vld [vmem:[%s2] sm:$0xff]
  %v220 = vld [vmem:[%s2 + $0x8] sm:$0xff]
  %v221 = vld [vmem:[%s2 + $0x10] sm:$0xff]
  %v222 = vld [vmem:[%s2 + $0x18] sm:$0xff]
  %224 = vset.pattern.permute.xlu0 0
  %225 = vperm.xlu0 %224, %v219
  %v226 = vpop.permute.xlu0 %225
  %229 = vset.pattern.permute.xlu0 0
  %230 = vperm.xlu0 %229, %v220
  %v231 = vpop.permute.xlu0 %230
  %234 = vset.pattern.permute.xlu0 0
  %235 = vperm.xlu0 %234, %v221
  %v236 = vpop.permute.xlu0 %235
  %239 = vset.pattern.permute.xlu0 0
  %240 = vperm.xlu0 %239, %v222
  %v241 = vpop.permute.xlu0 %240
  %v243 = vmul.f32 %v205, %v226
  %v244 = vmul.f32 %v208, %v231
  %v245 = vmul.f32 %v213, %v236
  %v246 = vmul.f32 %v216, %v241
  %v247 = vld [vmem:[%s3] sm:$0xff]
  %v248 = vld [vmem:[%s3 + $0x8] sm:$0xff]
  %v249 = vld [vmem:[%s3 + $0x10] sm:$0xff]
  %v250 = vld [vmem:[%s3 + $0x18] sm:$0xff]
  %252 = vset.pattern.permute.xlu0 0
  %253 = vperm.xlu0 %252, %v247
  %v254 = vpop.permute.xlu0 %253
  %257 = vset.pattern.permute.xlu0 0
  %258 = vperm.xlu0 %257, %v248
  %v259 = vpop.permute.xlu0 %258
  %262 = vset.pattern.permute.xlu0 0
  %263 = vperm.xlu0 %262, %v249
  %v264 = vpop.permute.xlu0 %263
  %267 = vset.pattern.permute.xlu0 0
  %268 = vperm.xlu0 %267, %v250
  %v269 = vpop.permute.xlu0 %268
  %v271 = vadd.f32 %v243, %v254
  %v272 = vadd.f32 %v244, %v259
  %v273 = vadd.f32 %v245, %v264
  %v274 = vadd.f32 %v246, %v269
  %v275 = vmax.f32 %v271, 0.0
  %v276 = vmax.f32 %v272, 0.0
  %v277 = vmax.f32 %v273, 0.0
  %v278 = vmax.f32 %v274, 0.0
  %279 = vst [vmem:[%s4] sm:$0xff] %v275
  %280 = vst [vmem:[%s4 + $0x8] sm:$0xff] %v276
  %281 = vst [vmem:[%s4 + $0x10] sm:$0xff] %v277
  %282 = vst [vmem:[%s4 + $0x18] sm:$0xff] %v278
  // Predicated region
  $region18: #{_lambda_.33} parent=0 // pred_check
    _
  $region19: #{_lambda_.33} parent=0 // pred_check_branch
    %284 = sbr.rel (0) target = $region21
  $region20: #{_lambda_.33} parent=0 // pred_region
    _
  $region21: #{_lambda_.33} parent=0 // pred_fallthru
    _
  // Predicated region
  $region22: #{_lambda_.33} parent=0 // pred_check
    _
  $region23: #{_lambda_.33} parent=0 // pred_check_branch
    %286 = sbr.rel (0) target = $region25
  $region24: #{_lambda_.33} parent=0 // pred_region
    _
  $region25: #{_lambda_.33} parent=0 // pred_fallthru
    _

// kernel: _lambda_.32
$region0: #{_lambda_.32}
  #allocation0 [shape = 'u32[]', space=smem, size = 0x4, offset = 0x4, fixed_abs, tag = 'smem constant byte address 0x4 - core index']
  #allocation1 [shape = 'u32[144,128]{1,0:T(1,128)}', space=vmem, size = 0x12000, scoped, tag = 'internal scratch']
  %s0 = inlined_call_operand.vmem [shape: bf16[32,128], index: 0, kind: input, shape index: {}]
  %s1 = inlined_call_operand.vmem [shape: bf16[128,128], index: 1, kind: input, shape index: {}]
  %s2 = inlined_call_operand.vmem [shape: f32[32,1], index: 2, kind: input, shape index: {}]
  %s3 = inlined_call_operand.vmem [shape: f32[32,1], index: 3, kind: input, shape index: {}]
  %s4 = inlined_call_operand.vmem [shape: f32[32,128], index: 4, kind: output, shape index: {}]
  %s5 = sld [smem:[#allocation0]]
  $region26: #{_lambda_.32} parent=0
    _
  %s7 = ssub.s32 1, %s5
  %s8 = scalar_select 0, %s7, %s5
  // Predicated region
  $region2: #{_lambda_.32} parent=0 // pred_check
    _
  $region3: #{_lambda_.32} parent=0 // pred_check_branch
    %10 = sbr.rel (0) target = $region5
  $region4: #{_lambda_.32} parent=0 // pred_region
    _
  $region5: #{_lambda_.32} parent=0 // pred_fallthru
    _
  // Predicated region
  $region6: #{_lambda_.32} parent=0 // pred_check
    _
  $region7: #{_lambda_.32} parent=0 // pred_check_branch
    %12 = sbr.rel (0) target = $region9
  $region8: #{_lambda_.32} parent=0 // pred_region
    _
  $region9: #{_lambda_.32} parent=0 // pred_fallthru
    _
  // Predicated region
  $region10: #{_lambda_.32} parent=0 // pred_check
    _
  $region11: #{_lambda_.32} parent=0 // pred_check_branch
    %14 = sbr.rel (0) target = $region13
  $region12: #{_lambda_.32} parent=0 // pred_region
    _
  $region13: #{_lambda_.32} parent=0 // pred_fallthru
    _
  // Predicated region
  $region14: #{_lambda_.32} parent=0 // pred_check
    _
  $region15: #{_lambda_.32} parent=0 // pred_check_branch
    %16 = sbr.rel (0) target = $region17
  $region16: #{_lambda_.32} parent=0 // pred_region
    _
  $region17: #{_lambda_.32} parent=0 // pred_fallthru
    _
  %v18 = vld [vmem:[%s0] sm:$0xf]
  %v19 = vld [vmem:[%s0 + $0x4] sm:$0xf]
  %v20 = vld [vmem:[%s0 + $0x8] sm:$0xf]
  %v21 = vld [vmem:[%s0 + $0xc] sm:$0xf]
  %v22 = vld [vmem:[%s1] sm:$0xf]
  %v23 = vld [vmem:[%s1 + $0x4] sm:$0xf]
  %v24 = vld [vmem:[%s1 + $0x8] sm:$0xf]
  %v25 = vld [vmem:[%s1 + $0xc] sm:$0xf]
  %v26 = vld [vmem:[%s1 + $0x10] sm:$0xf]
  %v27 = vld [vmem:[%s1 + $0x14] sm:$0xf]
  %v28 = vld [vmem:[%s1 + $0x18] sm:$0xf]
  %v29 = vld [vmem:[%s1 + $0x1c] sm:$0xf]
  %v30 = vld [vmem:[%s1 + $0x20] sm:$0xf]
  %v31 = vld [vmem:[%s1 + $0x24] sm:$0xf]
  %v32 = vld [vmem:[%s1 + $0x28] sm:$0xf]
  %v33 = vld [vmem:[%s1 + $0x2c] sm:$0xf]
  %v34 = vld [vmem:[%s1 + $0x30] sm:$0xf]
  %v35 = vld [vmem:[%s1 + $0x34] sm:$0xf]
  %v36 = vld [vmem:[%s1 + $0x38] sm:$0xf]
  %v37 = vld [vmem:[%s1 + $0x3c] sm:$0xf]
  %v42 = vunpack.c.l.b16 %v18
  %v43 = vunpack.c.l.b16 %v19
  %v44 = vunpack.c.l.b16 %v20
  %v45 = vunpack.c.l.b16 %v21
  %v46 = vpack.c.b16 %v43, %v42
  %v47 = vpack.c.b16 %v45, %v44
  %v66 = vunpack.c.l.b16 %v22
  %v67 = vunpack.c.l.b16 %v23
  %v68 = vunpack.c.l.b16 %v24
  %v69 = vunpack.c.l.b16 %v25
  %v70 = vunpack.c.l.b16 %v26
  %v71 = vunpack.c.l.b16 %v27
  %v72 = vunpack.c.l.b16 %v28
  %v73 = vunpack.c.l.b16 %v29
  %v74 = vunpack.c.l.b16 %v30
  %v75 = vunpack.c.l.b16 %v31
  %v76 = vunpack.c.l.b16 %v32
  %v77 = vunpack.c.l.b16 %v33
  %v78 = vunpack.c.l.b16 %v34
  %v79 = vunpack.c.l.b16 %v35
  %v80 = vunpack.c.l.b16 %v36
  %v81 = vunpack.c.l.b16 %v37
  %v82 = vpack.c.b16 %v67, %v66
  %v83 = vpack.c.b16 %v69, %v68
  %v84 = vpack.c.b16 %v71, %v70
  %v85 = vpack.c.b16 %v73, %v72
  %v86 = vpack.c.b16 %v75, %v74
  %v87 = vpack.c.b16 %v77, %v76
  %v88 = vpack.c.b16 %v79, %v78
  %v89 = vpack.c.b16 %v81, %v80
  %98 = vmatprep.subr.bf16.mxu0 0
  %99 = vmatpush1.bf16.msra.mxu0 %v82
  %100 = vmatprep.subr.bf16.mxu0 0
  %101 = vmatpush1.bf16.msra.mxu0 %v83
  %102 = vmatprep.subr.bf16.mxu0 0
  %103 = vmatpush1.bf16.msra.mxu0 %v84
  %104 = vmatprep.subr.bf16.mxu0 0
  %105 = vmatpush1.bf16.msra.mxu0 %v85
  %106 = vmatprep.subr.bf16.mxu0 0
  %107 = vmatpush1.bf16.msra.mxu0 %v86
  %108 = vmatprep.subr.bf16.mxu0 0
  %109 = vmatpush1.bf16.msra.mxu0 %v87
  %110 = vmatprep.subr.bf16.mxu0 0
  %111 = vmatpush1.bf16.msra.mxu0 %v88
  %112 = vmatprep.subr.bf16.mxu0 0
  %113 = vmatpush1.bf16.msra.mxu0 %v89
  %114 = vmatprep.subr.bf16.mxu0 0
  %115 = vmatpush1.bf16.msra.mxu0 0
  %116 = vmatprep.subr.bf16.mxu0 0
  %117 = vmatpush1.bf16.msra.mxu0 0
  %118 = vmatprep.subr.bf16.mxu0 0
  %119 = vmatpush1.bf16.msra.mxu0 0
  %120 = vmatprep.subr.bf16.mxu0 0
  %121 = vmatpush1.bf16.msra.mxu0 0
  %122 = vmatprep.subr.bf16.mxu0 0
  %123 = vmatpush1.bf16.msra.mxu0 0
  %124 = vmatprep.subr.bf16.mxu0 0
  %125 = vmatpush1.bf16.msra.mxu0 0
  %126 = vmatprep.subr.bf16.mxu0 0
  %127 = vmatpush1.bf16.msra.mxu0 0
  %128 = vmatprep.subr.bf16.mxu0 0
  %129 = vmatpush1.bf16.msra.mxu0 0
  %130 = vmatprep.mubr.bf16.mxu0 0
  %131 = vmatmul.mubr.bf16.gmra.mrb[0].mxu0 %v46
  %v132 = vpop.f32.mrb[0].mxu0
  %v133 = vadd.f32 0.0, %v132
  %v134 = vpop.f32.mrb[0].mxu0
  %v135 = vpop.f32.mrb[0].mxu0
  %v136 = vadd.f32 0.0, %v135
  %v137 = vpop.f32.mrb[0].mxu0
  %138 = vmatprep.mubr.bf16.mxu0 0
  %139 = vmatmul.mubr.bf16.gmra.mrb[0].mxu0 %v47
  %v140 = vpop.f32.mrb[0].mxu0
  %v141 = vadd.f32 0.0, %v140
  %v142 = vpop.f32.mrb[0].mxu0
  %v143 = vpop.f32.mrb[0].mxu0
  %v144 = vadd.f32 0.0, %v143
  %v145 = vpop.f32.mrb[0].mxu0
  %146 = vdwg.mxu0
  %v147 = vld [vmem:[%s2] sm:$0xff]
  %v148 = vld [vmem:[%s2 + $0x8] sm:$0xff]
  %v149 = vld [vmem:[%s2 + $0x10] sm:$0xff]
  %v150 = vld [vmem:[%s2 + $0x18] sm:$0xff]
  %152 = vset.pattern.permute.xlu0 0
  %153 = vperm.xlu0 %152, %v147
  %v154 = vpop.permute.xlu0 %153
  %157 = vset.pattern.permute.xlu0 0
  %158 = vperm.xlu0 %157, %v148
  %v159 = vpop.permute.xlu0 %158
  %162 = vset.pattern.permute.xlu0 0
  %163 = vperm.xlu0 %162, %v149
  %v164 = vpop.permute.xlu0 %163
  %167 = vset.pattern.permute.xlu0 0
  %168 = vperm.xlu0 %167, %v150
  %v169 = vpop.permute.xlu0 %168
  %v171 = vmul.f32 %v133, %v154
  %v172 = vmul.f32 %v136, %v159
  %v173 = vmul.f32 %v141, %v164
  %v174 = vmul.f32 %v144, %v169
  %v175 = vld [vmem:[%s3] sm:$0xff]
  %v176 = vld [vmem:[%s3 + $0x8] sm:$0xff]
  %v177 = vld [vmem:[%s3 + $0x10] sm:$0xff]
  %v178 = vld [vmem:[%s3 + $0x18] sm:$0xff]
  %180 = vset.pattern.permute.xlu0 0
  %181 = vperm.xlu0 %180, %v175
  %v182 = vpop.permute.xlu0 %181
  %185 = vset.pattern.permute.xlu0 0
  %186 = vperm.xlu0 %185, %v176
  %v187 = vpop.permute.xlu0 %186
  %190 = vset.pattern.permute.xlu0 0
  %191 = vperm.xlu0 %190, %v177
  %v192 = vpop.permute.xlu0 %191
  %195 = vset.pattern.permute.xlu0 0
  %196 = vperm.xlu0 %195, %v178
  %v197 = vpop.permute.xlu0 %196
  %v199 = vadd.f32 %v171, %v182
  %v200 = vadd.f32 %v172, %v187
  %v201 = vadd.f32 %v173, %v192
  %v202 = vadd.f32 %v174, %v197
  %203 = vst [vmem:[%s4] sm:$0xff] %v199
  %204 = vst [vmem:[%s4 + $0x8] sm:$0xff] %v200
  %205 = vst [vmem:[%s4 + $0x10] sm:$0xff] %v201
  %206 = vst [vmem:[%s4 + $0x18] sm:$0xff] %v202
  // Predicated region
  $region18: #{_lambda_.32} parent=0 // pred_check
    _
  $region19: #{_lambda_.32} parent=0 // pred_check_branch
    %208 = sbr.rel (0) target = $region21
  $region20: #{_lambda_.32} parent=0 // pred_region
    _
  $region21: #{_lambda_.32} parent=0 // pred_fallthru
    _
  // Predicated region
  $region22: #{_lambda_.32} parent=0 // pred_check
    _
  $region23: #{_lambda_.32} parent=0 // pred_check_branch
    %210 = sbr.rel (0) target = $region25
  $region24: #{_lambda_.32} parent=0 // pred_region
    _
  $region25: #{_lambda_.32} parent=0 // pred_fallthru
    _

// kernel: _lambda_.34
$region0: #{_lambda_.34}
  #allocation0 [shape = 'u32[]', space=smem, size = 0x4, offset = 0x4, fixed_abs, tag = 'smem constant byte address 0x4 - core index']
  #allocation1 [shape = 'u32[144,128]{1,0:T(1,128)}', space=vmem, size = 0x12000, scoped, tag = 'internal scratch']
  %s0 = inlined_call_operand.vmem [shape: bf16[32,384], index: 0, kind: input, shape index: {}]
  %s1 = inlined_call_operand.vmem [shape: bf16[384,128], index: 1, kind: input, shape index: {}]
  %s2 = inlined_call_operand.vmem [shape: f32[32,1], index: 2, kind: input, shape index: {}]
  %s3 = inlined_call_operand.vmem [shape: f32[32,1], index: 3, kind: input, shape index: {}]
  %s4 = inlined_call_operand.vmem [shape: f32[32,128], index: 4, kind: input, shape index: {}]
  %s5 = inlined_call_operand.vmem [shape: f32[32,128], index: 5, kind: output, shape index: {}]
  %s6 = sld [smem:[#allocation0]]
  $region30: #{_lambda_.34} parent=0
    _
  %s8 = ssub.s32 1, %s6
  %s9 = scalar_select 0, %s8, %s6
  // Predicated region
  $region2: #{_lambda_.34} parent=0 // pred_check
    _
  $region3: #{_lambda_.34} parent=0 // pred_check_branch
    %11 = sbr.rel (0) target = $region5
  $region4: #{_lambda_.34} parent=0 // pred_region
    _
  $region5: #{_lambda_.34} parent=0 // pred_fallthru
    _
  // Predicated region
  $region6: #{_lambda_.34} parent=0 // pred_check
    _
  $region7: #{_lambda_.34} parent=0 // pred_check_branch
    %13 = sbr.rel (0) target = $region9
  $region8: #{_lambda_.34} parent=0 // pred_region
    _
  $region9: #{_lambda_.34} parent=0 // pred_fallthru
    _
  // Predicated region
  $region10: #{_lambda_.34} parent=0 // pred_check
    _
  $region11: #{_lambda_.34} parent=0 // pred_check_branch
    %15 = sbr.rel (0) target = $region13
  $region12: #{_lambda_.34} parent=0 // pred_region
    _
  $region13: #{_lambda_.34} parent=0 // pred_fallthru
    _
  // Predicated region
  $region14: #{_lambda_.34} parent=0 // pred_check
    _
  $region15: #{_lambda_.34} parent=0 // pred_check_branch
    %17 = sbr.rel (0) target = $region17
  $region16: #{_lambda_.34} parent=0 // pred_region
    _
  $region17: #{_lambda_.34} parent=0 // pred_fallthru
    _
  // Predicated region
  $region18: #{_lambda_.34} parent=0 // pred_check
    _
  $region19: #{_lambda_.34} parent=0 // pred_check_branch
    %19 = sbr.rel (0) target = $region21
  $region20: #{_lambda_.34} parent=0 // pred_region
    _
  $region21: #{_lambda_.34} parent=0 // pred_fallthru
    _
  %v21 = vld [vmem:[%s0] sm:$0xff]
  %v22 = vld [vmem:[%s0 + $0x8] sm:$0xf]
  %v23 = vld [vmem:[%s0 + $0xc] sm:$0xff]
  %v24 = vld [vmem:[%s0 + $0x14] sm:$0xf]
  %v25 = vld [vmem:[%s0 + $0x18] sm:$0xff]
  %v26 = vld [vmem:[%s0 + $0x20] sm:$0xf]
  %v27 = vld [vmem:[%s0 + $0x24] sm:$0xff]
  %v28 = vld [vmem:[%s0 + $0x2c] sm:$0xf]
  %v29 = vld [vmem:[%s1] sm:$0xf]
  %v30 = vld [vmem:[%s1 + $0x4] sm:$0xf]
  %v31 = vld [vmem:[%s1 + $0x8] sm:$0xf]
  %v32 = vld [vmem:[%s1 + $0xc] sm:$0xf]
  %v33 = vld [vmem:[%s1 + $0x10] sm:$0xf]
  %v34 = vld [vmem:[%s1 + $0x14] sm:$0xf]
  %v35 = vld [vmem:[%s1 + $0x18] sm:$0xf]
  %v36 = vld [vmem:[%s1 + $0x1c] sm:$0xf]
  %v37 = vld [vmem:[%s1 + $0x20] sm:$0xf]
  %v38 = vld [vmem:[%s1 + $0x24] sm:$0xf]
  %v39 = vld [vmem:[%s1 + $0x28] sm:$0xf]
  %v40 = vld [vmem:[%s1 + $0x2c] sm:$0xf]
  %v41 = vld [vmem:[%s1 + $0x30] sm:$0xf]
  %v42 = vld [vmem:[%s1 + $0x34] sm:$0xf]
  %v43 = vld [vmem:[%s1 + $0x38] sm:$0xf]
  %v44 = vld [vmem:[%s1 + $0x3c] sm:$0xf]
  %v45 = vld [vmem:[%s1 + $0x40] sm:$0xf]
  %v46 = vld [vmem:[%s1 + $0x44] sm:$0xf]
  %v47 = vld [vmem:[%s1 + $0x48] sm:$0xf]
  %v48 = vld [vmem:[%s1 + $0x4c] sm:$0xf]
  %v49 = vld [vmem:[%s1 + $0x50] sm:$0xf]
  %v50 = vld [vmem:[%s1 + $0x54] sm:$0xf]
  %v51 = vld [vmem:[%s1 + $0x58] sm:$0xf]
  %v52 = vld [vmem:[%s1 + $0x5c] sm:$0xf]
  %v53 = vld [vmem:[%s1 + $0x60] sm:$0xf]
  %v54 = vld [vmem:[%s1 + $0x64] sm:$0xf]
  %v55 = vld [vmem:[%s1 + $0x68] sm:$0xf]
  %v56 = vld [vmem:[%s1 + $0x6c] sm:$0xf]
  %v57 = vld [vmem:[%s1 + $0x70] sm:$0xf]
  %v58 = vld [vmem:[%s1 + $0x74] sm:$0xf]
  %v59 = vld [vmem:[%s1 + $0x78] sm:$0xf]
  %v60 = vld [vmem:[%s1 + $0x7c] sm:$0xf]
  %v61 = vld [vmem:[%s1 + $0x80] sm:$0xf]
  %v62 = vld [vmem:[%s1 + $0x84] sm:$0xf]
  %v63 = vld [vmem:[%s1 + $0x88] sm:$0xf]
  %v64 = vld [vmem:[%s1 + $0x8c] sm:$0xf]
  %v65 = vld [vmem:[%s1 + $0x90] sm:$0xf]
  %v66 = vld [vmem:[%s1 + $0x94] sm:$0xf]
  %v67 = vld [vmem:[%s1 + $0x98] sm:$0xf]
  %v68 = vld [vmem:[%s1 + $0x9c] sm:$0xf]
  %v69 = vld [vmem:[%s1 + $0xa0] sm:$0xf]
  %v70 = vld [vmem:[%s1 + $0xa4] sm:$0xf]
  %v71 = vld [vmem:[%s1 + $0xa8] sm:$0xf]
  %v72 = vld [vmem:[%s1 + $0xac] sm:$0xf]
  %v73 = vld [vmem:[%s1 + $0xb0] sm:$0xf]
  %v74 = vld [vmem:[%s1 + $0xb4] sm:$0xf]
  %v75 = vld [vmem:[%s1 + $0xb8] sm:$0xf]
  %v76 = vld [vmem:[%s1 + $0xbc] sm:$0xf]
  %v85 = vunpack.c.l.b16 %v21
  %v86 = vunpack.c.h.b16 %v21
  %v87 = vunpack.c.l.b16 %v22
  %v88 = vunpack.c.l.b16 %v23
  %v89 = vunpack.c.h.b16 %v23
  %v90 = vunpack.c.l.b16 %v24
  %v91 = vunpack.c.l.b16 %v25
  %v92 = vunpack.c.h.b16 %v25
  %v93 = vunpack.c.l.b16 %v26
  %v94 = vunpack.c.l.b16 %v27
  %v95 = vunpack.c.h.b16 %v27
  %v96 = vunpack.c.l.b16 %v28
  %v97 = vpack.c.b16 %v88, %v85
  %v98 = vpack.c.b16 %v89, %v86
  %v99 = vpack.c.b16 %v90, %v87
  %v100 = vpack.c.b16 %v94, %v91
  %v101 = vpack.c.b16 %v95, %v92
  %v102 = vpack.c.b16 %v96, %v93
  %v157 = vunpack.c.l.b16 %v29
  %v158 = vunpack.c.l.b16 %v30
  %v159 = vunpack.c.l.b16 %v31
  %v160 = vunpack.c.l.b16 %v32
  %v161 = vunpack.c.l.b16 %v33
  %v162 = vunpack.c.l.b16 %v34
  %v163 = vunpack.c.l.b16 %v35
  %v164 = vunpack.c.l.b16 %v36
  %v165 = vunpack.c.l.b16 %v37
  %v166 = vunpack.c.l.b16 %v38
  %v167 = vunpack.c.l.b16 %v39
  %v168 = vunpack.c.l.b16 %v40
  %v169 = vunpack.c.l.b16 %v41
  %v170 = vunpack.c.l.b16 %v42
  %v171 = vunpack.c.l.b16 %v43
  %v172 = vunpack.c.l.b16 %v44
  %v173 = vunpack.c.l.b16 %v45
  %v174 = vunpack.c.l.b16 %v46
  %v175 = vunpack.c.l.b16 %v47
  %v176 = vunpack.c.l.b16 %v48
  %v177 = vunpack.c.l.b16 %v49
  %v178 = vunpack.c.l.b16 %v50
  %v179 = vunpack.c.l.b16 %v51
  %v180 = vunpack.c.l.b16 %v52
  %v181 = vunpack.c.l.b16 %v53
  %v182 = vunpack.c.l.b16 %v54
  %v183 = vunpack.c.l.b16 %v55
  %v184 = vunpack.c.l.b16 %v56
  %v185 = vunpack.c.l.b16 %v57
  %v186 = vunpack.c.l.b16 %v58
  %v187 = vunpack.c.l.b16 %v59
  %v188 = vunpack.c.l.b16 %v60
  %v189 = vunpack.c.l.b16 %v61
  %v190 = vunpack.c.l.b16 %v62
  %v191 = vunpack.c.l.b16 %v63
  %v192 = vunpack.c.l.b16 %v64
  %v193 = vunpack.c.l.b16 %v65
  %v194 = vunpack.c.l.b16 %v66
  %v195 = vunpack.c.l.b16 %v67
  %v196 = vunpack.c.l.b16 %v68
  %v197 = vunpack.c.l.b16 %v69
  %v198 = vunpack.c.l.b16 %v70
  %v199 = vunpack.c.l.b16 %v71
  %v200 = vunpack.c.l.b16 %v72
  %v201 = vunpack.c.l.b16 %v73
  %v202 = vunpack.c.l.b16 %v74
  %v203 = vunpack.c.l.b16 %v75
  %v204 = vunpack.c.l.b16 %v76
  %v205 = vpack.c.b16 %v158, %v157
  %v206 = vpack.c.b16 %v160, %v159
  %v207 = vpack.c.b16 %v162, %v161
  %v208 = vpack.c.b16 %v164, %v163
  %v209 = vpack.c.b16 %v166, %v165
  %v210 = vpack.c.b16 %v168, %v167
  %v211 = vpack.c.b16 %v170, %v169
  %v212 = vpack.c.b16 %v172, %v171
  %v213 = vpack.c.b16 %v174, %v173
  %v214 = vpack.c.b16 %v176, %v175
  %v215 = vpack.c.b16 %v178, %v177
  %v216 = vpack.c.b16 %v180, %v179
  %v217 = vpack.c.b16 %v182, %v181
  %v218 = vpack.c.b16 %v184, %v183
  %v219 = vpack.c.b16 %v186, %v185
  %v220 = vpack.c.b16 %v188, %v187
  %v221 = vpack.c.b16 %v190, %v189
  %v222 = vpack.c.b16 %v192, %v191
  %v223 = vpack.c.b16 %v194, %v193
  %v224 = vpack.c.b16 %v196, %v195
  %v225 = vpack.c.b16 %v198, %v197
  %v226 = vpack.c.b16 %v200, %v199
  %v227 = vpack.c.b16 %v202, %v201
  %v228 = vpack.c.b16 %v204, %v203
  %253 = vmatprep.subr.bf16.mxu0 0
  %254 = vmatpush1.bf16.msra.mxu0 %v205
  %255 = vmatprep.subr.bf16.mxu0 0
  %256 = vmatpush1.bf16.msra.mxu0 %v206
  %257 = vmatprep.subr.bf16.mxu0 0
  %258 = vmatpush1.bf16.msra.mxu0 %v207
  %259 = vmatprep.subr.bf16.mxu0 0
  %260 = vmatpush1.bf16.msra.mxu0 %v208
  %261 = vmatprep.subr.bf16.mxu0 0
  %262 = vmatpush1.bf16.msra.mxu0 %v209
  %263 = vmatprep.subr.bf16.mxu0 0
  %264 = vmatpush1.bf16.msra.mxu0 %v210
  %265 = vmatprep.subr.bf16.mxu0 0
  %266 = vmatpush1.bf16.msra.mxu0 %v211
  %267 = vmatprep.subr.bf16.mxu0 0
  %268 = vmatpush1.bf16.msra.mxu0 %v212
  %269 = vmatprep.subr.bf16.mxu0 0
  %270 = vmatpush1.bf16.msra.mxu0 %v213
  %271 = vmatprep.subr.bf16.mxu0 0
  %272 = vmatpush1.bf16.msra.mxu0 %v214
  %273 = vmatprep.subr.bf16.mxu0 0
  %274 = vmatpush1.bf16.msra.mxu0 %v215
  %275 = vmatprep.subr.bf16.mxu0 0
  %276 = vmatpush1.bf16.msra.mxu0 %v216
  %277 = vmatprep.subr.bf16.mxu0 0
  %278 = vmatpush1.bf16.msra.mxu0 %v217
  %279 = vmatprep.subr.bf16.mxu0 0
  %280 = vmatpush1.bf16.msra.mxu0 %v218
  %281 = vmatprep.subr.bf16.mxu0 0
  %282 = vmatpush1.bf16.msra.mxu0 %v219
  %283 = vmatprep.subr.bf16.mxu0 0
  %284 = vmatpush1.bf16.msra.mxu0 %v220
  %285 = vmatprep.mubr.bf16.mxu0 %v98
  %286 = vmatmul.mubr.bf16.gmra.mrb[0].mxu0 %v97
  %v287 = vpop.f32.mrb[0].mxu0
  %v288 = vadd.f32 0.0, %v287
  %v289 = vpop.f32.mrb[0].mxu0
  %v290 = vpop.f32.mrb[0].mxu0
  %v291 = vadd.f32 0.0, %v290
  %v292 = vpop.f32.mrb[0].mxu0
  %293 = vmatprep.mubr.bf16.mxu0 %v101
  %294 = vmatmul.mubr.bf16.gmra.mrb[0].mxu0 %v100
  %v295 = vpop.f32.mrb[0].mxu0
  %v296 = vadd.f32 0.0, %v295
  %v297 = vpop.f32.mrb[0].mxu0
  %v298 = vpop.f32.mrb[0].mxu0
  %v299 = vadd.f32 0.0, %v298
  %v300 = vpop.f32.mrb[0].mxu0
  %301 = vdwg.mxu0
  %302 = vmatprep.subr.bf16.mxu0 0
  %303 = vmatpush1.bf16.msra.mxu0 %v221
  %304 = vmatprep.subr.bf16.mxu0 0
  %305 = vmatpush1.bf16.msra.mxu0 %v222
  %306 = vmatprep.subr.bf16.mxu0 0
  %307 = vmatpush1.bf16.msra.mxu0 %v223
  %308 = vmatprep.subr.bf16.mxu0 0
  %309 = vmatpush1.bf16.msra.mxu0 %v224
  %310 = vmatprep.subr.bf16.mxu0 0
  %311 = vmatpush1.bf16.msra.mxu0 %v225
  %312 = vmatprep.subr.bf16.mxu0 0
  %313 = vmatpush1.bf16.msra.mxu0 %v226
  %314 = vmatprep.subr.bf16.mxu0 0
  %315 = vmatpush1.bf16.msra.mxu0 %v227
  %316 = vmatprep.subr.bf16.mxu0 0
  %317 = vmatpush1.bf16.msra.mxu0 %v228
  %318 = vmatprep.subr.bf16.mxu0 0
  %319 = vmatpush1.bf16.msra.mxu0 0
  %320 = vmatprep.subr.bf16.mxu0 0
  %321 = vmatpush1.bf16.msra.mxu0 0
  %322 = vmatprep.subr.bf16.mxu0 0
  %323 = vmatpush1.bf16.msra.mxu0 0
  %324 = vmatprep.subr.bf16.mxu0 0
  %325 = vmatpush1.bf16.msra.mxu0 0
  %326 = vmatprep.subr.bf16.mxu0 0
  %327 = vmatpush1.bf16.msra.mxu0 0
  %328 = vmatprep.subr.bf16.mxu0 0
  %329 = vmatpush1.bf16.msra.mxu0 0
  %330 = vmatprep.subr.bf16.mxu0 0
  %331 = vmatpush1.bf16.msra.mxu0 0
  %332 = vmatprep.subr.bf16.mxu0 0
  %333 = vmatpush1.bf16.msra.mxu0 0
  %334 = vmatprep.mubr.bf16.mxu0 0
  %335 = vmatmul.mubr.bf16.gmra.mrb[0].mxu0 %v99
  %v336 = vpop.f32.mrb[0].mxu0
  %v337 = vadd.f32 %v288, %v336
  %v338 = vpop.f32.mrb[0].mxu0
  %v339 = vpop.f32.mrb[0].mxu0
  %v340 = vadd.f32 %v291, %v339
  %v341 = vpop.f32.mrb[0].mxu0
  %342 = vmatprep.mubr.bf16.mxu0 0
  %343 = vmatmul.mubr.bf16.gmra.mrb[0].mxu0 %v102
  %v344 = vpop.f32.mrb[0].mxu0
  %v345 = vadd.f32 %v296, %v344
  %v346 = vpop.f32.mrb[0].mxu0
  %v347 = vpop.f32.mrb[0].mxu0
  %v348 = vadd.f32 %v299, %v347
  %v349 = vpop.f32.mrb[0].mxu0
  %350 = vdwg.mxu0
  %v351 = vld [vmem:[%s2] sm:$0xff]
  %v352 = vld [vmem:[%s2 + $0x8] sm:$0xff]
  %v353 = vld [vmem:[%s2 + $0x10] sm:$0xff]
  %v354 = vld [vmem:[%s2 + $0x18] sm:$0xff]
  %356 = vset.pattern.permute.xlu0 0
  %357 = vperm.xlu0 %356, %v351
  %v358 = vpop.permute.xlu0 %357
  %361 = vset.pattern.permute.xlu0 0
  %362 = vperm.xlu0 %361, %v352
  %v363 = vpop.permute.xlu0 %362
  %366 = vset.pattern.permute.xlu0 0
  %367 = vperm.xlu0 %366, %v353
  %v368 = vpop.permute.xlu0 %367
  %371 = vset.pattern.permute.xlu0 0
  %372 = vperm.xlu0 %371, %v354
  %v373 = vpop.permute.xlu0 %372
  %v375 = vmul.f32 %v337, %v358
  %v376 = vmul.f32 %v340, %v363
  %v377 = vmul.f32 %v345, %v368
  %v378 = vmul.f32 %v348, %v373
  %v379 = vld [vmem:[%s3] sm:$0xff]
  %v380 = vld [vmem:[%s3 + $0x8] sm:$0xff]
  %v381 = vld [vmem:[%s3 + $0x10] sm:$0xff]
  %v382 = vld [vmem:[%s3 + $0x18] sm:$0xff]
  %384 = vset.pattern.permute.xlu0 0
  %385 = vperm.xlu0 %384, %v379
  %v386 = vpop.permute.xlu0 %385
  %389 = vset.pattern.permute.xlu0 0
  %390 = vperm.xlu0 %389, %v380
  %v391 = vpop.permute.xlu0 %390
  %394 = vset.pattern.permute.xlu0 0
  %395 = vperm.xlu0 %394, %v381
  %v396 = vpop.permute.xlu0 %395
  %399 = vset.pattern.permute.xlu0 0
  %400 = vperm.xlu0 %399, %v382
  %v401 = vpop.permute.xlu0 %400
  %v403 = vadd.f32 %v375, %v386
  %v404 = vadd.f32 %v376, %v391
  %v405 = vadd.f32 %v377, %v396
  %v406 = vadd.f32 %v378, %v401
  %v407 = vld [vmem:[%s4] sm:$0xff]
  %v408 = vld [vmem:[%s4 + $0x8] sm:$0xff]
  %v409 = vld [vmem:[%s4 + $0x10] sm:$0xff]
  %v410 = vld [vmem:[%s4 + $0x18] sm:$0xff]
  %v411 = vadd.f32 %v403, %v407
  %v412 = vadd.f32 %v404, %v408
  %v413 = vadd.f32 %v405, %v409
  %v414 = vadd.f32 %v406, %v410
  %v415 = vmax.f32 %v411, 0.0
  %v416 = vmax.f32 %v412, 0.0
  %v417 = vmax.f32 %v413, 0.0
  %v418 = vmax.f32 %v414, 0.0
  %419 = vst [vmem:[%s5] sm:$0xff] %v415
  %420 = vst [vmem:[%s5 + $0x8] sm:$0xff] %v416
  %421 = vst [vmem:[%s5 + $0x10] sm:$0xff] %v417
  %422 = vst [vmem:[%s5 + $0x18] sm:$0xff] %v418
  // Predicated region
  $region22: #{_lambda_.34} parent=0 // pred_check
    _
  $region23: #{_lambda_.34} parent=0 // pred_check_branch
    %424 = sbr.rel (0) target = $region25
  $region24: #{_lambda_.34} parent=0 // pred_region
    _
  $region25: #{_lambda_.34} parent=0 // pred_fallthru
    _
  // Predicated region
  $region26: #{_lambda_.34} parent=0 // pred_check
    _
  $region27: #{_lambda_.34} parent=0 // pred_check_branch
    %426 = sbr.rel (0) target = $region29
  $region28: #{_lambda_.34} parent=0 // pred_region
    _
  $region29: #{_lambda_.34} parent=0 // pred_fallthru
    _

// kernel: _lambda_.35
$region0: #{_lambda_.35}
  #allocation0 [shape = 'u32[]', space=smem, size = 0x4, offset = 0x4, fixed_abs, tag = 'smem constant byte address 0x4 - core index']
  #allocation1 [shape = 'u32[144,128]{1,0:T(1,128)}', space=vmem, size = 0x12000, scoped, tag = 'internal scratch']
  %s0 = inlined_call_operand.vmem [shape: bf16[32,384], index: 0, kind: input, shape index: {}]
  %s1 = inlined_call_operand.vmem [shape: bf16[384,128], index: 1, kind: input, shape index: {}]
  %s2 = inlined_call_operand.vmem [shape: f32[32,1], index: 2, kind: input, shape index: {}]
  %s3 = inlined_call_operand.vmem [shape: f32[32,1], index: 3, kind: input, shape index: {}]
  %s4 = inlined_call_operand.vmem [shape: f32[32,128], index: 4, kind: output, shape index: {}]
  %s5 = sld [smem:[#allocation0]]
  $region26: #{_lambda_.35} parent=0
    _
  %s7 = ssub.s32 1, %s5
  %s8 = scalar_select 0, %s7, %s5
  // Predicated region
  $region2: #{_lambda_.35} parent=0 // pred_check
    _
  $region3: #{_lambda_.35} parent=0 // pred_check_branch
    %10 = sbr.rel (0) target = $region5
  $region4: #{_lambda_.35} parent=0 // pred_region
    _
  $region5: #{_lambda_.35} parent=0 // pred_fallthru
    _
  // Predicated region
  $region6: #{_lambda_.35} parent=0 // pred_check
    _
  $region7: #{_lambda_.35} parent=0 // pred_check_branch
    %12 = sbr.rel (0) target = $region9
  $region8: #{_lambda_.35} parent=0 // pred_region
    _
  $region9: #{_lambda_.35} parent=0 // pred_fallthru
    _
  // Predicated region
  $region10: #{_lambda_.35} parent=0 // pred_check
    _
  $region11: #{_lambda_.35} parent=0 // pred_check_branch
    %14 = sbr.rel (0) target = $region13
  $region12: #{_lambda_.35} parent=0 // pred_region
    _
  $region13: #{_lambda_.35} parent=0 // pred_fallthru
    _
  // Predicated region
  $region14: #{_lambda_.35} parent=0 // pred_check
    _
  $region15: #{_lambda_.35} parent=0 // pred_check_branch
    %16 = sbr.rel (0) target = $region17
  $region16: #{_lambda_.35} parent=0 // pred_region
    _
  $region17: #{_lambda_.35} parent=0 // pred_fallthru
    _
  %v18 = vld [vmem:[%s0] sm:$0xff]
  %v19 = vld [vmem:[%s0 + $0x8] sm:$0xf]
  %v20 = vld [vmem:[%s0 + $0xc] sm:$0xff]
  %v21 = vld [vmem:[%s0 + $0x14] sm:$0xf]
  %v22 = vld [vmem:[%s0 + $0x18] sm:$0xff]
  %v23 = vld [vmem:[%s0 + $0x20] sm:$0xf]
  %v24 = vld [vmem:[%s0 + $0x24] sm:$0xff]
  %v25 = vld [vmem:[%s0 + $0x2c] sm:$0xf]
  %v26 = vld [vmem:[%s1] sm:$0xf]
  %v27 = vld [vmem:[%s1 + $0x4] sm:$0xf]
  %v28 = vld [vmem:[%s1 + $0x8] sm:$0xf]
  %v29 = vld [vmem:[%s1 + $0xc] sm:$0xf]
  %v30 = vld [vmem:[%s1 + $0x10] sm:$0xf]
  %v31 = vld [vmem:[%s1 + $0x14] sm:$0xf]
  %v32 = vld [vmem:[%s1 + $0x18] sm:$0xf]
  %v33 = vld [vmem:[%s1 + $0x1c] sm:$0xf]
  %v34 = vld [vmem:[%s1 + $0x20] sm:$0xf]
  %v35 = vld [vmem:[%s1 + $0x24] sm:$0xf]
  %v36 = vld [vmem:[%s1 + $0x28] sm:$0xf]
  %v37 = vld [vmem:[%s1 + $0x2c] sm:$0xf]
  %v38 = vld [vmem:[%s1 + $0x30] sm:$0xf]
  %v39 = vld [vmem:[%s1 + $0x34] sm:$0xf]
  %v40 = vld [vmem:[%s1 + $0x38] sm:$0xf]
  %v41 = vld [vmem:[%s1 + $0x3c] sm:$0xf]
  %v42 = vld [vmem:[%s1 + $0x40] sm:$0xf]
  %v43 = vld [vmem:[%s1 + $0x44] sm:$0xf]
  %v44 = vld [vmem:[%s1 + $0x48] sm:$0xf]
  %v45 = vld [vmem:[%s1 + $0x4c] sm:$0xf]
  %v46 = vld [vmem:[%s1 + $0x50] sm:$0xf]
  %v47 = vld [vmem:[%s1 + $0x54] sm:$0xf]
  %v48 = vld [vmem:[%s1 + $0x58] sm:$0xf]
  %v49 = vld [vmem:[%s1 + $0x5c] sm:$0xf]
  %v50 = vld [vmem:[%s1 + $0x60] sm:$0xf]
  %v51 = vld [vmem:[%s1 + $0x64] sm:$0xf]
  %v52 = vld [vmem:[%s1 + $0x68] sm:$0xf]
  %v53 = vld [vmem:[%s1 + $0x6c] sm:$0xf]
  %v54 = vld [vmem:[%s1 + $0x70] sm:$0xf]
  %v55 = vld [vmem:[%s1 + $0x74] sm:$0xf]
  %v56 = vld [vmem:[%s1 + $0x78] sm:$0xf]
  %v57 = vld [vmem:[%s1 + $0x7c] sm:$0xf]
  %v58 = vld [vmem:[%s1 + $0x80] sm:$0xf]
  %v59 = vld [vmem:[%s1 + $0x84] sm:$0xf]
  %v60 = vld [vmem:[%s1 + $0x88] sm:$0xf]
  %v61 = vld [vmem:[%s1 + $0x8c] sm:$0xf]
  %v62 = vld [vmem:[%s1 + $0x90] sm:$0xf]
  %v63 = vld [vmem:[%s1 + $0x94] sm:$0xf]
  %v64 = vld [vmem:[%s1 + $0x98] sm:$0xf]
  %v65 = vld [vmem:[%s1 + $0x9c] sm:$0xf]
  %v66 = vld [vmem:[%s1 + $0xa0] sm:$0xf]
  %v67 = vld [vmem:[%s1 + $0xa4] sm:$0xf]
  %v68 = vld [vmem:[%s1 + $0xa8] sm:$0xf]
  %v69 = vld [vmem:[%s1 + $0xac] sm:$0xf]
  %v70 = vld [vmem:[%s1 + $0xb0] sm:$0xf]
  %v71 = vld [vmem:[%s1 + $0xb4] sm:$0xf]
  %v72 = vld [vmem:[%s1 + $0xb8] sm:$0xf]
  %v73 = vld [vmem:[%s1 + $0xbc] sm:$0xf]
  %v82 = vunpack.c.l.b16 %v18
  %v83 = vunpack.c.h.b16 %v18
  %v84 = vunpack.c.l.b16 %v19
  %v85 = vunpack.c.l.b16 %v20
  %v86 = vunpack.c.h.b16 %v20
  %v87 = vunpack.c.l.b16 %v21
  %v88 = vunpack.c.l.b16 %v22
  %v89 = vunpack.c.h.b16 %v22
  %v90 = vunpack.c.l.b16 %v23
  %v91 = vunpack.c.l.b16 %v24
  %v92 = vunpack.c.h.b16 %v24
  %v93 = vunpack.c.l.b16 %v25
  %v94 = vpack.c.b16 %v85, %v82
  %v95 = vpack.c.b16 %v86, %v83
  %v96 = vpack.c.b16 %v87, %v84
  %v97 = vpack.c.b16 %v91, %v88
  %v98 = vpack.c.b16 %v92, %v89
  %v99 = vpack.c.b16 %v93, %v90
  %v154 = vunpack.c.l.b16 %v26
  %v155 = vunpack.c.l.b16 %v27
  %v156 = vunpack.c.l.b16 %v28
  %v157 = vunpack.c.l.b16 %v29
  %v158 = vunpack.c.l.b16 %v30
  %v159 = vunpack.c.l.b16 %v31
  %v160 = vunpack.c.l.b16 %v32
  %v161 = vunpack.c.l.b16 %v33
  %v162 = vunpack.c.l.b16 %v34
  %v163 = vunpack.c.l.b16 %v35
  %v164 = vunpack.c.l.b16 %v36
  %v165 = vunpack.c.l.b16 %v37
  %v166 = vunpack.c.l.b16 %v38
  %v167 = vunpack.c.l.b16 %v39
  %v168 = vunpack.c.l.b16 %v40
  %v169 = vunpack.c.l.b16 %v41
  %v170 = vunpack.c.l.b16 %v42
  %v171 = vunpack.c.l.b16 %v43
  %v172 = vunpack.c.l.b16 %v44
  %v173 = vunpack.c.l.b16 %v45
  %v174 = vunpack.c.l.b16 %v46
  %v175 = vunpack.c.l.b16 %v47
  %v176 = vunpack.c.l.b16 %v48
  %v177 = vunpack.c.l.b16 %v49
  %v178 = vunpack.c.l.b16 %v50
  %v179 = vunpack.c.l.b16 %v51
  %v180 = vunpack.c.l.b16 %v52
  %v181 = vunpack.c.l.b16 %v53
  %v182 = vunpack.c.l.b16 %v54
  %v183 = vunpack.c.l.b16 %v55
  %v184 = vunpack.c.l.b16 %v56
  %v185 = vunpack.c.l.b16 %v57
  %v186 = vunpack.c.l.b16 %v58
  %v187 = vunpack.c.l.b16 %v59
  %v188 = vunpack.c.l.b16 %v60
  %v189 = vunpack.c.l.b16 %v61
  %v190 = vunpack.c.l.b16 %v62
  %v191 = vunpack.c.l.b16 %v63
  %v192 = vunpack.c.l.b16 %v64
  %v193 = vunpack.c.l.b16 %v65
  %v194 = vunpack.c.l.b16 %v66
  %v195 = vunpack.c.l.b16 %v67
  %v196 = vunpack.c.l.b16 %v68
  %v197 = vunpack.c.l.b16 %v69
  %v198 = vunpack.c.l.b16 %v70
  %v199 = vunpack.c.l.b16 %v71
  %v200 = vunpack.c.l.b16 %v72
  %v201 = vunpack.c.l.b16 %v73
  %v202 = vpack.c.b16 %v155, %v154
  %v203 = vpack.c.b16 %v157, %v156
  %v204 = vpack.c.b16 %v159, %v158
  %v205 = vpack.c.b16 %v161, %v160
  %v206 = vpack.c.b16 %v163, %v162
  %v207 = vpack.c.b16 %v165, %v164
  %v208 = vpack.c.b16 %v167, %v166
  %v209 = vpack.c.b16 %v169, %v168
  %v210 = vpack.c.b16 %v171, %v170
  %v211 = vpack.c.b16 %v173, %v172
  %v212 = vpack.c.b16 %v175, %v174
  %v213 = vpack.c.b16 %v177, %v176
  %v214 = vpack.c.b16 %v179, %v178
  %v215 = vpack.c.b16 %v181, %v180
  %v216 = vpack.c.b16 %v183, %v182
  %v217 = vpack.c.b16 %v185, %v184
  %v218 = vpack.c.b16 %v187, %v186
  %v219 = vpack.c.b16 %v189, %v188
  %v220 = vpack.c.b16 %v191, %v190
  %v221 = vpack.c.b16 %v193, %v192
  %v222 = vpack.c.b16 %v195, %v194
  %v223 = vpack.c.b16 %v197, %v196
  %v224 = vpack.c.b16 %v199, %v198
  %v225 = vpack.c.b16 %v201, %v200
  %250 = vmatprep.subr.bf16.mxu0 0
  %251 = vmatpush1.bf16.msra.mxu0 %v202
  %252 = vmatprep.subr.bf16.mxu0 0
  %253 = vmatpush1.bf16.msra.mxu0 %v203
  %254 = vmatprep.subr.bf16.mxu0 0
  %255 = vmatpush1.bf16.msra.mxu0 %v204
  %256 = vmatprep.subr.bf16.mxu0 0
  %257 = vmatpush1.bf16.msra.mxu0 %v205
  %258 = vmatprep.subr.bf16.mxu0 0
  %259 = vmatpush1.bf16.msra.mxu0 %v206
  %260 = vmatprep.subr.bf16.mxu0 0
  %261 = vmatpush1.bf16.msra.mxu0 %v207
  %262 = vmatprep.subr.bf16.mxu0 0
  %263 = vmatpush1.bf16.msra.mxu0 %v208
  %264 = vmatprep.subr.bf16.mxu0 0
  %265 = vmatpush1.bf16.msra.mxu0 %v209
  %266 = vmatprep.subr.bf16.mxu0 0
  %267 = vmatpush1.bf16.msra.mxu0 %v210
  %268 = vmatprep.subr.bf16.mxu0 0
  %269 = vmatpush1.bf16.msra.mxu0 %v211
  %270 = vmatprep.subr.bf16.mxu0 0
  %271 = vmatpush1.bf16.msra.mxu0 %v212
  %272 = vmatprep.subr.bf16.mxu0 0
  %273 = vmatpush1.bf16.msra.mxu0 %v213
  %274 = vmatprep.subr.bf16.mxu0 0
  %275 = vmatpush1.bf16.msra.mxu0 %v214
  %276 = vmatprep.subr.bf16.mxu0 0
  %277 = vmatpush1.bf16.msra.mxu0 %v215
  %278 = vmatprep.subr.bf16.mxu0 0
  %279 = vmatpush1.bf16.msra.mxu0 %v216
  %280 = vmatprep.subr.bf16.mxu0 0
  %281 = vmatpush1.bf16.msra.mxu0 %v217
  %282 = vmatprep.mubr.bf16.mxu0 %v95
  %283 = vmatmul.mubr.bf16.gmra.mrb[0].mxu0 %v94
  %v284 = vpop.f32.mrb[0].mxu0
  %v285 = vadd.f32 0.0, %v284
  %v286 = vpop.f32.mrb[0].mxu0
  %v287 = vpop.f32.mrb[0].mxu0
  %v288 = vadd.f32 0.0, %v287
  %v289 = vpop.f32.mrb[0].mxu0
  %290 = vmatprep.mubr.bf16.mxu0 %v98
  %291 = vmatmul.mubr.bf16.gmra.mrb[0].mxu0 %v97
  %v292 = vpop.f32.mrb[0].mxu0
  %v293 = vadd.f32 0.0, %v292
  %v294 = vpop.f32.mrb[0].mxu0
  %v295 = vpop.f32.mrb[0].mxu0
  %v296 = vadd.f32 0.0, %v295
  %v297 = vpop.f32.mrb[0].mxu0
  %298 = vdwg.mxu0
  %299 = vmatprep.subr.bf16.mxu0 0
  %300 = vmatpush1.bf16.msra.mxu0 %v218
  %301 = vmatprep.subr.bf16.mxu0 0
  %302 = vmatpush1.bf16.msra.mxu0 %v219
  %303 = vmatprep.subr.bf16.mxu0 0
  %304 = vmatpush1.bf16.msra.mxu0 %v220
  %305 = vmatprep.subr.bf16.mxu0 0
  %306 = vmatpush1.bf16.msra.mxu0 %v221
  %307 = vmatprep.subr.bf16.mxu0 0
  %308 = vmatpush1.bf16.msra.mxu0 %v222
  %309 = vmatprep.subr.bf16.mxu0 0
  %310 = vmatpush1.bf16.msra.mxu0 %v223
  %311 = vmatprep.subr.bf16.mxu0 0
  %312 = vmatpush1.bf16.msra.mxu0 %v224
  %313 = vmatprep.subr.bf16.mxu0 0
  %314 = vmatpush1.bf16.msra.mxu0 %v225
  %315 = vmatprep.subr.bf16.mxu0 0
  %316 = vmatpush1.bf16.msra.mxu0 0
  %317 = vmatprep.subr.bf16.mxu0 0
  %318 = vmatpush1.bf16.msra.mxu0 0
  %319 = vmatprep.subr.bf16.mxu0 0
  %320 = vmatpush1.bf16.msra.mxu0 0
  %321 = vmatprep.subr.bf16.mxu0 0
  %322 = vmatpush1.bf16.msra.mxu0 0
  %323 = vmatprep.subr.bf16.mxu0 0
  %324 = vmatpush1.bf16.msra.mxu0 0
  %325 = vmatprep.subr.bf16.mxu0 0
  %326 = vmatpush1.bf16.msra.mxu0 0
  %327 = vmatprep.subr.bf16.mxu0 0
  %328 = vmatpush1.bf16.msra.mxu0 0
  %329 = vmatprep.subr.bf16.mxu0 0
  %330 = vmatpush1.bf16.msra.mxu0 0
  %331 = vmatprep.mubr.bf16.mxu0 0
  %332 = vmatmul.mubr.bf16.gmra.mrb[0].mxu0 %v96
  %v333 = vpop.f32.mrb[0].mxu0
  %v334 = vadd.f32 %v285, %v333
  %v335 = vpop.f32.mrb[0].mxu0
  %v336 = vpop.f32.mrb[0].mxu0
  %v337 = vadd.f32 %v288, %v336
  %v338 = vpop.f32.mrb[0].mxu0
  %339 = vmatprep.mubr.bf16.mxu0 0
  %340 = vmatmul.mubr.bf16.gmra.mrb[0].mxu0 %v99
  %v341 = vpop.f32.mrb[0].mxu0
  %v342 = vadd.f32 %v293, %v341
  %v343 = vpop.f32.mrb[0].mxu0
  %v344 = vpop.f32.mrb[0].mxu0
  %v345 = vadd.f32 %v296, %v344
  %v346 = vpop.f32.mrb[0].mxu0
  %347 = vdwg.mxu0
  %v348 = vld [vmem:[%s2] sm:$0xff]
  %v349 = vld [vmem:[%s2 + $0x8] sm:$0xff]
  %v350 = vld [vmem:[%s2 + $0x10] sm:$0xff]
  %v351 = vld [vmem:[%s2 + $0x18] sm:$0xff]
  %353 = vset.pattern.permute.xlu0 0
  %354 = vperm.xlu0 %353, %v348
  %v355 = vpop.permute.xlu0 %354
  %358 = vset.pattern.permute.xlu0 0
  %359 = vperm.xlu0 %358, %v349
  %v360 = vpop.permute.xlu0 %359
  %363 = vset.pattern.permute.xlu0 0
  %364 = vperm.xlu0 %363, %v350
  %v365 = vpop.permute.xlu0 %364
  %368 = vset.pattern.permute.xlu0 0
  %369 = vperm.xlu0 %368, %v351
  %v370 = vpop.permute.xlu0 %369
  %v372 = vmul.f32 %v334, %v355
  %v373 = vmul.f32 %v337, %v360
  %v374 = vmul.f32 %v342, %v365
  %v375 = vmul.f32 %v345, %v370
  %v376 = vld [vmem:[%s3] sm:$0xff]
  %v377 = vld [vmem:[%s3 + $0x8] sm:$0xff]
  %v378 = vld [vmem:[%s3 + $0x10] sm:$0xff]
  %v379 = vld [vmem:[%s3 + $0x18] sm:$0xff]
  %381 = vset.pattern.permute.xlu0 0
  %382 = vperm.xlu0 %381, %v376
  %v383 = vpop.permute.xlu0 %382
  %386 = vset.pattern.permute.xlu0 0
  %387 = vperm.xlu0 %386, %v377
  %v388 = vpop.permute.xlu0 %387
  %391 = vset.pattern.permute.xlu0 0
  %392 = vperm.xlu0 %391, %v378
  %v393 = vpop.permute.xlu0 %392
  %396 = vset.pattern.permute.xlu0 0
  %397 = vperm.xlu0 %396, %v379
  %v398 = vpop.permute.xlu0 %397
  %v400 = vadd.f32 %v372, %v383
  %v401 = vadd.f32 %v373, %v388
  %v402 = vadd.f32 %v374, %v393
  %v403 = vadd.f32 %v375, %v398
  %v404 = vmax.f32 %v400, 0.0
  %v405 = vmax.f32 %v401, 0.0
  %v406 = vmax.f32 %v402, 0.0
  %v407 = vmax.f32 %v403, 0.0
  %408 = vst [vmem:[%s4] sm:$0xff] %v404
  %409 = vst [vmem:[%s4 + $0x8] sm:$0xff] %v405
  %410 = vst [vmem:[%s4 + $0x10] sm:$0xff] %v406
  %411 = vst [vmem:[%s4 + $0x18] sm:$0xff] %v407
  // Predicated region
  $region18: #{_lambda_.35} parent=0 // pred_check
    _
  $region19: #{_lambda_.35} parent=0 // pred_check_branch
    %413 = sbr.rel (0) target = $region21
  $region20: #{_lambda_.35} parent=0 // pred_region
    _
  $region21: #{_lambda_.35} parent=0 // pred_fallthru
    _
  // Predicated region
  $region22: #{_lambda_.35} parent=0 // pred_check
    _
  $region23: #{_lambda_.35} parent=0 // pred_check_branch
    %415 = sbr.rel (0) target = $region25
  $region24: #{_lambda_.35} parent=0 // pred_region
    _
  $region25: #{_lambda_.35} parent=0 // pred_fallthru
    _

// kernel: _lambda_.38
$region0: #{_lambda_.38}
  #allocation0 [shape = 'u32[]', space=smem, size = 0x4, offset = 0x4, fixed_abs, tag = 'smem constant byte address 0x4 - core index']
  #allocation1 [shape = 'u32[144,128]{1,0:T(1,128)}', space=vmem, size = 0x12000, scoped, tag = 'internal scratch']
  %s0 = inlined_call_operand.vmem [shape: bf16[64,384], index: 0, kind: input, shape index: {}]
  %s1 = inlined_call_operand.vmem [shape: bf16[384,128], index: 1, kind: input, shape index: {}]
  %s2 = inlined_call_operand.vmem [shape: f32[64,1], index: 2, kind: input, shape index: {}]
  %s3 = inlined_call_operand.vmem [shape: f32[64,1], index: 3, kind: input, shape index: {}]
  %s4 = inlined_call_operand.vmem [shape: f32[64,128], index: 4, kind: output, shape index: {}]
  %s5 = sld [smem:[#allocation0]]
  $region26: #{_lambda_.38} parent=0
    _
  %s7 = ssub.s32 1, %s5
  %s8 = scalar_select 0, %s7, %s5
  // Predicated region
  $region2: #{_lambda_.38} parent=0 // pred_check
    _
  $region3: #{_lambda_.38} parent=0 // pred_check_branch
    %10 = sbr.rel (0) target = $region5
  $region4: #{_lambda_.38} parent=0 // pred_region
    _
  $region5: #{_lambda_.38} parent=0 // pred_fallthru
    _
  // Predicated region
  $region6: #{_lambda_.38} parent=0 // pred_check
    _
  $region7: #{_lambda_.38} parent=0 // pred_check_branch
    %12 = sbr.rel (0) target = $region9
  $region8: #{_lambda_.38} parent=0 // pred_region
    _
  $region9: #{_lambda_.38} parent=0 // pred_fallthru
    _
  // Predicated region
  $region10: #{_lambda_.38} parent=0 // pred_check
    _
  $region11: #{_lambda_.38} parent=0 // pred_check_branch
    %14 = sbr.rel (0) target = $region13
  $region12: #{_lambda_.38} parent=0 // pred_region
    _
  $region13: #{_lambda_.38} parent=0 // pred_fallthru
    _
  // Predicated region
  $region14: #{_lambda_.38} parent=0 // pred_check
    _
  $region15: #{_lambda_.38} parent=0 // pred_check_branch
    %16 = sbr.rel (0) target = $region17
  $region16: #{_lambda_.38} parent=0 // pred_region
    _
  $region17: #{_lambda_.38} parent=0 // pred_fallthru
    _
  %v18 = vld [vmem:[%s0] sm:$0xff]
  %v19 = vld [vmem:[%s0 + $0x8] sm:$0xf]
  %v20 = vld [vmem:[%s0 + $0xc] sm:$0xff]
  %v21 = vld [vmem:[%s0 + $0x14] sm:$0xf]
  %v22 = vld [vmem:[%s0 + $0x18] sm:$0xff]
  %v23 = vld [vmem:[%s0 + $0x20] sm:$0xf]
  %v24 = vld [vmem:[%s0 + $0x24] sm:$0xff]
  %v25 = vld [vmem:[%s0 + $0x2c] sm:$0xf]
  %v26 = vld [vmem:[%s0 + $0x30] sm:$0xff]
  %v27 = vld [vmem:[%s0 + $0x38] sm:$0xf]
  %v28 = vld [vmem:[%s0 + $0x3c] sm:$0xff]
  %v29 = vld [vmem:[%s0 + $0x44] sm:$0xf]
  %v30 = vld [vmem:[%s0 + $0x48] sm:$0xff]
  %v31 = vld [vmem:[%s0 + $0x50] sm:$0xf]
  %v32 = vld [vmem:[%s0 + $0x54] sm:$0xff]
  %v33 = vld [vmem:[%s0 + $0x5c] sm:$0xf]
  %v34 = vld [vmem:[%s1] sm:$0xf]
  %v35 = vld [vmem:[%s1 + $0x4] sm:$0xf]
  %v36 = vld [vmem:[%s1 + $0x8] sm:$0xf]
  %v37 = vld [vmem:[%s1 + $0xc] sm:$0xf]
  %v38 = vld [vmem:[%s1 + $0x10] sm:$0xf]
  %v39 = vld [vmem:[%s1 + $0x14] sm:$0xf]
  %v40 = vld [vmem:[%s1 + $0x18] sm:$0xf]
  %v41 = vld [vmem:[%s1 + $0x1c] sm:$0xf]
  %v42 = vld [vmem:[%s1 + $0x20] sm:$0xf]
  %v43 = vld [vmem:[%s1 + $0x24] sm:$0xf]
  %v44 = vld [vmem:[%s1 + $0x28] sm:$0xf]
  %v45 = vld [vmem:[%s1 + $0x2c] sm:$0xf]
  %v46 = vld [vmem:[%s1 + $0x30] sm:$0xf]
  %v47 = vld [vmem:[%s1 + $0x34] sm:$0xf]
  %v48 = vld [vmem:[%s1 + $0x38] sm:$0xf]
  %v49 = vld [vmem:[%s1 + $0x3c] sm:$0xf]
  %v50 = vld [vmem:[%s1 + $0x40] sm:$0xf]
  %v51 = vld [vmem:[%s1 + $0x44] sm:$0xf]
  %v52 = vld [vmem:[%s1 + $0x48] sm:$0xf]
  %v53 = vld [vmem:[%s1 + $0x4c] sm:$0xf]
  %v54 = vld [vmem:[%s1 + $0x50] sm:$0xf]
  %v55 = vld [vmem:[%s1 + $0x54] sm:$0xf]
  %v56 = vld [vmem:[%s1 + $0x58] sm:$0xf]
  %v57 = vld [vmem:[%s1 + $0x5c] sm:$0xf]
  %v58 = vld [vmem:[%s1 + $0x60] sm:$0xf]
  %v59 = vld [vmem:[%s1 + $0x64] sm:$0xf]
  %v60 = vld [vmem:[%s1 + $0x68] sm:$0xf]
  %v61 = vld [vmem:[%s1 + $0x6c] sm:$0xf]
  %v62 = vld [vmem:[%s1 + $0x70] sm:$0xf]
  %v63 = vld [vmem:[%s1 + $0x74] sm:$0xf]
  %v64 = vld [vmem:[%s1 + $0x78] sm:$0xf]
  %v65 = vld [vmem:[%s1 + $0x7c] sm:$0xf]
  %v66 = vld [vmem:[%s1 + $0x80] sm:$0xf]
  %v67 = vld [vmem:[%s1 + $0x84] sm:$0xf]
  %v68 = vld [vmem:[%s1 + $0x88] sm:$0xf]
  %v69 = vld [vmem:[%s1 + $0x8c] sm:$0xf]
  %v70 = vld [vmem:[%s1 + $0x90] sm:$0xf]
  %v71 = vld [vmem:[%s1 + $0x94] sm:$0xf]
  %v72 = vld [vmem:[%s1 + $0x98] sm:$0xf]
  %v73 = vld [vmem:[%s1 + $0x9c] sm:$0xf]
  %v74 = vld [vmem:[%s1 + $0xa0] sm:$0xf]
  %v75 = vld [vmem:[%s1 + $0xa4] sm:$0xf]
  %v76 = vld [vmem:[%s1 + $0xa8] sm:$0xf]
  %v77 = vld [vmem:[%s1 + $0xac] sm:$0xf]
  %v78 = vld [vmem:[%s1 + $0xb0] sm:$0xf]
  %v79 = vld [vmem:[%s1 + $0xb4] sm:$0xf]
  %v80 = vld [vmem:[%s1 + $0xb8] sm:$0xf]
  %v81 = vld [vmem:[%s1 + $0xbc] sm:$0xf]
  %v98 = vunpack.c.l.b16 %v18
  %v99 = vunpack.c.h.b16 %v18
  %v100 = vunpack.c.l.b16 %v19
  %v101 = vunpack.c.l.b16 %v20
  %v102 = vunpack.c.h.b16 %v20
  %v103 = vunpack.c.l.b16 %v21
  %v104 = vunpack.c.l.b16 %v22
  %v105 = vunpack.c.h.b16 %v22
  %v106 = vunpack.c.l.b16 %v23
  %v107 = vunpack.c.l.b16 %v24
  %v108 = vunpack.c.h.b16 %v24
  %v109 = vunpack.c.l.b16 %v25
  %v110 = vunpack.c.l.b16 %v26
  %v111 = vunpack.c.h.b16 %v26
  %v112 = vunpack.c.l.b16 %v27
  %v113 = vunpack.c.l.b16 %v28
  %v114 = vunpack.c.h.b16 %v28
  %v115 = vunpack.c.l.b16 %v29
  %v116 = vunpack.c.l.b16 %v30
  %v117 = vunpack.c.h.b16 %v30
  %v118 = vunpack.c.l.b16 %v31
  %v119 = vunpack.c.l.b16 %v32
  %v120 = vunpack.c.h.b16 %v32
  %v121 = vunpack.c.l.b16 %v33
  %v122 = vpack.c.b16 %v101, %v98
  %v123 = vpack.c.b16 %v102, %v99
  %v124 = vpack.c.b16 %v103, %v100
  %v125 = vpack.c.b16 %v107, %v104
  %v126 = vpack.c.b16 %v108, %v105
  %v127 = vpack.c.b16 %v109, %v106
  %v128 = vpack.c.b16 %v113, %v110
  %v129 = vpack.c.b16 %v114, %v111
  %v130 = vpack.c.b16 %v115, %v112
  %v131 = vpack.c.b16 %v119, %v116
  %v132 = vpack.c.b16 %v120, %v117
  %v133 = vpack.c.b16 %v121, %v118
  %v194 = vunpack.c.l.b16 %v34
  %v195 = vunpack.c.l.b16 %v35
  %v196 = vunpack.c.l.b16 %v36
  %v197 = vunpack.c.l.b16 %v37
  %v198 = vunpack.c.l.b16 %v38
  %v199 = vunpack.c.l.b16 %v39
  %v200 = vunpack.c.l.b16 %v40
  %v201 = vunpack.c.l.b16 %v41
  %v202 = vunpack.c.l.b16 %v42
  %v203 = vunpack.c.l.b16 %v43
  %v204 = vunpack.c.l.b16 %v44
  %v205 = vunpack.c.l.b16 %v45
  %v206 = vunpack.c.l.b16 %v46
  %v207 = vunpack.c.l.b16 %v47
  %v208 = vunpack.c.l.b16 %v48
  %v209 = vunpack.c.l.b16 %v49
  %v210 = vunpack.c.l.b16 %v50
  %v211 = vunpack.c.l.b16 %v51
  %v212 = vunpack.c.l.b16 %v52
  %v213 = vunpack.c.l.b16 %v53
  %v214 = vunpack.c.l.b16 %v54
  %v215 = vunpack.c.l.b16 %v55
  %v216 = vunpack.c.l.b16 %v56
  %v217 = vunpack.c.l.b16 %v57
  %v218 = vunpack.c.l.b16 %v58
  %v219 = vunpack.c.l.b16 %v59
  %v220 = vunpack.c.l.b16 %v60
  %v221 = vunpack.c.l.b16 %v61
  %v222 = vunpack.c.l.b16 %v62
  %v223 = vunpack.c.l.b16 %v63
  %v224 = vunpack.c.l.b16 %v64
  %v225 = vunpack.c.l.b16 %v65
  %v226 = vunpack.c.l.b16 %v66
  %v227 = vunpack.c.l.b16 %v67
  %v228 = vunpack.c.l.b16 %v68
  %v229 = vunpack.c.l.b16 %v69
  %v230 = vunpack.c.l.b16 %v70
  %v231 = vunpack.c.l.b16 %v71
  %v232 = vunpack.c.l.b16 %v72
  %v233 = vunpack.c.l.b16 %v73
  %v234 = vunpack.c.l.b16 %v74
  %v235 = vunpack.c.l.b16 %v75
  %v236 = vunpack.c.l.b16 %v76
  %v237 = vunpack.c.l.b16 %v77
  %v238 = vunpack.c.l.b16 %v78
  %v239 = vunpack.c.l.b16 %v79
  %v240 = vunpack.c.l.b16 %v80
  %v241 = vunpack.c.l.b16 %v81
  %v242 = vpack.c.b16 %v195, %v194
  %v243 = vpack.c.b16 %v197, %v196
  %v244 = vpack.c.b16 %v199, %v198
  %v245 = vpack.c.b16 %v201, %v200
  %v246 = vpack.c.b16 %v203, %v202
  %v247 = vpack.c.b16 %v205, %v204
  %v248 = vpack.c.b16 %v207, %v206
  %v249 = vpack.c.b16 %v209, %v208
  %v250 = vpack.c.b16 %v211, %v210
  %v251 = vpack.c.b16 %v213, %v212
  %v252 = vpack.c.b16 %v215, %v214
  %v253 = vpack.c.b16 %v217, %v216
  %v254 = vpack.c.b16 %v219, %v218
  %v255 = vpack.c.b16 %v221, %v220
  %v256 = vpack.c.b16 %v223, %v222
  %v257 = vpack.c.b16 %v225, %v224
  %v258 = vpack.c.b16 %v227, %v226
  %v259 = vpack.c.b16 %v229, %v228
  %v260 = vpack.c.b16 %v231, %v230
  %v261 = vpack.c.b16 %v233, %v232
  %v262 = vpack.c.b16 %v235, %v234
  %v263 = vpack.c.b16 %v237, %v236
  %v264 = vpack.c.b16 %v239, %v238
  %v265 = vpack.c.b16 %v241, %v240
  %290 = vmatprep.subr.bf16.mxu0 0
  %291 = vmatpush1.bf16.msra.mxu0 %v242
  %292 = vmatprep.subr.bf16.mxu0 0
  %293 = vmatpush1.bf16.msra.mxu0 %v243
  %294 = vmatprep.subr.bf16.mxu0 0
  %295 = vmatpush1.bf16.msra.mxu0 %v244
  %296 = vmatprep.subr.bf16.mxu0 0
  %297 = vmatpush1.bf16.msra.mxu0 %v245
  %298 = vmatprep.subr.bf16.mxu0 0
  %299 = vmatpush1.bf16.msra.mxu0 %v246
  %300 = vmatprep.subr.bf16.mxu0 0
  %301 = vmatpush1.bf16.msra.mxu0 %v247
  %302 = vmatprep.subr.bf16.mxu0 0
  %303 = vmatpush1.bf16.msra.mxu0 %v248
  %304 = vmatprep.subr.bf16.mxu0 0
  %305 = vmatpush1.bf16.msra.mxu0 %v249
  %306 = vmatprep.subr.bf16.mxu0 0
  %307 = vmatpush1.bf16.msra.mxu0 %v250
  %308 = vmatprep.subr.bf16.mxu0 0
  %309 = vmatpush1.bf16.msra.mxu0 %v251
  %310 = vmatprep.subr.bf16.mxu0 0
  %311 = vmatpush1.bf16.msra.mxu0 %v252
  %312 = vmatprep.subr.bf16.mxu0 0
  %313 = vmatpush1.bf16.msra.mxu0 %v253
  %314 = vmatprep.subr.bf16.mxu0 0
  %315 = vmatpush1.bf16.msra.mxu0 %v254
  %316 = vmatprep.subr.bf16.mxu0 0
  %317 = vmatpush1.bf16.msra.mxu0 %v255
  %318 = vmatprep.subr.bf16.mxu0 0
  %319 = vmatpush1.bf16.msra.mxu0 %v256
  %320 = vmatprep.subr.bf16.mxu0 0
  %321 = vmatpush1.bf16.msra.mxu0 %v257
  %322 = vmatprep.mubr.bf16.mxu0 %v123
  %323 = vmatmul.mubr.bf16.gmra.mrb[0].mxu0 %v122
  %v324 = vpop.f32.mrb[0].mxu0
  %v325 = vadd.f32 0.0, %v324
  %v326 = vpop.f32.mrb[0].mxu0
  %v327 = vpop.f32.mrb[0].mxu0
  %v328 = vadd.f32 0.0, %v327
  %v329 = vpop.f32.mrb[0].mxu0
  %330 = vmatprep.mubr.bf16.mxu0 %v126
  %331 = vmatmul.mubr.bf16.gmra.mrb[0].mxu0 %v125
  %v332 = vpop.f32.mrb[0].mxu0
  %v333 = vadd.f32 0.0, %v332
  %v334 = vpop.f32.mrb[0].mxu0
  %v335 = vpop.f32.mrb[0].mxu0
  %v336 = vadd.f32 0.0, %v335
  %v337 = vpop.f32.mrb[0].mxu0
  %338 = vmatprep.mubr.bf16.mxu0 %v129
  %339 = vmatmul.mubr.bf16.gmra.mrb[0].mxu0 %v128
  %v340 = vpop.f32.mrb[0].mxu0
  %v341 = vadd.f32 0.0, %v340
  %v342 = vpop.f32.mrb[0].mxu0
  %v343 = vpop.f32.mrb[0].mxu0
  %v344 = vadd.f32 0.0, %v343
  %v345 = vpop.f32.mrb[0].mxu0
  %346 = vmatprep.mubr.bf16.mxu0 %v132
  %347 = vmatmul.mubr.bf16.gmra.mrb[0].mxu0 %v131
  %v348 = vpop.f32.mrb[0].mxu0
  %v349 = vadd.f32 0.0, %v348
  %v350 = vpop.f32.mrb[0].mxu0
  %v351 = vpop.f32.mrb[0].mxu0
  %v352 = vadd.f32 0.0, %v351
  %v353 = vpop.f32.mrb[0].mxu0
  %354 = vdwg.mxu0
  %355 = vmatprep.subr.bf16.mxu0 0
  %356 = vmatpush1.bf16.msra.mxu0 %v258
  %357 = vmatprep.subr.bf16.mxu0 0
  %358 = vmatpush1.bf16.msra.mxu0 %v259
  %359 = vmatprep.subr.bf16.mxu0 0
  %360 = vmatpush1.bf16.msra.mxu0 %v260
  %361 = vmatprep.subr.bf16.mxu0 0
  %362 = vmatpush1.bf16.msra.mxu0 %v261
  %363 = vmatprep.subr.bf16.mxu0 0
  %364 = vmatpush1.bf16.msra.mxu0 %v262
  %365 = vmatprep.subr.bf16.mxu0 0
  %366 = vmatpush1.bf16.msra.mxu0 %v263
  %367 = vmatprep.subr.bf16.mxu0 0
  %368 = vmatpush1.bf16.msra.mxu0 %v264
  %369 = vmatprep.subr.bf16.mxu0 0
  %370 = vmatpush1.bf16.msra.mxu0 %v265
  %371 = vmatprep.subr.bf16.mxu0 0
  %372 = vmatpush1.bf16.msra.mxu0 0
  %373 = vmatprep.subr.bf16.mxu0 0
  %374 = vmatpush1.bf16.msra.mxu0 0
  %375 = vmatprep.subr.bf16.mxu0 0
  %376 = vmatpush1.bf16.msra.mxu0 0
  %377 = vmatprep.subr.bf16.mxu0 0
  %378 = vmatpush1.bf16.msra.mxu0 0
  %379 = vmatprep.subr.bf16.mxu0 0
  %380 = vmatpush1.bf16.msra.mxu0 0
  %381 = vmatprep.subr.bf16.mxu0 0
  %382 = vmatpush1.bf16.msra.mxu0 0
  %383 = vmatprep.subr.bf16.mxu0 0
  %384 = vmatpush1.bf16.msra.mxu0 0
  %385 = vmatprep.subr.bf16.mxu0 0
  %386 = vmatpush1.bf16.msra.mxu0 0
  %387 = vmatprep.mubr.bf16.mxu0 0
  %388 = vmatmul.mubr.bf16.gmra.mrb[0].mxu0 %v124
  %v389 = vpop.f32.mrb[0].mxu0
  %v390 = vadd.f32 %v325, %v389
  %v391 = vpop.f32.mrb[0].mxu0
  %v392 = vpop.f32.mrb[0].mxu0
  %v393 = vadd.f32 %v328, %v392
  %v394 = vpop.f32.mrb[0].mxu0
  %395 = vmatprep.mubr.bf16.mxu0 0
  %396 = vmatmul.mubr.bf16.gmra.mrb[0].mxu0 %v127
  %v397 = vpop.f32.mrb[0].mxu0
  %v398 = vadd.f32 %v333, %v397
  %v399 = vpop.f32.mrb[0].mxu0
  %v400 = vpop.f32.mrb[0].mxu0
  %v401 = vadd.f32 %v336, %v400
  %v402 = vpop.f32.mrb[0].mxu0
  %403 = vmatprep.mubr.bf16.mxu0 0
  %404 = vmatmul.mubr.bf16.gmra.mrb[0].mxu0 %v130
  %v405 = vpop.f32.mrb[0].mxu0
  %v406 = vadd.f32 %v341, %v405
  %v407 = vpop.f32.mrb[0].mxu0
  %v408 = vpop.f32.mrb[0].mxu0
  %v409 = vadd.f32 %v344, %v408
  %v410 = vpop.f32.mrb[0].mxu0
  %411 = vmatprep.mubr.bf16.mxu0 0
  %412 = vmatmul.mubr.bf16.gmra.mrb[0].mxu0 %v133
  %v413 = vpop.f32.mrb[0].mxu0
  %v414 = vadd.f32 %v349, %v413
  %v415 = vpop.f32.mrb[0].mxu0
  %v416 = vpop.f32.mrb[0].mxu0
  %v417 = vadd.f32 %v352, %v416
  %v418 = vpop.f32.mrb[0].mxu0
  %419 = vdwg.mxu0
  %v420 = vld [vmem:[%s2] sm:$0xff]
  %v421 = vld [vmem:[%s2 + $0x8] sm:$0xff]
  %v422 = vld [vmem:[%s2 + $0x10] sm:$0xff]
  %v423 = vld [vmem:[%s2 + $0x18] sm:$0xff]
  %v424 = vld [vmem:[%s2 + $0x20] sm:$0xff]
  %v425 = vld [vmem:[%s2 + $0x28] sm:$0xff]
  %v426 = vld [vmem:[%s2 + $0x30] sm:$0xff]
  %v427 = vld [vmem:[%s2 + $0x38] sm:$0xff]
  %429 = vset.pattern.permute.xlu0 0
  %430 = vperm.xlu0 %429, %v420
  %v431 = vpop.permute.xlu0 %430
  %434 = vset.pattern.permute.xlu0 0
  %435 = vperm.xlu0 %434, %v421
  %v436 = vpop.permute.xlu0 %435
  %439 = vset.pattern.permute.xlu0 0
  %440 = vperm.xlu0 %439, %v422
  %v441 = vpop.permute.xlu0 %440
  %444 = vset.pattern.permute.xlu0 0
  %445 = vperm.xlu0 %444, %v423
  %v446 = vpop.permute.xlu0 %445
  %449 = vset.pattern.permute.xlu0 0
  %450 = vperm.xlu0 %449, %v424
  %v451 = vpop.permute.xlu0 %450
  %454 = vset.pattern.permute.xlu0 0
  %455 = vperm.xlu0 %454, %v425
  %v456 = vpop.permute.xlu0 %455
  %459 = vset.pattern.permute.xlu0 0
  %460 = vperm.xlu0 %459, %v426
  %v461 = vpop.permute.xlu0 %460
  %464 = vset.pattern.permute.xlu0 0
  %465 = vperm.xlu0 %464, %v427
  %v466 = vpop.permute.xlu0 %465
  %v468 = vmul.f32 %v390, %v431
  %v469 = vmul.f32 %v393, %v436
  %v470 = vmul.f32 %v398, %v441
  %v471 = vmul.f32 %v401, %v446
  %v472 = vmul.f32 %v406, %v451
  %v473 = vmul.f32 %v409, %v456
  %v474 = vmul.f32 %v414, %v461
  %v475 = vmul.f32 %v417, %v466
  %v476 = vld [vmem:[%s3] sm:$0xff]
  %v477 = vld [vmem:[%s3 + $0x8] sm:$0xff]
  %v478 = vld [vmem:[%s3 + $0x10] sm:$0xff]
  %v479 = vld [vmem:[%s3 + $0x18] sm:$0xff]
  %v480 = vld [vmem:[%s3 + $0x20] sm:$0xff]
  %v481 = vld [vmem:[%s3 + $0x28] sm:$0xff]
  %v482 = vld [vmem:[%s3 + $0x30] sm:$0xff]
  %v483 = vld [vmem:[%s3 + $0x38] sm:$0xff]
  %485 = vset.pattern.permute.xlu0 0
  %486 = vperm.xlu0 %485, %v476
  %v487 = vpop.permute.xlu0 %486
  %490 = vset.pattern.permute.xlu0 0
  %491 = vperm.xlu0 %490, %v477
  %v492 = vpop.permute.xlu0 %491
  %495 = vset.pattern.permute.xlu0 0
  %496 = vperm.xlu0 %495, %v478
  %v497 = vpop.permute.xlu0 %496
  %500 = vset.pattern.permute.xlu0 0
  %501 = vperm.xlu0 %500, %v479
  %v502 = vpop.permute.xlu0 %501
  %505 = vset.pattern.permute.xlu0 0
  %506 = vperm.xlu0 %505, %v480
  %v507 = vpop.permute.xlu0 %506
  %510 = vset.pattern.permute.xlu0 0
  %511 = vperm.xlu0 %510, %v481
  %v512 = vpop.permute.xlu0 %511
  %515 = vset.pattern.permute.xlu0 0
  %516 = vperm.xlu0 %515, %v482
  %v517 = vpop.permute.xlu0 %516
  %520 = vset.pattern.permute.xlu0 0
  %521 = vperm.xlu0 %520, %v483
  %v522 = vpop.permute.xlu0 %521
  %v524 = vadd.f32 %v468, %v487
  %v525 = vadd.f32 %v469, %v492
  %v526 = vadd.f32 %v470, %v497
  %v527 = vadd.f32 %v471, %v502
  %v528 = vadd.f32 %v472, %v507
  %v529 = vadd.f32 %v473, %v512
  %v530 = vadd.f32 %v474, %v517
  %v531 = vadd.f32 %v475, %v522
  %v532 = vmax.f32 %v524, 0.0
  %v533 = vmax.f32 %v525, 0.0
  %v534 = vmax.f32 %v526, 0.0
  %v535 = vmax.f32 %v527, 0.0
  %v536 = vmax.f32 %v528, 0.0
  %v537 = vmax.f32 %v529, 0.0
  %v538 = vmax.f32 %v530, 0.0
  %v539 = vmax.f32 %v531, 0.0
  %540 = vst [vmem:[%s4] sm:$0xff] %v532
  %541 = vst [vmem:[%s4 + $0x8] sm:$0xff] %v533
  %542 = vst [vmem:[%s4 + $0x10] sm:$0xff] %v534
  %543 = vst [vmem:[%s4 + $0x18] sm:$0xff] %v535
  %544 = vst [vmem:[%s4 + $0x20] sm:$0xff] %v536
  %545 = vst [vmem:[%s4 + $0x28] sm:$0xff] %v537
  %546 = vst [vmem:[%s4 + $0x30] sm:$0xff] %v538
  %547 = vst [vmem:[%s4 + $0x38] sm:$0xff] %v539
  // Predicated region
  $region18: #{_lambda_.38} parent=0 // pred_check
    _
  $region19: #{_lambda_.38} parent=0 // pred_check_branch
    %549 = sbr.rel (0) target = $region21
  $region20: #{_lambda_.38} parent=0 // pred_region
    _
  $region21: #{_lambda_.38} parent=0 // pred_fallthru
    _
  // Predicated region
  $region22: #{_lambda_.38} parent=0 // pred_check
    _
  $region23: #{_lambda_.38} parent=0 // pred_check_branch
    %551 = sbr.rel (0) target = $region25
  $region24: #{_lambda_.38} parent=0 // pred_region
    _
  $region25: #{_lambda_.38} parent=0 // pred_fallthru
    _

// kernel: _lambda_.37
$region0: #{_lambda_.37}
  #allocation0 [shape = 'u32[]', space=smem, size = 0x4, offset = 0x4, fixed_abs, tag = 'smem constant byte address 0x4 - core index']
  #allocation1 [shape = 'u32[144,128]{1,0:T(1,128)}', space=vmem, size = 0x12000, scoped, tag = 'internal scratch']
  %s0 = inlined_call_operand.vmem [shape: bf16[64,128], index: 0, kind: input, shape index: {}]
  %s1 = inlined_call_operand.vmem [shape: bf16[128,128], index: 1, kind: input, shape index: {}]
  %s2 = inlined_call_operand.vmem [shape: f32[64,1], index: 2, kind: input, shape index: {}]
  %s3 = inlined_call_operand.vmem [shape: f32[64,1], index: 3, kind: input, shape index: {}]
  %s4 = inlined_call_operand.vmem [shape: f32[64,128], index: 4, kind: output, shape index: {}]
  %s5 = sld [smem:[#allocation0]]
  $region26: #{_lambda_.37} parent=0
    _
  %s7 = ssub.s32 1, %s5
  %s8 = scalar_select 0, %s7, %s5
  // Predicated region
  $region2: #{_lambda_.37} parent=0 // pred_check
    _
  $region3: #{_lambda_.37} parent=0 // pred_check_branch
    %10 = sbr.rel (0) target = $region5
  $region4: #{_lambda_.37} parent=0 // pred_region
    _
  $region5: #{_lambda_.37} parent=0 // pred_fallthru
    _
  // Predicated region
  $region6: #{_lambda_.37} parent=0 // pred_check
    _
  $region7: #{_lambda_.37} parent=0 // pred_check_branch
    %12 = sbr.rel (0) target = $region9
  $region8: #{_lambda_.37} parent=0 // pred_region
    _
  $region9: #{_lambda_.37} parent=0 // pred_fallthru
    _
  // Predicated region
  $region10: #{_lambda_.37} parent=0 // pred_check
    _
  $region11: #{_lambda_.37} parent=0 // pred_check_branch
    %14 = sbr.rel (0) target = $region13
  $region12: #{_lambda_.37} parent=0 // pred_region
    _
  $region13: #{_lambda_.37} parent=0 // pred_fallthru
    _
  // Predicated region
  $region14: #{_lambda_.37} parent=0 // pred_check
    _
  $region15: #{_lambda_.37} parent=0 // pred_check_branch
    %16 = sbr.rel (0) target = $region17
  $region16: #{_lambda_.37} parent=0 // pred_region
    _
  $region17: #{_lambda_.37} parent=0 // pred_fallthru
    _
  %v18 = vld [vmem:[%s0] sm:$0xf]
  %v19 = vld [vmem:[%s0 + $0x4] sm:$0xf]
  %v20 = vld [vmem:[%s0 + $0x8] sm:$0xf]
  %v21 = vld [vmem:[%s0 + $0xc] sm:$0xf]
  %v22 = vld [vmem:[%s0 + $0x10] sm:$0xf]
  %v23 = vld [vmem:[%s0 + $0x14] sm:$0xf]
  %v24 = vld [vmem:[%s0 + $0x18] sm:$0xf]
  %v25 = vld [vmem:[%s0 + $0x1c] sm:$0xf]
  %v26 = vld [vmem:[%s1] sm:$0xf]
  %v27 = vld [vmem:[%s1 + $0x4] sm:$0xf]
  %v28 = vld [vmem:[%s1 + $0x8] sm:$0xf]
  %v29 = vld [vmem:[%s1 + $0xc] sm:$0xf]
  %v30 = vld [vmem:[%s1 + $0x10] sm:$0xf]
  %v31 = vld [vmem:[%s1 + $0x14] sm:$0xf]
  %v32 = vld [vmem:[%s1 + $0x18] sm:$0xf]
  %v33 = vld [vmem:[%s1 + $0x1c] sm:$0xf]
  %v34 = vld [vmem:[%s1 + $0x20] sm:$0xf]
  %v35 = vld [vmem:[%s1 + $0x24] sm:$0xf]
  %v36 = vld [vmem:[%s1 + $0x28] sm:$0xf]
  %v37 = vld [vmem:[%s1 + $0x2c] sm:$0xf]
  %v38 = vld [vmem:[%s1 + $0x30] sm:$0xf]
  %v39 = vld [vmem:[%s1 + $0x34] sm:$0xf]
  %v40 = vld [vmem:[%s1 + $0x38] sm:$0xf]
  %v41 = vld [vmem:[%s1 + $0x3c] sm:$0xf]
  %v50 = vunpack.c.l.b16 %v18
  %v51 = vunpack.c.l.b16 %v19
  %v52 = vunpack.c.l.b16 %v20
  %v53 = vunpack.c.l.b16 %v21
  %v54 = vunpack.c.l.b16 %v22
  %v55 = vunpack.c.l.b16 %v23
  %v56 = vunpack.c.l.b16 %v24
  %v57 = vunpack.c.l.b16 %v25
  %v58 = vpack.c.b16 %v51, %v50
  %v59 = vpack.c.b16 %v53, %v52
  %v60 = vpack.c.b16 %v55, %v54
  %v61 = vpack.c.b16 %v57, %v56
  %v82 = vunpack.c.l.b16 %v26
  %v83 = vunpack.c.l.b16 %v27
  %v84 = vunpack.c.l.b16 %v28
  %v85 = vunpack.c.l.b16 %v29
  %v86 = vunpack.c.l.b16 %v30
  %v87 = vunpack.c.l.b16 %v31
  %v88 = vunpack.c.l.b16 %v32
  %v89 = vunpack.c.l.b16 %v33
  %v90 = vunpack.c.l.b16 %v34
  %v91 = vunpack.c.l.b16 %v35
  %v92 = vunpack.c.l.b16 %v36
  %v93 = vunpack.c.l.b16 %v37
  %v94 = vunpack.c.l.b16 %v38
  %v95 = vunpack.c.l.b16 %v39
  %v96 = vunpack.c.l.b16 %v40
  %v97 = vunpack.c.l.b16 %v41
  %v98 = vpack.c.b16 %v83, %v82
  %v99 = vpack.c.b16 %v85, %v84
  %v100 = vpack.c.b16 %v87, %v86
  %v101 = vpack.c.b16 %v89, %v88
  %v102 = vpack.c.b16 %v91, %v90
  %v103 = vpack.c.b16 %v93, %v92
  %v104 = vpack.c.b16 %v95, %v94
  %v105 = vpack.c.b16 %v97, %v96
  %114 = vmatprep.subr.bf16.mxu0 0
  %115 = vmatpush1.bf16.msra.mxu0 %v98
  %116 = vmatprep.subr.bf16.mxu0 0
  %117 = vmatpush1.bf16.msra.mxu0 %v99
  %118 = vmatprep.subr.bf16.mxu0 0
  %119 = vmatpush1.bf16.msra.mxu0 %v100
  %120 = vmatprep.subr.bf16.mxu0 0
  %121 = vmatpush1.bf16.msra.mxu0 %v101
  %122 = vmatprep.subr.bf16.mxu0 0
  %123 = vmatpush1.bf16.msra.mxu0 %v102
  %124 = vmatprep.subr.bf16.mxu0 0
  %125 = vmatpush1.bf16.msra.mxu0 %v103
  %126 = vmatprep.subr.bf16.mxu0 0
  %127 = vmatpush1.bf16.msra.mxu0 %v104
  %128 = vmatprep.subr.bf16.mxu0 0
  %129 = vmatpush1.bf16.msra.mxu0 %v105
  %130 = vmatprep.subr.bf16.mxu0 0
  %131 = vmatpush1.bf16.msra.mxu0 0
  %132 = vmatprep.subr.bf16.mxu0 0
  %133 = vmatpush1.bf16.msra.mxu0 0
  %134 = vmatprep.subr.bf16.mxu0 0
  %135 = vmatpush1.bf16.msra.mxu0 0
  %136 = vmatprep.subr.bf16.mxu0 0
  %137 = vmatpush1.bf16.msra.mxu0 0
  %138 = vmatprep.subr.bf16.mxu0 0
  %139 = vmatpush1.bf16.msra.mxu0 0
  %140 = vmatprep.subr.bf16.mxu0 0
  %141 = vmatpush1.bf16.msra.mxu0 0
  %142 = vmatprep.subr.bf16.mxu0 0
  %143 = vmatpush1.bf16.msra.mxu0 0
  %144 = vmatprep.subr.bf16.mxu0 0
  %145 = vmatpush1.bf16.msra.mxu0 0
  %146 = vmatprep.mubr.bf16.mxu0 0
  %147 = vmatmul.mubr.bf16.gmra.mrb[0].mxu0 %v58
  %v148 = vpop.f32.mrb[0].mxu0
  %v149 = vadd.f32 0.0, %v148
  %v150 = vpop.f32.mrb[0].mxu0
  %v151 = vpop.f32.mrb[0].mxu0
  %v152 = vadd.f32 0.0, %v151
  %v153 = vpop.f32.mrb[0].mxu0
  %154 = vmatprep.mubr.bf16.mxu0 0
  %155 = vmatmul.mubr.bf16.gmra.mrb[0].mxu0 %v59
  %v156 = vpop.f32.mrb[0].mxu0
  %v157 = vadd.f32 0.0, %v156
  %v158 = vpop.f32.mrb[0].mxu0
  %v159 = vpop.f32.mrb[0].mxu0
  %v160 = vadd.f32 0.0, %v159
  %v161 = vpop.f32.mrb[0].mxu0
  %162 = vmatprep.mubr.bf16.mxu0 0
  %163 = vmatmul.mubr.bf16.gmra.mrb[0].mxu0 %v60
  %v164 = vpop.f32.mrb[0].mxu0
  %v165 = vadd.f32 0.0, %v164
  %v166 = vpop.f32.mrb[0].mxu0
  %v167 = vpop.f32.mrb[0].mxu0
  %v168 = vadd.f32 0.0, %v167
  %v169 = vpop.f32.mrb[0].mxu0
  %170 = vmatprep.mubr.bf16.mxu0 0
  %171 = vmatmul.mubr.bf16.gmra.mrb[0].mxu0 %v61
  %v172 = vpop.f32.mrb[0].mxu0
  %v173 = vadd.f32 0.0, %v172
  %v174 = vpop.f32.mrb[0].mxu0
  %v175 = vpop.f32.mrb[0].mxu0
  %v176 = vadd.f32 0.0, %v175
  %v177 = vpop.f32.mrb[0].mxu0
  %178 = vdwg.mxu0
  %v179 = vld [vmem:[%s2] sm:$0xff]
  %v180 = vld [vmem:[%s2 + $0x8] sm:$0xff]
  %v181 = vld [vmem:[%s2 + $0x10] sm:$0xff]
  %v182 = vld [vmem:[%s2 + $0x18] sm:$0xff]
  %v183 = vld [vmem:[%s2 + $0x20] sm:$0xff]
  %v184 = vld [vmem:[%s2 + $0x28] sm:$0xff]
  %v185 = vld [vmem:[%s2 + $0x30] sm:$0xff]
  %v186 = vld [vmem:[%s2 + $0x38] sm:$0xff]
  %188 = vset.pattern.permute.xlu0 0
  %189 = vperm.xlu0 %188, %v179
  %v190 = vpop.permute.xlu0 %189
  %193 = vset.pattern.permute.xlu0 0
  %194 = vperm.xlu0 %193, %v180
  %v195 = vpop.permute.xlu0 %194
  %198 = vset.pattern.permute.xlu0 0
  %199 = vperm.xlu0 %198, %v181
  %v200 = vpop.permute.xlu0 %199
  %203 = vset.pattern.permute.xlu0 0
  %204 = vperm.xlu0 %203, %v182
  %v205 = vpop.permute.xlu0 %204
  %208 = vset.pattern.permute.xlu0 0
  %209 = vperm.xlu0 %208, %v183
  %v210 = vpop.permute.xlu0 %209
  %213 = vset.pattern.permute.xlu0 0
  %214 = vperm.xlu0 %213, %v184
  %v215 = vpop.permute.xlu0 %214
  %218 = vset.pattern.permute.xlu0 0
  %219 = vperm.xlu0 %218, %v185
  %v220 = vpop.permute.xlu0 %219
  %223 = vset.pattern.permute.xlu0 0
  %224 = vperm.xlu0 %223, %v186
  %v225 = vpop.permute.xlu0 %224
  %v227 = vmul.f32 %v149, %v190
  %v228 = vmul.f32 %v152, %v195
  %v229 = vmul.f32 %v157, %v200
  %v230 = vmul.f32 %v160, %v205
  %v231 = vmul.f32 %v165, %v210
  %v232 = vmul.f32 %v168, %v215
  %v233 = vmul.f32 %v173, %v220
  %v234 = vmul.f32 %v176, %v225
  %v235 = vld [vmem:[%s3] sm:$0xff]
  %v236 = vld [vmem:[%s3 + $0x8] sm:$0xff]
  %v237 = vld [vmem:[%s3 + $0x10] sm:$0xff]
  %v238 = vld [vmem:[%s3 + $0x18] sm:$0xff]
  %v239 = vld [vmem:[%s3 + $0x20] sm:$0xff]
  %v240 = vld [vmem:[%s3 + $0x28] sm:$0xff]
  %v241 = vld [vmem:[%s3 + $0x30] sm:$0xff]
  %v242 = vld [vmem:[%s3 + $0x38] sm:$0xff]
  %244 = vset.pattern.permute.xlu0 0
  %245 = vperm.xlu0 %244, %v235
  %v246 = vpop.permute.xlu0 %245
  %249 = vset.pattern.permute.xlu0 0
  %250 = vperm.xlu0 %249, %v236
  %v251 = vpop.permute.xlu0 %250
  %254 = vset.pattern.permute.xlu0 0
  %255 = vperm.xlu0 %254, %v237
  %v256 = vpop.permute.xlu0 %255
  %259 = vset.pattern.permute.xlu0 0
  %260 = vperm.xlu0 %259, %v238
  %v261 = vpop.permute.xlu0 %260
  %264 = vset.pattern.permute.xlu0 0
  %265 = vperm.xlu0 %264, %v239
  %v266 = vpop.permute.xlu0 %265
  %269 = vset.pattern.permute.xlu0 0
  %270 = vperm.xlu0 %269, %v240
  %v271 = vpop.permute.xlu0 %270
  %274 = vset.pattern.permute.xlu0 0
  %275 = vperm.xlu0 %274, %v241
  %v276 = vpop.permute.xlu0 %275
  %279 = vset.pattern.permute.xlu0 0
  %280 = vperm.xlu0 %279, %v242
  %v281 = vpop.permute.xlu0 %280
  %v283 = vadd.f32 %v227, %v246
  %v284 = vadd.f32 %v228, %v251
  %v285 = vadd.f32 %v229, %v256
  %v286 = vadd.f32 %v230, %v261
  %v287 = vadd.f32 %v231, %v266
  %v288 = vadd.f32 %v232, %v271
  %v289 = vadd.f32 %v233, %v276
  %v290 = vadd.f32 %v234, %v281
  %291 = vst [vmem:[%s4] sm:$0xff] %v283
  %292 = vst [vmem:[%s4 + $0x8] sm:$0xff] %v284
  %293 = vst [vmem:[%s4 + $0x10] sm:$0xff] %v285
  %294 = vst [vmem:[%s4 + $0x18] sm:$0xff] %v286
  %295 = vst [vmem:[%s4 + $0x20] sm:$0xff] %v287
  %296 = vst [vmem:[%s4 + $0x28] sm:$0xff] %v288
  %297 = vst [vmem:[%s4 + $0x30] sm:$0xff] %v289
  %298 = vst [vmem:[%s4 + $0x38] sm:$0xff] %v290
  // Predicated region
  $region18: #{_lambda_.37} parent=0 // pred_check
    _
  $region19: #{_lambda_.37} parent=0 // pred_check_branch
    %300 = sbr.rel (0) target = $region21
  $region20: #{_lambda_.37} parent=0 // pred_region
    _
  $region21: #{_lambda_.37} parent=0 // pred_fallthru
    _
  // Predicated region
  $region22: #{_lambda_.37} parent=0 // pred_check
    _
  $region23: #{_lambda_.37} parent=0 // pred_check_branch
    %302 = sbr.rel (0) target = $region25
  $region24: #{_lambda_.37} parent=0 // pred_region
    _
  $region25: #{_lambda_.37} parent=0 // pred_fallthru
    _

// kernel: _lambda_.39
$region0: #{_lambda_.39}
  #allocation0 [shape = 'u32[]', space=smem, size = 0x4, offset = 0x4, fixed_abs, tag = 'smem constant byte address 0x4 - core index']
  #allocation1 [shape = 'u32[144,128]{1,0:T(1,128)}', space=vmem, size = 0x12000, scoped, tag = 'internal scratch']
  %s0 = inlined_call_operand.vmem [shape: bf16[64,640], index: 0, kind: input, shape index: {}]
  %s1 = inlined_call_operand.vmem [shape: bf16[640,128], index: 1, kind: input, shape index: {}]
  %s2 = inlined_call_operand.vmem [shape: f32[64,1], index: 2, kind: input, shape index: {}]
  %s3 = inlined_call_operand.vmem [shape: f32[64,1], index: 3, kind: input, shape index: {}]
  %s4 = inlined_call_operand.vmem [shape: f32[64,128], index: 4, kind: input, shape index: {}]
  %s5 = inlined_call_operand.vmem [shape: f32[64,128], index: 5, kind: output, shape index: {}]
  %s6 = sld [smem:[#allocation0]]
  $region30: #{_lambda_.39} parent=0
    _
  %s8 = ssub.s32 1, %s6
  %s9 = scalar_select 0, %s8, %s6
  // Predicated region
  $region2: #{_lambda_.39} parent=0 // pred_check
    _
  $region3: #{_lambda_.39} parent=0 // pred_check_branch
    %11 = sbr.rel (0) target = $region5
  $region4: #{_lambda_.39} parent=0 // pred_region
    _
  $region5: #{_lambda_.39} parent=0 // pred_fallthru
    _
  // Predicated region
  $region6: #{_lambda_.39} parent=0 // pred_check
    _
  $region7: #{_lambda_.39} parent=0 // pred_check_branch
    %13 = sbr.rel (0) target = $region9
  $region8: #{_lambda_.39} parent=0 // pred_region
    _
  $region9: #{_lambda_.39} parent=0 // pred_fallthru
    _
  // Predicated region
  $region10: #{_lambda_.39} parent=0 // pred_check
    _
  $region11: #{_lambda_.39} parent=0 // pred_check_branch
    %15 = sbr.rel (0) target = $region13
  $region12: #{_lambda_.39} parent=0 // pred_region
    _
  $region13: #{_lambda_.39} parent=0 // pred_fallthru
    _
  // Predicated region
  $region14: #{_lambda_.39} parent=0 // pred_check
    _
  $region15: #{_lambda_.39} parent=0 // pred_check_branch
    %17 = sbr.rel (0) target = $region17
  $region16: #{_lambda_.39} parent=0 // pred_region
    _
  $region17: #{_lambda_.39} parent=0 // pred_fallthru
    _
  // Predicated region
  $region18: #{_lambda_.39} parent=0 // pred_check
    _
  $region19: #{_lambda_.39} parent=0 // pred_check_branch
    %19 = sbr.rel (0) target = $region21
  $region20: #{_lambda_.39} parent=0 // pred_region
    _
  $region21: #{_lambda_.39} parent=0 // pred_fallthru
    _
  %v21 = vld [vmem:[%s0] sm:$0xff]
  %v22 = vld [vmem:[%s0 + $0x8] sm:$0xff]
  %v23 = vld [vmem:[%s0 + $0x10] sm:$0xf]
  %v24 = vld [vmem:[%s0 + $0x14] sm:$0xff]
  %v25 = vld [vmem:[%s0 + $0x1c] sm:$0xff]
  %v26 = vld [vmem:[%s0 + $0x24] sm:$0xf]
  %v27 = vld [vmem:[%s0 + $0x28] sm:$0xff]
  %v28 = vld [vmem:[%s0 + $0x30] sm:$0xff]
  %v29 = vld [vmem:[%s0 + $0x38] sm:$0xf]
  %v30 = vld [vmem:[%s0 + $0x3c] sm:$0xff]
  %v31 = vld [vmem:[%s0 + $0x44] sm:$0xff]
  %v32 = vld [vmem:[%s0 + $0x4c] sm:$0xf]
  %v33 = vld [vmem:[%s0 + $0x50] sm:$0xff]
  %v34 = vld [vmem:[%s0 + $0x58] sm:$0xff]
  %v35 = vld [vmem:[%s0 + $0x60] sm:$0xf]
  %v36 = vld [vmem:[%s0 + $0x64] sm:$0xff]
  %v37 = vld [vmem:[%s0 + $0x6c] sm:$0xff]
  %v38 = vld [vmem:[%s0 + $0x74] sm:$0xf]
  %v39 = vld [vmem:[%s0 + $0x78] sm:$0xff]
  %v40 = vld [vmem:[%s0 + $0x80] sm:$0xff]
  %v41 = vld [vmem:[%s0 + $0x88] sm:$0xf]
  %v42 = vld [vmem:[%s0 + $0x8c] sm:$0xff]
  %v43 = vld [vmem:[%s0 + $0x94] sm:$0xff]
  %v44 = vld [vmem:[%s0 + $0x9c] sm:$0xf]
  %v45 = vld [vmem:[%s1] sm:$0xf]
  %v46 = vld [vmem:[%s1 + $0x4] sm:$0xf]
  %v47 = vld [vmem:[%s1 + $0x8] sm:$0xf]
  %v48 = vld [vmem:[%s1 + $0xc] sm:$0xf]
  %v49 = vld [vmem:[%s1 + $0x10] sm:$0xf]
  %v50 = vld [vmem:[%s1 + $0x14] sm:$0xf]
  %v51 = vld [vmem:[%s1 + $0x18] sm:$0xf]
  %v52 = vld [vmem:[%s1 + $0x1c] sm:$0xf]
  %v53 = vld [vmem:[%s1 + $0x20] sm:$0xf]
  %v54 = vld [vmem:[%s1 + $0x24] sm:$0xf]
  %v55 = vld [vmem:[%s1 + $0x28] sm:$0xf]
  %v56 = vld [vmem:[%s1 + $0x2c] sm:$0xf]
  %v57 = vld [vmem:[%s1 + $0x30] sm:$0xf]
  %v58 = vld [vmem:[%s1 + $0x34] sm:$0xf]
  %v59 = vld [vmem:[%s1 + $0x38] sm:$0xf]
  %v60 = vld [vmem:[%s1 + $0x3c] sm:$0xf]
  %v61 = vld [vmem:[%s1 + $0x40] sm:$0xf]
  %v62 = vld [vmem:[%s1 + $0x44] sm:$0xf]
  %v63 = vld [vmem:[%s1 + $0x48] sm:$0xf]
  %v64 = vld [vmem:[%s1 + $0x4c] sm:$0xf]
  %v65 = vld [vmem:[%s1 + $0x50] sm:$0xf]
  %v66 = vld [vmem:[%s1 + $0x54] sm:$0xf]
  %v67 = vld [vmem:[%s1 + $0x58] sm:$0xf]
  %v68 = vld [vmem:[%s1 + $0x5c] sm:$0xf]
  %v69 = vld [vmem:[%s1 + $0x60] sm:$0xf]
  %v70 = vld [vmem:[%s1 + $0x64] sm:$0xf]
  %v71 = vld [vmem:[%s1 + $0x68] sm:$0xf]
  %v72 = vld [vmem:[%s1 + $0x6c] sm:$0xf]
  %v73 = vld [vmem:[%s1 + $0x70] sm:$0xf]
  %v74 = vld [vmem:[%s1 + $0x74] sm:$0xf]
  %v75 = vld [vmem:[%s1 + $0x78] sm:$0xf]
  %v76 = vld [vmem:[%s1 + $0x7c] sm:$0xf]
  %v77 = vld [vmem:[%s1 + $0x80] sm:$0xf]
  %v78 = vld [vmem:[%s1 + $0x84] sm:$0xf]
  %v79 = vld [vmem:[%s1 + $0x88] sm:$0xf]
  %v80 = vld [vmem:[%s1 + $0x8c] sm:$0xf]
  %v81 = vld [vmem:[%s1 + $0x90] sm:$0xf]
  %v82 = vld [vmem:[%s1 + $0x94] sm:$0xf]
  %v83 = vld [vmem:[%s1 + $0x98] sm:$0xf]
  %v84 = vld [vmem:[%s1 + $0x9c] sm:$0xf]
  %v85 = vld [vmem:[%s1 + $0xa0] sm:$0xf]
  %v86 = vld [vmem:[%s1 + $0xa4] sm:$0xf]
  %v87 = vld [vmem:[%s1 + $0xa8] sm:$0xf]
  %v88 = vld [vmem:[%s1 + $0xac] sm:$0xf]
  %v89 = vld [vmem:[%s1 + $0xb0] sm:$0xf]
  %v90 = vld [vmem:[%s1 + $0xb4] sm:$0xf]
  %v91 = vld [vmem:[%s1 + $0xb8] sm:$0xf]
  %v92 = vld [vmem:[%s1 + $0xbc] sm:$0xf]
  %v93 = vld [vmem:[%s1 + $0xc0] sm:$0xf]
  %v94 = vld [vmem:[%s1 + $0xc4] sm:$0xf]
  %v95 = vld [vmem:[%s1 + $0xc8] sm:$0xf]
  %v96 = vld [vmem:[%s1 + $0xcc] sm:$0xf]
  %v97 = vld [vmem:[%s1 + $0xd0] sm:$0xf]
  %v98 = vld [vmem:[%s1 + $0xd4] sm:$0xf]
  %v99 = vld [vmem:[%s1 + $0xd8] sm:$0xf]
  %v100 = vld [vmem:[%s1 + $0xdc] sm:$0xf]
  %v101 = vld [vmem:[%s1 + $0xe0] sm:$0xf]
  %v102 = vld [vmem:[%s1 + $0xe4] sm:$0xf]
  %v103 = vld [vmem:[%s1 + $0xe8] sm:$0xf]
  %v104 = vld [vmem:[%s1 + $0xec] sm:$0xf]
  %v105 = vld [vmem:[%s1 + $0xf0] sm:$0xf]
  %v106 = vld [vmem:[%s1 + $0xf4] sm:$0xf]
  %v107 = vld [vmem:[%s1 + $0xf8] sm:$0xf]
  %v108 = vld [vmem:[%s1 + $0xfc] sm:$0xf]
  %v109 = vld [vmem:[%s1 + $0x100] sm:$0xf]
  %v110 = vld [vmem:[%s1 + $0x104] sm:$0xf]
  %v111 = vld [vmem:[%s1 + $0x108] sm:$0xf]
  %v112 = vld [vmem:[%s1 + $0x10c] sm:$0xf]
  %v113 = vld [vmem:[%s1 + $0x110] sm:$0xf]
  %v114 = vld [vmem:[%s1 + $0x114] sm:$0xf]
  %v115 = vld [vmem:[%s1 + $0x118] sm:$0xf]
  %v116 = vld [vmem:[%s1 + $0x11c] sm:$0xf]
  %v117 = vld [vmem:[%s1 + $0x120] sm:$0xf]
  %v118 = vld [vmem:[%s1 + $0x124] sm:$0xf]
  %v119 = vld [vmem:[%s1 + $0x128] sm:$0xf]
  %v120 = vld [vmem:[%s1 + $0x12c] sm:$0xf]
  %v121 = vld [vmem:[%s1 + $0x130] sm:$0xf]
  %v122 = vld [vmem:[%s1 + $0x134] sm:$0xf]
  %v123 = vld [vmem:[%s1 + $0x138] sm:$0xf]
  %v124 = vld [vmem:[%s1 + $0x13c] sm:$0xf]
  %v149 = vunpack.c.l.b16 %v21
  %v150 = vunpack.c.h.b16 %v21
  %v151 = vunpack.c.l.b16 %v22
  %v152 = vunpack.c.h.b16 %v22
  %v153 = vunpack.c.l.b16 %v23
  %v154 = vunpack.c.l.b16 %v24
  %v155 = vunpack.c.h.b16 %v24
  %v156 = vunpack.c.l.b16 %v25
  %v157 = vunpack.c.h.b16 %v25
  %v158 = vunpack.c.l.b16 %v26
  %v159 = vunpack.c.l.b16 %v27
  %v160 = vunpack.c.h.b16 %v27
  %v161 = vunpack.c.l.b16 %v28
  %v162 = vunpack.c.h.b16 %v28
  %v163 = vunpack.c.l.b16 %v29
  %v164 = vunpack.c.l.b16 %v30
  %v165 = vunpack.c.h.b16 %v30
  %v166 = vunpack.c.l.b16 %v31
  %v167 = vunpack.c.h.b16 %v31
  %v168 = vunpack.c.l.b16 %v32
  %v169 = vunpack.c.l.b16 %v33
  %v170 = vunpack.c.h.b16 %v33
  %v171 = vunpack.c.l.b16 %v34
  %v172 = vunpack.c.h.b16 %v34
  %v173 = vunpack.c.l.b16 %v35
  %v174 = vunpack.c.l.b16 %v36
  %v175 = vunpack.c.h.b16 %v36
  %v176 = vunpack.c.l.b16 %v37
  %v177 = vunpack.c.h.b16 %v37
  %v178 = vunpack.c.l.b16 %v38
  %v179 = vunpack.c.l.b16 %v39
  %v180 = vunpack.c.h.b16 %v39
  %v181 = vunpack.c.l.b16 %v40
  %v182 = vunpack.c.h.b16 %v40
  %v183 = vunpack.c.l.b16 %v41
  %v184 = vunpack.c.l.b16 %v42
  %v185 = vunpack.c.h.b16 %v42
  %v186 = vunpack.c.l.b16 %v43
  %v187 = vunpack.c.h.b16 %v43
  %v188 = vunpack.c.l.b16 %v44
  %v189 = vpack.c.b16 %v154, %v149
  %v190 = vpack.c.b16 %v155, %v150
  %v191 = vpack.c.b16 %v156, %v151
  %v192 = vpack.c.b16 %v157, %v152
  %v193 = vpack.c.b16 %v158, %v153
  %v194 = vpack.c.b16 %v164, %v159
  %v195 = vpack.c.b16 %v165, %v160
  %v196 = vpack.c.b16 %v166, %v161
  %v197 = vpack.c.b16 %v167, %v162
  %v198 = vpack.c.b16 %v168, %v163
  %v199 = vpack.c.b16 %v174, %v169
  %v200 = vpack.c.b16 %v175, %v170
  %v201 = vpack.c.b16 %v176, %v171
  %v202 = vpack.c.b16 %v177, %v172
  %v203 = vpack.c.b16 %v178, %v173
  %v204 = vpack.c.b16 %v184, %v179
  %v205 = vpack.c.b16 %v185, %v180
  %v206 = vpack.c.b16 %v186, %v181
  %v207 = vpack.c.b16 %v187, %v182
  %v208 = vpack.c.b16 %v188, %v183
  %v309 = vunpack.c.l.b16 %v45
  %v310 = vunpack.c.l.b16 %v46
  %v311 = vunpack.c.l.b16 %v47
  %v312 = vunpack.c.l.b16 %v48
  %v313 = vunpack.c.l.b16 %v49
  %v314 = vunpack.c.l.b16 %v50
  %v315 = vunpack.c.l.b16 %v51
  %v316 = vunpack.c.l.b16 %v52
  %v317 = vunpack.c.l.b16 %v53
  %v318 = vunpack.c.l.b16 %v54
  %v319 = vunpack.c.l.b16 %v55
  %v320 = vunpack.c.l.b16 %v56
  %v321 = vunpack.c.l.b16 %v57
  %v322 = vunpack.c.l.b16 %v58
  %v323 = vunpack.c.l.b16 %v59
  %v324 = vunpack.c.l.b16 %v60
  %v325 = vunpack.c.l.b16 %v61
  %v326 = vunpack.c.l.b16 %v62
  %v327 = vunpack.c.l.b16 %v63
  %v328 = vunpack.c.l.b16 %v64
  %v329 = vunpack.c.l.b16 %v65
  %v330 = vunpack.c.l.b16 %v66
  %v331 = vunpack.c.l.b16 %v67
  %v332 = vunpack.c.l.b16 %v68
  %v333 = vunpack.c.l.b16 %v69
  %v334 = vunpack.c.l.b16 %v70
  %v335 = vunpack.c.l.b16 %v71
  %v336 = vunpack.c.l.b16 %v72
  %v337 = vunpack.c.l.b16 %v73
  %v338 = vunpack.c.l.b16 %v74
  %v339 = vunpack.c.l.b16 %v75
  %v340 = vunpack.c.l.b16 %v76
  %v341 = vunpack.c.l.b16 %v77
  %v342 = vunpack.c.l.b16 %v78
  %v343 = vunpack.c.l.b16 %v79
  %v344 = vunpack.c.l.b16 %v80
  %v345 = vunpack.c.l.b16 %v81
  %v346 = vunpack.c.l.b16 %v82
  %v347 = vunpack.c.l.b16 %v83
  %v348 = vunpack.c.l.b16 %v84
  %v349 = vunpack.c.l.b16 %v85
  %v350 = vunpack.c.l.b16 %v86
  %v351 = vunpack.c.l.b16 %v87
  %v352 = vunpack.c.l.b16 %v88
  %v353 = vunpack.c.l.b16 %v89
  %v354 = vunpack.c.l.b16 %v90
  %v355 = vunpack.c.l.b16 %v91
  %v356 = vunpack.c.l.b16 %v92
  %v357 = vunpack.c.l.b16 %v93
  %v358 = vunpack.c.l.b16 %v94
  %v359 = vunpack.c.l.b16 %v95
  %v360 = vunpack.c.l.b16 %v96
  %v361 = vunpack.c.l.b16 %v97
  %v362 = vunpack.c.l.b16 %v98
  %v363 = vunpack.c.l.b16 %v99
  %v364 = vunpack.c.l.b16 %v100
  %v365 = vunpack.c.l.b16 %v101
  %v366 = vunpack.c.l.b16 %v102
  %v367 = vunpack.c.l.b16 %v103
  %v368 = vunpack.c.l.b16 %v104
  %v369 = vunpack.c.l.b16 %v105
  %v370 = vunpack.c.l.b16 %v106
  %v371 = vunpack.c.l.b16 %v107
  %v372 = vunpack.c.l.b16 %v108
  %v373 = vunpack.c.l.b16 %v109
  %v374 = vunpack.c.l.b16 %v110
  %v375 = vunpack.c.l.b16 %v111
  %v376 = vunpack.c.l.b16 %v112
  %v377 = vunpack.c.l.b16 %v113
  %v378 = vunpack.c.l.b16 %v114
  %v379 = vunpack.c.l.b16 %v115
  %v380 = vunpack.c.l.b16 %v116
  %v381 = vunpack.c.l.b16 %v117
  %v382 = vunpack.c.l.b16 %v118
  %v383 = vunpack.c.l.b16 %v119
  %v384 = vunpack.c.l.b16 %v120
  %v385 = vunpack.c.l.b16 %v121
  %v386 = vunpack.c.l.b16 %v122
  %v387 = vunpack.c.l.b16 %v123
  %v388 = vunpack.c.l.b16 %v124
  %v389 = vpack.c.b16 %v310, %v309
  %v390 = vpack.c.b16 %v312, %v311
  %v391 = vpack.c.b16 %v314, %v313
  %v392 = vpack.c.b16 %v316, %v315
  %v393 = vpack.c.b16 %v318, %v317
  %v394 = vpack.c.b16 %v320, %v319
  %v395 = vpack.c.b16 %v322, %v321
  %v396 = vpack.c.b16 %v324, %v323
  %v397 = vpack.c.b16 %v326, %v325
  %v398 = vpack.c.b16 %v328, %v327
  %v399 = vpack.c.b16 %v330, %v329
  %v400 = vpack.c.b16 %v332, %v331
  %v401 = vpack.c.b16 %v334, %v333
  %v402 = vpack.c.b16 %v336, %v335
  %v403 = vpack.c.b16 %v338, %v337
  %v404 = vpack.c.b16 %v340, %v339
  %v405 = vpack.c.b16 %v342, %v341
  %v406 = vpack.c.b16 %v344, %v343
  %v407 = vpack.c.b16 %v346, %v345
  %v408 = vpack.c.b16 %v348, %v347
  %v409 = vpack.c.b16 %v350, %v349
  %v410 = vpack.c.b16 %v352, %v351
  %v411 = vpack.c.b16 %v354, %v353
  %v412 = vpack.c.b16 %v356, %v355
  %v413 = vpack.c.b16 %v358, %v357
  %v414 = vpack.c.b16 %v360, %v359
  %v415 = vpack.c.b16 %v362, %v361
  %v416 = vpack.c.b16 %v364, %v363
  %v417 = vpack.c.b16 %v366, %v365
  %v418 = vpack.c.b16 %v368, %v367
  %v419 = vpack.c.b16 %v370, %v369
  %v420 = vpack.c.b16 %v372, %v371
  %v421 = vpack.c.b16 %v374, %v373
  %v422 = vpack.c.b16 %v376, %v375
  %v423 = vpack.c.b16 %v378, %v377
  %v424 = vpack.c.b16 %v380, %v379
  %v425 = vpack.c.b16 %v382, %v381
  %v426 = vpack.c.b16 %v384, %v383
  %v427 = vpack.c.b16 %v386, %v385
  %v428 = vpack.c.b16 %v388, %v387
  %469 = vmatprep.subr.bf16.mxu0 0
  %470 = vmatpush1.bf16.msra.mxu0 %v389
  %471 = vmatprep.subr.bf16.mxu0 0
  %472 = vmatpush1.bf16.msra.mxu0 %v390
  %473 = vmatprep.subr.bf16.mxu0 0
  %474 = vmatpush1.bf16.msra.mxu0 %v391
  %475 = vmatprep.subr.bf16.mxu0 0
  %476 = vmatpush1.bf16.msra.mxu0 %v392
  %477 = vmatprep.subr.bf16.mxu0 0
  %478 = vmatpush1.bf16.msra.mxu0 %v393
  %479 = vmatprep.subr.bf16.mxu0 0
  %480 = vmatpush1.bf16.msra.mxu0 %v394
  %481 = vmatprep.subr.bf16.mxu0 0
  %482 = vmatpush1.bf16.msra.mxu0 %v395
  %483 = vmatprep.subr.bf16.mxu0 0
  %484 = vmatpush1.bf16.msra.mxu0 %v396
  %485 = vmatprep.subr.bf16.mxu0 0
  %486 = vmatpush1.bf16.msra.mxu0 %v397
  %487 = vmatprep.subr.bf16.mxu0 0
  %488 = vmatpush1.bf16.msra.mxu0 %v398
  %489 = vmatprep.subr.bf16.mxu0 0
  %490 = vmatpush1.bf16.msra.mxu0 %v399
  %491 = vmatprep.subr.bf16.mxu0 0
  %492 = vmatpush1.bf16.msra.mxu0 %v400
  %493 = vmatprep.subr.bf16.mxu0 0
  %494 = vmatpush1.bf16.msra.mxu0 %v401
  %495 = vmatprep.subr.bf16.mxu0 0
  %496 = vmatpush1.bf16.msra.mxu0 %v402
  %497 = vmatprep.subr.bf16.mxu0 0
  %498 = vmatpush1.bf16.msra.mxu0 %v403
  %499 = vmatprep.subr.bf16.mxu0 0
  %500 = vmatpush1.bf16.msra.mxu0 %v404
  %501 = vmatprep.mubr.bf16.mxu0 %v190
  %502 = vmatmul.mubr.bf16.gmra.mrb[0].mxu0 %v189
  %v503 = vpop.f32.mrb[0].mxu0
  %v504 = vadd.f32 0.0, %v503
  %v505 = vpop.f32.mrb[0].mxu0
  %v506 = vpop.f32.mrb[0].mxu0
  %v507 = vadd.f32 0.0, %v506
  %v508 = vpop.f32.mrb[0].mxu0
  %509 = vmatprep.mubr.bf16.mxu0 %v195
  %510 = vmatmul.mubr.bf16.gmra.mrb[0].mxu0 %v194
  %v511 = vpop.f32.mrb[0].mxu0
  %v512 = vadd.f32 0.0, %v511
  %v513 = vpop.f32.mrb[0].mxu0
  %v514 = vpop.f32.mrb[0].mxu0
  %v515 = vadd.f32 0.0, %v514
  %v516 = vpop.f32.mrb[0].mxu0
  %517 = vmatprep.mubr.bf16.mxu0 %v200
  %518 = vmatmul.mubr.bf16.gmra.mrb[0].mxu0 %v199
  %v519 = vpop.f32.mrb[0].mxu0
  %v520 = vadd.f32 0.0, %v519
  %v521 = vpop.f32.mrb[0].mxu0
  %v522 = vpop.f32.mrb[0].mxu0
  %v523 = vadd.f32 0.0, %v522
  %v524 = vpop.f32.mrb[0].mxu0
  %525 = vmatprep.mubr.bf16.mxu0 %v205
  %526 = vmatmul.mubr.bf16.gmra.mrb[0].mxu0 %v204
  %v527 = vpop.f32.mrb[0].mxu0
  %v528 = vadd.f32 0.0, %v527
  %v529 = vpop.f32.mrb[0].mxu0
  %v530 = vpop.f32.mrb[0].mxu0
  %v531 = vadd.f32 0.0, %v530
  %v532 = vpop.f32.mrb[0].mxu0
  %533 = vdwg.mxu0
  %534 = vmatprep.subr.bf16.mxu0 0
  %535 = vmatpush1.bf16.msra.mxu0 %v405
  %536 = vmatprep.subr.bf16.mxu0 0
  %537 = vmatpush1.bf16.msra.mxu0 %v406
  %538 = vmatprep.subr.bf16.mxu0 0
  %539 = vmatpush1.bf16.msra.mxu0 %v407
  %540 = vmatprep.subr.bf16.mxu0 0
  %541 = vmatpush1.bf16.msra.mxu0 %v408
  %542 = vmatprep.subr.bf16.mxu0 0
  %543 = vmatpush1.bf16.msra.mxu0 %v409
  %544 = vmatprep.subr.bf16.mxu0 0
  %545 = vmatpush1.bf16.msra.mxu0 %v410
  %546 = vmatprep.subr.bf16.mxu0 0
  %547 = vmatpush1.bf16.msra.mxu0 %v411
  %548 = vmatprep.subr.bf16.mxu0 0
  %549 = vmatpush1.bf16.msra.mxu0 %v412
  %550 = vmatprep.subr.bf16.mxu0 0
  %551 = vmatpush1.bf16.msra.mxu0 %v413
  %552 = vmatprep.subr.bf16.mxu0 0
  %553 = vmatpush1.bf16.msra.mxu0 %v414
  %554 = vmatprep.subr.bf16.mxu0 0
  %555 = vmatpush1.bf16.msra.mxu0 %v415
  %556 = vmatprep.subr.bf16.mxu0 0
  %557 = vmatpush1.bf16.msra.mxu0 %v416
  %558 = vmatprep.subr.bf16.mxu0 0
  %559 = vmatpush1.bf16.msra.mxu0 %v417
  %560 = vmatprep.subr.bf16.mxu0 0
  %561 = vmatpush1.bf16.msra.mxu0 %v418
  %562 = vmatprep.subr.bf16.mxu0 0
  %563 = vmatpush1.bf16.msra.mxu0 %v419
  %564 = vmatprep.subr.bf16.mxu0 0
  %565 = vmatpush1.bf16.msra.mxu0 %v420
  %566 = vmatprep.mubr.bf16.mxu0 %v192
  %567 = vmatmul.mubr.bf16.gmra.mrb[0].mxu0 %v191
  %v568 = vpop.f32.mrb[0].mxu0
  %v569 = vadd.f32 %v504, %v568
  %v570 = vpop.f32.mrb[0].mxu0
  %v571 = vpop.f32.mrb[0].mxu0
  %v572 = vadd.f32 %v507, %v571
  %v573 = vpop.f32.mrb[0].mxu0
  %574 = vmatprep.mubr.bf16.mxu0 %v197
  %575 = vmatmul.mubr.bf16.gmra.mrb[0].mxu0 %v196
  %v576 = vpop.f32.mrb[0].mxu0
  %v577 = vadd.f32 %v512, %v576
  %v578 = vpop.f32.mrb[0].mxu0
  %v579 = vpop.f32.mrb[0].mxu0
  %v580 = vadd.f32 %v515, %v579
  %v581 = vpop.f32.mrb[0].mxu0
  %582 = vmatprep.mubr.bf16.mxu0 %v202
  %583 = vmatmul.mubr.bf16.gmra.mrb[0].mxu0 %v201
  %v584 = vpop.f32.mrb[0].mxu0
  %v585 = vadd.f32 %v520, %v584
  %v586 = vpop.f32.mrb[0].mxu0
  %v587 = vpop.f32.mrb[0].mxu0
  %v588 = vadd.f32 %v523, %v587
  %v589 = vpop.f32.mrb[0].mxu0
  %590 = vmatprep.mubr.bf16.mxu0 %v207
  %591 = vmatmul.mubr.bf16.gmra.mrb[0].mxu0 %v206
  %v592 = vpop.f32.mrb[0].mxu0
  %v593 = vadd.f32 %v528, %v592
  %v594 = vpop.f32.mrb[0].mxu0
  %v595 = vpop.f32.mrb[0].mxu0
  %v596 = vadd.f32 %v531, %v595
  %v597 = vpop.f32.mrb[0].mxu0
  %598 = vdwg.mxu0
  %599 = vmatprep.subr.bf16.mxu0 0
  %600 = vmatpush1.bf16.msra.mxu0 %v421
  %601 = vmatprep.subr.bf16.mxu0 0
  %602 = vmatpush1.bf16.msra.mxu0 %v422
  %603 = vmatprep.subr.bf16.mxu0 0
  %604 = vmatpush1.bf16.msra.mxu0 %v423
  %605 = vmatprep.subr.bf16.mxu0 0
  %606 = vmatpush1.bf16.msra.mxu0 %v424
  %607 = vmatprep.subr.bf16.mxu0 0
  %608 = vmatpush1.bf16.msra.mxu0 %v425
  %609 = vmatprep.subr.bf16.mxu0 0
  %610 = vmatpush1.bf16.msra.mxu0 %v426
  %611 = vmatprep.subr.bf16.mxu0 0
  %612 = vmatpush1.bf16.msra.mxu0 %v427
  %613 = vmatprep.subr.bf16.mxu0 0
  %614 = vmatpush1.bf16.msra.mxu0 %v428
  %615 = vmatprep.subr.bf16.mxu0 0
  %616 = vmatpush1.bf16.msra.mxu0 0
  %617 = vmatprep.subr.bf16.mxu0 0
  %618 = vmatpush1.bf16.msra.mxu0 0
  %619 = vmatprep.subr.bf16.mxu0 0
  %620 = vmatpush1.bf16.msra.mxu0 0
  %621 = vmatprep.subr.bf16.mxu0 0
  %622 = vmatpush1.bf16.msra.mxu0 0
  %623 = vmatprep.subr.bf16.mxu0 0
  %624 = vmatpush1.bf16.msra.mxu0 0
  %625 = vmatprep.subr.bf16.mxu0 0
  %626 = vmatpush1.bf16.msra.mxu0 0
  %627 = vmatprep.subr.bf16.mxu0 0
  %628 = vmatpush1.bf16.msra.mxu0 0
  %629 = vmatprep.subr.bf16.mxu0 0
  %630 = vmatpush1.bf16.msra.mxu0 0
  %631 = vmatprep.mubr.bf16.mxu0 0
  %632 = vmatmul.mubr.bf16.gmra.mrb[0].mxu0 %v193
  %v633 = vpop.f32.mrb[0].mxu0
  %v634 = vadd.f32 %v569, %v633
  %v635 = vpop.f32.mrb[0].mxu0
  %v636 = vpop.f32.mrb[0].mxu0
  %v637 = vadd.f32 %v572, %v636
  %v638 = vpop.f32.mrb[0].mxu0
  %639 = vmatprep.mubr.bf16.mxu0 0
  %640 = vmatmul.mubr.bf16.gmra.mrb[0].mxu0 %v198
  %v641 = vpop.f32.mrb[0].mxu0
  %v642 = vadd.f32 %v577, %v641
  %v643 = vpop.f32.mrb[0].mxu0
  %v644 = vpop.f32.mrb[0].mxu0
  %v645 = vadd.f32 %v580, %v644
  %v646 = vpop.f32.mrb[0].mxu0
  %647 = vmatprep.mubr.bf16.mxu0 0
  %648 = vmatmul.mubr.bf16.gmra.mrb[0].mxu0 %v203
  %v649 = vpop.f32.mrb[0].mxu0
  %v650 = vadd.f32 %v585, %v649
  %v651 = vpop.f32.mrb[0].mxu0
  %v652 = vpop.f32.mrb[0].mxu0
  %v653 = vadd.f32 %v588, %v652
  %v654 = vpop.f32.mrb[0].mxu0
  %655 = vmatprep.mubr.bf16.mxu0 0
  %656 = vmatmul.mubr.bf16.gmra.mrb[0].mxu0 %v208
  %v657 = vpop.f32.mrb[0].mxu0
  %v658 = vadd.f32 %v593, %v657
  %v659 = vpop.f32.mrb[0].mxu0
  %v660 = vpop.f32.mrb[0].mxu0
  %v661 = vadd.f32 %v596, %v660
  %v662 = vpop.f32.mrb[0].mxu0
  %663 = vdwg.mxu0
  %v664 = vld [vmem:[%s2] sm:$0xff]
  %v665 = vld [vmem:[%s2 + $0x8] sm:$0xff]
  %v666 = vld [vmem:[%s2 + $0x10] sm:$0xff]
  %v667 = vld [vmem:[%s2 + $0x18] sm:$0xff]
  %v668 = vld [vmem:[%s2 + $0x20] sm:$0xff]
  %v669 = vld [vmem:[%s2 + $0x28] sm:$0xff]
  %v670 = vld [vmem:[%s2 + $0x30] sm:$0xff]
  %v671 = vld [vmem:[%s2 + $0x38] sm:$0xff]
  %673 = vset.pattern.permute.xlu0 0
  %674 = vperm.xlu0 %673, %v664
  %v675 = vpop.permute.xlu0 %674
  %678 = vset.pattern.permute.xlu0 0
  %679 = vperm.xlu0 %678, %v665
  %v680 = vpop.permute.xlu0 %679
  %683 = vset.pattern.permute.xlu0 0
  %684 = vperm.xlu0 %683, %v666
  %v685 = vpop.permute.xlu0 %684
  %688 = vset.pattern.permute.xlu0 0
  %689 = vperm.xlu0 %688, %v667
  %v690 = vpop.permute.xlu0 %689
  %693 = vset.pattern.permute.xlu0 0
  %694 = vperm.xlu0 %693, %v668
  %v695 = vpop.permute.xlu0 %694
  %698 = vset.pattern.permute.xlu0 0
  %699 = vperm.xlu0 %698, %v669
  %v700 = vpop.permute.xlu0 %699
  %703 = vset.pattern.permute.xlu0 0
  %704 = vperm.xlu0 %703, %v670
  %v705 = vpop.permute.xlu0 %704
  %708 = vset.pattern.permute.xlu0 0
  %709 = vperm.xlu0 %708, %v671
  %v710 = vpop.permute.xlu0 %709
  %v712 = vmul.f32 %v634, %v675
  %v713 = vmul.f32 %v637, %v680
  %v714 = vmul.f32 %v642, %v685
  %v715 = vmul.f32 %v645, %v690
  %v716 = vmul.f32 %v650, %v695
  %v717 = vmul.f32 %v653, %v700
  %v718 = vmul.f32 %v658, %v705
  %v719 = vmul.f32 %v661, %v710
  %v720 = vld [vmem:[%s3] sm:$0xff]
  %v721 = vld [vmem:[%s3 + $0x8] sm:$0xff]
  %v722 = vld [vmem:[%s3 + $0x10] sm:$0xff]
  %v723 = vld [vmem:[%s3 + $0x18] sm:$0xff]
  %v724 = vld [vmem:[%s3 + $0x20] sm:$0xff]
  %v725 = vld [vmem:[%s3 + $0x28] sm:$0xff]
  %v726 = vld [vmem:[%s3 + $0x30] sm:$0xff]
  %v727 = vld [vmem:[%s3 + $0x38] sm:$0xff]
  %729 = vset.pattern.permute.xlu0 0
  %730 = vperm.xlu0 %729, %v720
  %v731 = vpop.permute.xlu0 %730
  %734 = vset.pattern.permute.xlu0 0
  %735 = vperm.xlu0 %734, %v721
  %v736 = vpop.permute.xlu0 %735
  %739 = vset.pattern.permute.xlu0 0
  %740 = vperm.xlu0 %739, %v722
  %v741 = vpop.permute.xlu0 %740
  %744 = vset.pattern.permute.xlu0 0
  %745 = vperm.xlu0 %744, %v723
  %v746 = vpop.permute.xlu0 %745
  %749 = vset.pattern.permute.xlu0 0
  %750 = vperm.xlu0 %749, %v724
  %v751 = vpop.permute.xlu0 %750
  %754 = vset.pattern.permute.xlu0 0
  %755 = vperm.xlu0 %754, %v725
  %v756 = vpop.permute.xlu0 %755
  %759 = vset.pattern.permute.xlu0 0
  %760 = vperm.xlu0 %759, %v726
  %v761 = vpop.permute.xlu0 %760
  %764 = vset.pattern.permute.xlu0 0
  %765 = vperm.xlu0 %764, %v727
  %v766 = vpop.permute.xlu0 %765
  %v768 = vadd.f32 %v712, %v731
  %v769 = vadd.f32 %v713, %v736
  %v770 = vadd.f32 %v714, %v741
  %v771 = vadd.f32 %v715, %v746
  %v772 = vadd.f32 %v716, %v751
  %v773 = vadd.f32 %v717, %v756
  %v774 = vadd.f32 %v718, %v761
  %v775 = vadd.f32 %v719, %v766
  %v776 = vld [vmem:[%s4] sm:$0xff]
  %v777 = vld [vmem:[%s4 + $0x8] sm:$0xff]
  %v778 = vld [vmem:[%s4 + $0x10] sm:$0xff]
  %v779 = vld [vmem:[%s4 + $0x18] sm:$0xff]
  %v780 = vld [vmem:[%s4 + $0x20] sm:$0xff]
  %v781 = vld [vmem:[%s4 + $0x28] sm:$0xff]
  %v782 = vld [vmem:[%s4 + $0x30] sm:$0xff]
  %v783 = vld [vmem:[%s4 + $0x38] sm:$0xff]
  %v784 = vadd.f32 %v768, %v776
  %v785 = vadd.f32 %v769, %v777
  %v786 = vadd.f32 %v770, %v778
  %v787 = vadd.f32 %v771, %v779
  %v788 = vadd.f32 %v772, %v780
  %v789 = vadd.f32 %v773, %v781
  %v790 = vadd.f32 %v774, %v782
  %v791 = vadd.f32 %v775, %v783
  %v792 = vmax.f32 %v784, 0.0
  %v793 = vmax.f32 %v785, 0.0
  %v794 = vmax.f32 %v786, 0.0
  %v795 = vmax.f32 %v787, 0.0
  %v796 = vmax.f32 %v788, 0.0
  %v797 = vmax.f32 %v789, 0.0
  %v798 = vmax.f32 %v790, 0.0
  %v799 = vmax.f32 %v791, 0.0
  %800 = vst [vmem:[%s5] sm:$0xff] %v792
  %801 = vst [vmem:[%s5 + $0x8] sm:$0xff] %v793
  %802 = vst [vmem:[%s5 + $0x10] sm:$0xff] %v794
  %803 = vst [vmem:[%s5 + $0x18] sm:$0xff] %v795
  %804 = vst [vmem:[%s5 + $0x20] sm:$0xff] %v796
  %805 = vst [vmem:[%s5 + $0x28] sm:$0xff] %v797
  %806 = vst [vmem:[%s5 + $0x30] sm:$0xff] %v798
  %807 = vst [vmem:[%s5 + $0x38] sm:$0xff] %v799
  // Predicated region
  $region22: #{_lambda_.39} parent=0 // pred_check
    _
  $region23: #{_lambda_.39} parent=0 // pred_check_branch
    %809 = sbr.rel (0) target = $region25
  $region24: #{_lambda_.39} parent=0 // pred_region
    _
  $region25: #{_lambda_.39} parent=0 // pred_fallthru
    _
  // Predicated region
  $region26: #{_lambda_.39} parent=0 // pred_check
    _
  $region27: #{_lambda_.39} parent=0 // pred_check_branch
    %811 = sbr.rel (0) target = $region29
  $region28: #{_lambda_.39} parent=0 // pred_region
    _
  $region29: #{_lambda_.39} parent=0 // pred_fallthru
    _

// kernel: _lambda_.40
$region0: #{_lambda_.40}
  #allocation0 [shape = 'u32[]', space=smem, size = 0x4, offset = 0x4, fixed_abs, tag = 'smem constant byte address 0x4 - core index']
  #allocation1 [shape = 'u32[144,128]{1,0:T(1,128)}', space=vmem, size = 0x12000, scoped, tag = 'internal scratch']
  %s0 = inlined_call_operand.vmem [shape: bf16[64,640], index: 0, kind: input, shape index: {}]
  %s1 = inlined_call_operand.vmem [shape: bf16[640,128], index: 1, kind: input, shape index: {}]
  %s2 = inlined_call_operand.vmem [shape: f32[64,1], index: 2, kind: input, shape index: {}]
  %s3 = inlined_call_operand.vmem [shape: f32[64,1], index: 3, kind: input, shape index: {}]
  %s4 = inlined_call_operand.vmem [shape: f32[64,128], index: 4, kind: output, shape index: {}]
  %s5 = sld [smem:[#allocation0]]
  $region26: #{_lambda_.40} parent=0
    _
  %s7 = ssub.s32 1, %s5
  %s8 = scalar_select 0, %s7, %s5
  // Predicated region
  $region2: #{_lambda_.40} parent=0 // pred_check
    _
  $region3: #{_lambda_.40} parent=0 // pred_check_branch
    %10 = sbr.rel (0) target = $region5
  $region4: #{_lambda_.40} parent=0 // pred_region
    _
  $region5: #{_lambda_.40} parent=0 // pred_fallthru
    _
  // Predicated region
  $region6: #{_lambda_.40} parent=0 // pred_check
    _
  $region7: #{_lambda_.40} parent=0 // pred_check_branch
    %12 = sbr.rel (0) target = $region9
  $region8: #{_lambda_.40} parent=0 // pred_region
    _
  $region9: #{_lambda_.40} parent=0 // pred_fallthru
    _
  // Predicated region
  $region10: #{_lambda_.40} parent=0 // pred_check
    _
  $region11: #{_lambda_.40} parent=0 // pred_check_branch
    %14 = sbr.rel (0) target = $region13
  $region12: #{_lambda_.40} parent=0 // pred_region
    _
  $region13: #{_lambda_.40} parent=0 // pred_fallthru
    _
  // Predicated region
  $region14: #{_lambda_.40} parent=0 // pred_check
    _
  $region15: #{_lambda_.40} parent=0 // pred_check_branch
    %16 = sbr.rel (0) target = $region17
  $region16: #{_lambda_.40} parent=0 // pred_region
    _
  $region17: #{_lambda_.40} parent=0 // pred_fallthru
    _
  %v18 = vld [vmem:[%s0] sm:$0xff]
  %v19 = vld [vmem:[%s0 + $0x8] sm:$0xff]
  %v20 = vld [vmem:[%s0 + $0x10] sm:$0xf]
  %v21 = vld [vmem:[%s0 + $0x14] sm:$0xff]
  %v22 = vld [vmem:[%s0 + $0x1c] sm:$0xff]
  %v23 = vld [vmem:[%s0 + $0x24] sm:$0xf]
  %v24 = vld [vmem:[%s0 + $0x28] sm:$0xff]
  %v25 = vld [vmem:[%s0 + $0x30] sm:$0xff]
  %v26 = vld [vmem:[%s0 + $0x38] sm:$0xf]
  %v27 = vld [vmem:[%s0 + $0x3c] sm:$0xff]
  %v28 = vld [vmem:[%s0 + $0x44] sm:$0xff]
  %v29 = vld [vmem:[%s0 + $0x4c] sm:$0xf]
  %v30 = vld [vmem:[%s0 + $0x50] sm:$0xff]
  %v31 = vld [vmem:[%s0 + $0x58] sm:$0xff]
  %v32 = vld [vmem:[%s0 + $0x60] sm:$0xf]
  %v33 = vld [vmem:[%s0 + $0x64] sm:$0xff]
  %v34 = vld [vmem:[%s0 + $0x6c] sm:$0xff]
  %v35 = vld [vmem:[%s0 + $0x74] sm:$0xf]
  %v36 = vld [vmem:[%s0 + $0x78] sm:$0xff]
  %v37 = vld [vmem:[%s0 + $0x80] sm:$0xff]
  %v38 = vld [vmem:[%s0 + $0x88] sm:$0xf]
  %v39 = vld [vmem:[%s0 + $0x8c] sm:$0xff]
  %v40 = vld [vmem:[%s0 + $0x94] sm:$0xff]
  %v41 = vld [vmem:[%s0 + $0x9c] sm:$0xf]
  %v42 = vld [vmem:[%s1] sm:$0xf]
  %v43 = vld [vmem:[%s1 + $0x4] sm:$0xf]
  %v44 = vld [vmem:[%s1 + $0x8] sm:$0xf]
  %v45 = vld [vmem:[%s1 + $0xc] sm:$0xf]
  %v46 = vld [vmem:[%s1 + $0x10] sm:$0xf]
  %v47 = vld [vmem:[%s1 + $0x14] sm:$0xf]
  %v48 = vld [vmem:[%s1 + $0x18] sm:$0xf]
  %v49 = vld [vmem:[%s1 + $0x1c] sm:$0xf]
  %v50 = vld [vmem:[%s1 + $0x20] sm:$0xf]
  %v51 = vld [vmem:[%s1 + $0x24] sm:$0xf]
  %v52 = vld [vmem:[%s1 + $0x28] sm:$0xf]
  %v53 = vld [vmem:[%s1 + $0x2c] sm:$0xf]
  %v54 = vld [vmem:[%s1 + $0x30] sm:$0xf]
  %v55 = vld [vmem:[%s1 + $0x34] sm:$0xf]
  %v56 = vld [vmem:[%s1 + $0x38] sm:$0xf]
  %v57 = vld [vmem:[%s1 + $0x3c] sm:$0xf]
  %v58 = vld [vmem:[%s1 + $0x40] sm:$0xf]
  %v59 = vld [vmem:[%s1 + $0x44] sm:$0xf]
  %v60 = vld [vmem:[%s1 + $0x48] sm:$0xf]
  %v61 = vld [vmem:[%s1 + $0x4c] sm:$0xf]
  %v62 = vld [vmem:[%s1 + $0x50] sm:$0xf]
  %v63 = vld [vmem:[%s1 + $0x54] sm:$0xf]
  %v64 = vld [vmem:[%s1 + $0x58] sm:$0xf]
  %v65 = vld [vmem:[%s1 + $0x5c] sm:$0xf]
  %v66 = vld [vmem:[%s1 + $0x60] sm:$0xf]
  %v67 = vld [vmem:[%s1 + $0x64] sm:$0xf]
  %v68 = vld [vmem:[%s1 + $0x68] sm:$0xf]
  %v69 = vld [vmem:[%s1 + $0x6c] sm:$0xf]
  %v70 = vld [vmem:[%s1 + $0x70] sm:$0xf]
  %v71 = vld [vmem:[%s1 + $0x74] sm:$0xf]
  %v72 = vld [vmem:[%s1 + $0x78] sm:$0xf]
  %v73 = vld [vmem:[%s1 + $0x7c] sm:$0xf]
  %v74 = vld [vmem:[%s1 + $0x80] sm:$0xf]
  %v75 = vld [vmem:[%s1 + $0x84] sm:$0xf]
  %v76 = vld [vmem:[%s1 + $0x88] sm:$0xf]
  %v77 = vld [vmem:[%s1 + $0x8c] sm:$0xf]
  %v78 = vld [vmem:[%s1 + $0x90] sm:$0xf]
  %v79 = vld [vmem:[%s1 + $0x94] sm:$0xf]
  %v80 = vld [vmem:[%s1 + $0x98] sm:$0xf]
  %v81 = vld [vmem:[%s1 + $0x9c] sm:$0xf]
  %v82 = vld [vmem:[%s1 + $0xa0] sm:$0xf]
  %v83 = vld [vmem:[%s1 + $0xa4] sm:$0xf]
  %v84 = vld [vmem:[%s1 + $0xa8] sm:$0xf]
  %v85 = vld [vmem:[%s1 + $0xac] sm:$0xf]
  %v86 = vld [vmem:[%s1 + $0xb0] sm:$0xf]
  %v87 = vld [vmem:[%s1 + $0xb4] sm:$0xf]
  %v88 = vld [vmem:[%s1 + $0xb8] sm:$0xf]
  %v89 = vld [vmem:[%s1 + $0xbc] sm:$0xf]
  %v90 = vld [vmem:[%s1 + $0xc0] sm:$0xf]
  %v91 = vld [vmem:[%s1 + $0xc4] sm:$0xf]
  %v92 = vld [vmem:[%s1 + $0xc8] sm:$0xf]
  %v93 = vld [vmem:[%s1 + $0xcc] sm:$0xf]
  %v94 = vld [vmem:[%s1 + $0xd0] sm:$0xf]
  %v95 = vld [vmem:[%s1 + $0xd4] sm:$0xf]
  %v96 = vld [vmem:[%s1 + $0xd8] sm:$0xf]
  %v97 = vld [vmem:[%s1 + $0xdc] sm:$0xf]
  %v98 = vld [vmem:[%s1 + $0xe0] sm:$0xf]
  %v99 = vld [vmem:[%s1 + $0xe4] sm:$0xf]
  %v100 = vld [vmem:[%s1 + $0xe8] sm:$0xf]
  %v101 = vld [vmem:[%s1 + $0xec] sm:$0xf]
  %v102 = vld [vmem:[%s1 + $0xf0] sm:$0xf]
  %v103 = vld [vmem:[%s1 + $0xf4] sm:$0xf]
  %v104 = vld [vmem:[%s1 + $0xf8] sm:$0xf]
  %v105 = vld [vmem:[%s1 + $0xfc] sm:$0xf]
  %v106 = vld [vmem:[%s1 + $0x100] sm:$0xf]
  %v107 = vld [vmem:[%s1 + $0x104] sm:$0xf]
  %v108 = vld [vmem:[%s1 + $0x108] sm:$0xf]
  %v109 = vld [vmem:[%s1 + $0x10c] sm:$0xf]
  %v110 = vld [vmem:[%s1 + $0x110] sm:$0xf]
  %v111 = vld [vmem:[%s1 + $0x114] sm:$0xf]
  %v112 = vld [vmem:[%s1 + $0x118] sm:$0xf]
  %v113 = vld [vmem:[%s1 + $0x11c] sm:$0xf]
  %v114 = vld [vmem:[%s1 + $0x120] sm:$0xf]
  %v115 = vld [vmem:[%s1 + $0x124] sm:$0xf]
  %v116 = vld [vmem:[%s1 + $0x128] sm:$0xf]
  %v117 = vld [vmem:[%s1 + $0x12c] sm:$0xf]
  %v118 = vld [vmem:[%s1 + $0x130] sm:$0xf]
  %v119 = vld [vmem:[%s1 + $0x134] sm:$0xf]
  %v120 = vld [vmem:[%s1 + $0x138] sm:$0xf]
  %v121 = vld [vmem:[%s1 + $0x13c] sm:$0xf]
  %v146 = vunpack.c.l.b16 %v18
  %v147 = vunpack.c.h.b16 %v18
  %v148 = vunpack.c.l.b16 %v19
  %v149 = vunpack.c.h.b16 %v19
  %v150 = vunpack.c.l.b16 %v20
  %v151 = vunpack.c.l.b16 %v21
  %v152 = vunpack.c.h.b16 %v21
  %v153 = vunpack.c.l.b16 %v22
  %v154 = vunpack.c.h.b16 %v22
  %v155 = vunpack.c.l.b16 %v23
  %v156 = vunpack.c.l.b16 %v24
  %v157 = vunpack.c.h.b16 %v24
  %v158 = vunpack.c.l.b16 %v25
  %v159 = vunpack.c.h.b16 %v25
  %v160 = vunpack.c.l.b16 %v26
  %v161 = vunpack.c.l.b16 %v27
  %v162 = vunpack.c.h.b16 %v27
  %v163 = vunpack.c.l.b16 %v28
  %v164 = vunpack.c.h.b16 %v28
  %v165 = vunpack.c.l.b16 %v29
  %v166 = vunpack.c.l.b16 %v30
  %v167 = vunpack.c.h.b16 %v30
  %v168 = vunpack.c.l.b16 %v31
  %v169 = vunpack.c.h.b16 %v31
  %v170 = vunpack.c.l.b16 %v32
  %v171 = vunpack.c.l.b16 %v33
  %v172 = vunpack.c.h.b16 %v33
  %v173 = vunpack.c.l.b16 %v34
  %v174 = vunpack.c.h.b16 %v34
  %v175 = vunpack.c.l.b16 %v35
  %v176 = vunpack.c.l.b16 %v36
  %v177 = vunpack.c.h.b16 %v36
  %v178 = vunpack.c.l.b16 %v37
  %v179 = vunpack.c.h.b16 %v37
  %v180 = vunpack.c.l.b16 %v38
  %v181 = vunpack.c.l.b16 %v39
  %v182 = vunpack.c.h.b16 %v39
  %v183 = vunpack.c.l.b16 %v40
  %v184 = vunpack.c.h.b16 %v40
  %v185 = vunpack.c.l.b16 %v41
  %v186 = vpack.c.b16 %v151, %v146
  %v187 = vpack.c.b16 %v152, %v147
  %v188 = vpack.c.b16 %v153, %v148
  %v189 = vpack.c.b16 %v154, %v149
  %v190 = vpack.c.b16 %v155, %v150
  %v191 = vpack.c.b16 %v161, %v156
  %v192 = vpack.c.b16 %v162, %v157
  %v193 = vpack.c.b16 %v163, %v158
  %v194 = vpack.c.b16 %v164, %v159
  %v195 = vpack.c.b16 %v165, %v160
  %v196 = vpack.c.b16 %v171, %v166
  %v197 = vpack.c.b16 %v172, %v167
  %v198 = vpack.c.b16 %v173, %v168
  %v199 = vpack.c.b16 %v174, %v169
  %v200 = vpack.c.b16 %v175, %v170
  %v201 = vpack.c.b16 %v181, %v176
  %v202 = vpack.c.b16 %v182, %v177
  %v203 = vpack.c.b16 %v183, %v178
  %v204 = vpack.c.b16 %v184, %v179
  %v205 = vpack.c.b16 %v185, %v180
  %v306 = vunpack.c.l.b16 %v42
  %v307 = vunpack.c.l.b16 %v43
  %v308 = vunpack.c.l.b16 %v44
  %v309 = vunpack.c.l.b16 %v45
  %v310 = vunpack.c.l.b16 %v46
  %v311 = vunpack.c.l.b16 %v47
  %v312 = vunpack.c.l.b16 %v48
  %v313 = vunpack.c.l.b16 %v49
  %v314 = vunpack.c.l.b16 %v50
  %v315 = vunpack.c.l.b16 %v51
  %v316 = vunpack.c.l.b16 %v52
  %v317 = vunpack.c.l.b16 %v53
  %v318 = vunpack.c.l.b16 %v54
  %v319 = vunpack.c.l.b16 %v55
  %v320 = vunpack.c.l.b16 %v56
  %v321 = vunpack.c.l.b16 %v57
  %v322 = vunpack.c.l.b16 %v58
  %v323 = vunpack.c.l.b16 %v59
  %v324 = vunpack.c.l.b16 %v60
  %v325 = vunpack.c.l.b16 %v61
  %v326 = vunpack.c.l.b16 %v62
  %v327 = vunpack.c.l.b16 %v63
  %v328 = vunpack.c.l.b16 %v64
  %v329 = vunpack.c.l.b16 %v65
  %v330 = vunpack.c.l.b16 %v66
  %v331 = vunpack.c.l.b16 %v67
  %v332 = vunpack.c.l.b16 %v68
  %v333 = vunpack.c.l.b16 %v69
  %v334 = vunpack.c.l.b16 %v70
  %v335 = vunpack.c.l.b16 %v71
  %v336 = vunpack.c.l.b16 %v72
  %v337 = vunpack.c.l.b16 %v73
  %v338 = vunpack.c.l.b16 %v74
  %v339 = vunpack.c.l.b16 %v75
  %v340 = vunpack.c.l.b16 %v76
  %v341 = vunpack.c.l.b16 %v77
  %v342 = vunpack.c.l.b16 %v78
  %v343 = vunpack.c.l.b16 %v79
  %v344 = vunpack.c.l.b16 %v80
  %v345 = vunpack.c.l.b16 %v81
  %v346 = vunpack.c.l.b16 %v82
  %v347 = vunpack.c.l.b16 %v83
  %v348 = vunpack.c.l.b16 %v84
  %v349 = vunpack.c.l.b16 %v85
  %v350 = vunpack.c.l.b16 %v86
  %v351 = vunpack.c.l.b16 %v87
  %v352 = vunpack.c.l.b16 %v88
  %v353 = vunpack.c.l.b16 %v89
  %v354 = vunpack.c.l.b16 %v90
  %v355 = vunpack.c.l.b16 %v91
  %v356 = vunpack.c.l.b16 %v92
  %v357 = vunpack.c.l.b16 %v93
  %v358 = vunpack.c.l.b16 %v94
  %v359 = vunpack.c.l.b16 %v95
  %v360 = vunpack.c.l.b16 %v96
  %v361 = vunpack.c.l.b16 %v97
  %v362 = vunpack.c.l.b16 %v98
  %v363 = vunpack.c.l.b16 %v99
  %v364 = vunpack.c.l.b16 %v100
  %v365 = vunpack.c.l.b16 %v101
  %v366 = vunpack.c.l.b16 %v102
  %v367 = vunpack.c.l.b16 %v103
  %v368 = vunpack.c.l.b16 %v104
  %v369 = vunpack.c.l.b16 %v105
  %v370 = vunpack.c.l.b16 %v106
  %v371 = vunpack.c.l.b16 %v107
  %v372 = vunpack.c.l.b16 %v108
  %v373 = vunpack.c.l.b16 %v109
  %v374 = vunpack.c.l.b16 %v110
  %v375 = vunpack.c.l.b16 %v111
  %v376 = vunpack.c.l.b16 %v112
  %v377 = vunpack.c.l.b16 %v113
  %v378 = vunpack.c.l.b16 %v114
  %v379 = vunpack.c.l.b16 %v115
  %v380 = vunpack.c.l.b16 %v116
  %v381 = vunpack.c.l.b16 %v117
  %v382 = vunpack.c.l.b16 %v118
  %v383 = vunpack.c.l.b16 %v119
  %v384 = vunpack.c.l.b16 %v120
  %v385 = vunpack.c.l.b16 %v121
  %v386 = vpack.c.b16 %v307, %v306
  %v387 = vpack.c.b16 %v309, %v308
  %v388 = vpack.c.b16 %v311, %v310
  %v389 = vpack.c.b16 %v313, %v312
  %v390 = vpack.c.b16 %v315, %v314
  %v391 = vpack.c.b16 %v317, %v316
  %v392 = vpack.c.b16 %v319, %v318
  %v393 = vpack.c.b16 %v321, %v320
  %v394 = vpack.c.b16 %v323, %v322
  %v395 = vpack.c.b16 %v325, %v324
  %v396 = vpack.c.b16 %v327, %v326
  %v397 = vpack.c.b16 %v329, %v328
  %v398 = vpack.c.b16 %v331, %v330
  %v399 = vpack.c.b16 %v333, %v332
  %v400 = vpack.c.b16 %v335, %v334
  %v401 = vpack.c.b16 %v337, %v336
  %v402 = vpack.c.b16 %v339, %v338
  %v403 = vpack.c.b16 %v341, %v340
  %v404 = vpack.c.b16 %v343, %v342
  %v405 = vpack.c.b16 %v345, %v344
  %v406 = vpack.c.b16 %v347, %v346
  %v407 = vpack.c.b16 %v349, %v348
  %v408 = vpack.c.b16 %v351, %v350
  %v409 = vpack.c.b16 %v353, %v352
  %v410 = vpack.c.b16 %v355, %v354
  %v411 = vpack.c.b16 %v357, %v356
  %v412 = vpack.c.b16 %v359, %v358
  %v413 = vpack.c.b16 %v361, %v360
  %v414 = vpack.c.b16 %v363, %v362
  %v415 = vpack.c.b16 %v365, %v364
  %v416 = vpack.c.b16 %v367, %v366
  %v417 = vpack.c.b16 %v369, %v368
  %v418 = vpack.c.b16 %v371, %v370
  %v419 = vpack.c.b16 %v373, %v372
  %v420 = vpack.c.b16 %v375, %v374
  %v421 = vpack.c.b16 %v377, %v376
  %v422 = vpack.c.b16 %v379, %v378
  %v423 = vpack.c.b16 %v381, %v380
  %v424 = vpack.c.b16 %v383, %v382
  %v425 = vpack.c.b16 %v385, %v384
  %466 = vmatprep.subr.bf16.mxu0 0
  %467 = vmatpush1.bf16.msra.mxu0 %v386
  %468 = vmatprep.subr.bf16.mxu0 0
  %469 = vmatpush1.bf16.msra.mxu0 %v387
  %470 = vmatprep.subr.bf16.mxu0 0
  %471 = vmatpush1.bf16.msra.mxu0 %v388
  %472 = vmatprep.subr.bf16.mxu0 0
  %473 = vmatpush1.bf16.msra.mxu0 %v389
  %474 = vmatprep.subr.bf16.mxu0 0
  %475 = vmatpush1.bf16.msra.mxu0 %v390
  %476 = vmatprep.subr.bf16.mxu0 0
  %477 = vmatpush1.bf16.msra.mxu0 %v391
  %478 = vmatprep.subr.bf16.mxu0 0
  %479 = vmatpush1.bf16.msra.mxu0 %v392
  %480 = vmatprep.subr.bf16.mxu0 0
  %481 = vmatpush1.bf16.msra.mxu0 %v393
  %482 = vmatprep.subr.bf16.mxu0 0
  %483 = vmatpush1.bf16.msra.mxu0 %v394
  %484 = vmatprep.subr.bf16.mxu0 0
  %485 = vmatpush1.bf16.msra.mxu0 %v395
  %486 = vmatprep.subr.bf16.mxu0 0
  %487 = vmatpush1.bf16.msra.mxu0 %v396
  %488 = vmatprep.subr.bf16.mxu0 0
  %489 = vmatpush1.bf16.msra.mxu0 %v397
  %490 = vmatprep.subr.bf16.mxu0 0
  %491 = vmatpush1.bf16.msra.mxu0 %v398
  %492 = vmatprep.subr.bf16.mxu0 0
  %493 = vmatpush1.bf16.msra.mxu0 %v399
  %494 = vmatprep.subr.bf16.mxu0 0
  %495 = vmatpush1.bf16.msra.mxu0 %v400
  %496 = vmatprep.subr.bf16.mxu0 0
  %497 = vmatpush1.bf16.msra.mxu0 %v401
  %498 = vmatprep.mubr.bf16.mxu0 %v187
  %499 = vmatmul.mubr.bf16.gmra.mrb[0].mxu0 %v186
  %v500 = vpop.f32.mrb[0].mxu0
  %v501 = vadd.f32 0.0, %v500
  %v502 = vpop.f32.mrb[0].mxu0
  %v503 = vpop.f32.mrb[0].mxu0
  %v504 = vadd.f32 0.0, %v503
  %v505 = vpop.f32.mrb[0].mxu0
  %506 = vmatprep.mubr.bf16.mxu0 %v192
  %507 = vmatmul.mubr.bf16.gmra.mrb[0].mxu0 %v191
  %v508 = vpop.f32.mrb[0].mxu0
  %v509 = vadd.f32 0.0, %v508
  %v510 = vpop.f32.mrb[0].mxu0
  %v511 = vpop.f32.mrb[0].mxu0
  %v512 = vadd.f32 0.0, %v511
  %v513 = vpop.f32.mrb[0].mxu0
  %514 = vmatprep.mubr.bf16.mxu0 %v197
  %515 = vmatmul.mubr.bf16.gmra.mrb[0].mxu0 %v196
  %v516 = vpop.f32.mrb[0].mxu0
  %v517 = vadd.f32 0.0, %v516
  %v518 = vpop.f32.mrb[0].mxu0
  %v519 = vpop.f32.mrb[0].mxu0
  %v520 = vadd.f32 0.0, %v519
  %v521 = vpop.f32.mrb[0].mxu0
  %522 = vmatprep.mubr.bf16.mxu0 %v202
  %523 = vmatmul.mubr.bf16.gmra.mrb[0].mxu0 %v201
  %v524 = vpop.f32.mrb[0].mxu0
  %v525 = vadd.f32 0.0, %v524
  %v526 = vpop.f32.mrb[0].mxu0
  %v527 = vpop.f32.mrb[0].mxu0
  %v528 = vadd.f32 0.0, %v527
  %v529 = vpop.f32.mrb[0].mxu0
  %530 = vdwg.mxu0
  %531 = vmatprep.subr.bf16.mxu0 0
  %532 = vmatpush1.bf16.msra.mxu0 %v402
  %533 = vmatprep.subr.bf16.mxu0 0
  %534 = vmatpush1.bf16.msra.mxu0 %v403
  %535 = vmatprep.subr.bf16.mxu0 0
  %536 = vmatpush1.bf16.msra.mxu0 %v404
  %537 = vmatprep.subr.bf16.mxu0 0
  %538 = vmatpush1.bf16.msra.mxu0 %v405
  %539 = vmatprep.subr.bf16.mxu0 0
  %540 = vmatpush1.bf16.msra.mxu0 %v406
  %541 = vmatprep.subr.bf16.mxu0 0
  %542 = vmatpush1.bf16.msra.mxu0 %v407
  %543 = vmatprep.subr.bf16.mxu0 0
  %544 = vmatpush1.bf16.msra.mxu0 %v408
  %545 = vmatprep.subr.bf16.mxu0 0
  %546 = vmatpush1.bf16.msra.mxu0 %v409
  %547 = vmatprep.subr.bf16.mxu0 0
  %548 = vmatpush1.bf16.msra.mxu0 %v410
  %549 = vmatprep.subr.bf16.mxu0 0
  %550 = vmatpush1.bf16.msra.mxu0 %v411
  %551 = vmatprep.subr.bf16.mxu0 0
  %552 = vmatpush1.bf16.msra.mxu0 %v412
  %553 = vmatprep.subr.bf16.mxu0 0
  %554 = vmatpush1.bf16.msra.mxu0 %v413
  %555 = vmatprep.subr.bf16.mxu0 0
  %556 = vmatpush1.bf16.msra.mxu0 %v414
  %557 = vmatprep.subr.bf16.mxu0 0
  %558 = vmatpush1.bf16.msra.mxu0 %v415
  %559 = vmatprep.subr.bf16.mxu0 0
  %560 = vmatpush1.bf16.msra.mxu0 %v416
  %561 = vmatprep.subr.bf16.mxu0 0
  %562 = vmatpush1.bf16.msra.mxu0 %v417
  %563 = vmatprep.mubr.bf16.mxu0 %v189
  %564 = vmatmul.mubr.bf16.gmra.mrb[0].mxu0 %v188
  %v565 = vpop.f32.mrb[0].mxu0
  %v566 = vadd.f32 %v501, %v565
  %v567 = vpop.f32.mrb[0].mxu0
  %v568 = vpop.f32.mrb[0].mxu0
  %v569 = vadd.f32 %v504, %v568
  %v570 = vpop.f32.mrb[0].mxu0
  %571 = vmatprep.mubr.bf16.mxu0 %v194
  %572 = vmatmul.mubr.bf16.gmra.mrb[0].mxu0 %v193
  %v573 = vpop.f32.mrb[0].mxu0
  %v574 = vadd.f32 %v509, %v573
  %v575 = vpop.f32.mrb[0].mxu0
  %v576 = vpop.f32.mrb[0].mxu0
  %v577 = vadd.f32 %v512, %v576
  %v578 = vpop.f32.mrb[0].mxu0
  %579 = vmatprep.mubr.bf16.mxu0 %v199
  %580 = vmatmul.mubr.bf16.gmra.mrb[0].mxu0 %v198
  %v581 = vpop.f32.mrb[0].mxu0
  %v582 = vadd.f32 %v517, %v581
  %v583 = vpop.f32.mrb[0].mxu0
  %v584 = vpop.f32.mrb[0].mxu0
  %v585 = vadd.f32 %v520, %v584
  %v586 = vpop.f32.mrb[0].mxu0
  %587 = vmatprep.mubr.bf16.mxu0 %v204
  %588 = vmatmul.mubr.bf16.gmra.mrb[0].mxu0 %v203
  %v589 = vpop.f32.mrb[0].mxu0
  %v590 = vadd.f32 %v525, %v589
  %v591 = vpop.f32.mrb[0].mxu0
  %v592 = vpop.f32.mrb[0].mxu0
  %v593 = vadd.f32 %v528, %v592
  %v594 = vpop.f32.mrb[0].mxu0
  %595 = vdwg.mxu0
  %596 = vmatprep.subr.bf16.mxu0 0
  %597 = vmatpush1.bf16.msra.mxu0 %v418
  %598 = vmatprep.subr.bf16.mxu0 0
  %599 = vmatpush1.bf16.msra.mxu0 %v419
  %600 = vmatprep.subr.bf16.mxu0 0
  %601 = vmatpush1.bf16.msra.mxu0 %v420
  %602 = vmatprep.subr.bf16.mxu0 0
  %603 = vmatpush1.bf16.msra.mxu0 %v421
  %604 = vmatprep.subr.bf16.mxu0 0
  %605 = vmatpush1.bf16.msra.mxu0 %v422
  %606 = vmatprep.subr.bf16.mxu0 0
  %607 = vmatpush1.bf16.msra.mxu0 %v423
  %608 = vmatprep.subr.bf16.mxu0 0
  %609 = vmatpush1.bf16.msra.mxu0 %v424
  %610 = vmatprep.subr.bf16.mxu0 0
  %611 = vmatpush1.bf16.msra.mxu0 %v425
  %612 = vmatprep.subr.bf16.mxu0 0
  %613 = vmatpush1.bf16.msra.mxu0 0
  %614 = vmatprep.subr.bf16.mxu0 0
  %615 = vmatpush1.bf16.msra.mxu0 0
  %616 = vmatprep.subr.bf16.mxu0 0
  %617 = vmatpush1.bf16.msra.mxu0 0
  %618 = vmatprep.subr.bf16.mxu0 0
  %619 = vmatpush1.bf16.msra.mxu0 0
  %620 = vmatprep.subr.bf16.mxu0 0
  %621 = vmatpush1.bf16.msra.mxu0 0
  %622 = vmatprep.subr.bf16.mxu0 0
  %623 = vmatpush1.bf16.msra.mxu0 0
  %624 = vmatprep.subr.bf16.mxu0 0
  %625 = vmatpush1.bf16.msra.mxu0 0
  %626 = vmatprep.subr.bf16.mxu0 0
  %627 = vmatpush1.bf16.msra.mxu0 0
  %628 = vmatprep.mubr.bf16.mxu0 0
  %629 = vmatmul.mubr.bf16.gmra.mrb[0].mxu0 %v190
  %v630 = vpop.f32.mrb[0].mxu0
  %v631 = vadd.f32 %v566, %v630
  %v632 = vpop.f32.mrb[0].mxu0
  %v633 = vpop.f32.mrb[0].mxu0
  %v634 = vadd.f32 %v569, %v633
  %v635 = vpop.f32.mrb[0].mxu0
  %636 = vmatprep.mubr.bf16.mxu0 0
  %637 = vmatmul.mubr.bf16.gmra.mrb[0].mxu0 %v195
  %v638 = vpop.f32.mrb[0].mxu0
  %v639 = vadd.f32 %v574, %v638
  %v640 = vpop.f32.mrb[0].mxu0
  %v641 = vpop.f32.mrb[0].mxu0
  %v642 = vadd.f32 %v577, %v641
  %v643 = vpop.f32.mrb[0].mxu0
  %644 = vmatprep.mubr.bf16.mxu0 0
  %645 = vmatmul.mubr.bf16.gmra.mrb[0].mxu0 %v200
  %v646 = vpop.f32.mrb[0].mxu0
  %v647 = vadd.f32 %v582, %v646
  %v648 = vpop.f32.mrb[0].mxu0
  %v649 = vpop.f32.mrb[0].mxu0
  %v650 = vadd.f32 %v585, %v649
  %v651 = vpop.f32.mrb[0].mxu0
  %652 = vmatprep.mubr.bf16.mxu0 0
  %653 = vmatmul.mubr.bf16.gmra.mrb[0].mxu0 %v205
  %v654 = vpop.f32.mrb[0].mxu0
  %v655 = vadd.f32 %v590, %v654
  %v656 = vpop.f32.mrb[0].mxu0
  %v657 = vpop.f32.mrb[0].mxu0
  %v658 = vadd.f32 %v593, %v657
  %v659 = vpop.f32.mrb[0].mxu0
  %660 = vdwg.mxu0
  %v661 = vld [vmem:[%s2] sm:$0xff]
  %v662 = vld [vmem:[%s2 + $0x8] sm:$0xff]
  %v663 = vld [vmem:[%s2 + $0x10] sm:$0xff]
  %v664 = vld [vmem:[%s2 + $0x18] sm:$0xff]
  %v665 = vld [vmem:[%s2 + $0x20] sm:$0xff]
  %v666 = vld [vmem:[%s2 + $0x28] sm:$0xff]
  %v667 = vld [vmem:[%s2 + $0x30] sm:$0xff]
  %v668 = vld [vmem:[%s2 + $0x38] sm:$0xff]
  %670 = vset.pattern.permute.xlu0 0
  %671 = vperm.xlu0 %670, %v661
  %v672 = vpop.permute.xlu0 %671
  %675 = vset.pattern.permute.xlu0 0
  %676 = vperm.xlu0 %675, %v662
  %v677 = vpop.permute.xlu0 %676
  %680 = vset.pattern.permute.xlu0 0
  %681 = vperm.xlu0 %680, %v663
  %v682 = vpop.permute.xlu0 %681
  %685 = vset.pattern.permute.xlu0 0
  %686 = vperm.xlu0 %685, %v664
  %v687 = vpop.permute.xlu0 %686
  %690 = vset.pattern.permute.xlu0 0
  %691 = vperm.xlu0 %690, %v665
  %v692 = vpop.permute.xlu0 %691
  %695 = vset.pattern.permute.xlu0 0
  %696 = vperm.xlu0 %695, %v666
  %v697 = vpop.permute.xlu0 %696
  %700 = vset.pattern.permute.xlu0 0
  %701 = vperm.xlu0 %700, %v667
  %v702 = vpop.permute.xlu0 %701
  %705 = vset.pattern.permute.xlu0 0
  %706 = vperm.xlu0 %705, %v668
  %v707 = vpop.permute.xlu0 %706
  %v709 = vmul.f32 %v631, %v672
  %v710 = vmul.f32 %v634, %v677
  %v711 = vmul.f32 %v639, %v682
  %v712 = vmul.f32 %v642, %v687
  %v713 = vmul.f32 %v647, %v692
  %v714 = vmul.f32 %v650, %v697
  %v715 = vmul.f32 %v655, %v702
  %v716 = vmul.f32 %v658, %v707
  %v717 = vld [vmem:[%s3] sm:$0xff]
  %v718 = vld [vmem:[%s3 + $0x8] sm:$0xff]
  %v719 = vld [vmem:[%s3 + $0x10] sm:$0xff]
  %v720 = vld [vmem:[%s3 + $0x18] sm:$0xff]
  %v721 = vld [vmem:[%s3 + $0x20] sm:$0xff]
  %v722 = vld [vmem:[%s3 + $0x28] sm:$0xff]
  %v723 = vld [vmem:[%s3 + $0x30] sm:$0xff]
  %v724 = vld [vmem:[%s3 + $0x38] sm:$0xff]
  %726 = vset.pattern.permute.xlu0 0
  %727 = vperm.xlu0 %726, %v717
  %v728 = vpop.permute.xlu0 %727
  %731 = vset.pattern.permute.xlu0 0
  %732 = vperm.xlu0 %731, %v718
  %v733 = vpop.permute.xlu0 %732
  %736 = vset.pattern.permute.xlu0 0
  %737 = vperm.xlu0 %736, %v719
  %v738 = vpop.permute.xlu0 %737
  %741 = vset.pattern.permute.xlu0 0
  %742 = vperm.xlu0 %741, %v720
  %v743 = vpop.permute.xlu0 %742
  %746 = vset.pattern.permute.xlu0 0
  %747 = vperm.xlu0 %746, %v721
  %v748 = vpop.permute.xlu0 %747
  %751 = vset.pattern.permute.xlu0 0
  %752 = vperm.xlu0 %751, %v722
  %v753 = vpop.permute.xlu0 %752
  %756 = vset.pattern.permute.xlu0 0
  %757 = vperm.xlu0 %756, %v723
  %v758 = vpop.permute.xlu0 %757
  %761 = vset.pattern.permute.xlu0 0
  %762 = vperm.xlu0 %761, %v724
  %v763 = vpop.permute.xlu0 %762
  %v765 = vadd.f32 %v709, %v728
  %v766 = vadd.f32 %v710, %v733
  %v767 = vadd.f32 %v711, %v738
  %v768 = vadd.f32 %v712, %v743
  %v769 = vadd.f32 %v713, %v748
  %v770 = vadd.f32 %v714, %v753
  %v771 = vadd.f32 %v715, %v758
  %v772 = vadd.f32 %v716, %v763
  %v773 = vmax.f32 %v765, 0.0
  %v774 = vmax.f32 %v766, 0.0
  %v775 = vmax.f32 %v767, 0.0
  %v776 = vmax.f32 %v768, 0.0
  %v777 = vmax.f32 %v769, 0.0
  %v778 = vmax.f32 %v770, 0.0
  %v779 = vmax.f32 %v771, 0.0
  %v780 = vmax.f32 %v772, 0.0
  %781 = vst [vmem:[%s4] sm:$0xff] %v773
  %782 = vst [vmem:[%s4 + $0x8] sm:$0xff] %v774
  %783 = vst [vmem:[%s4 + $0x10] sm:$0xff] %v775
  %784 = vst [vmem:[%s4 + $0x18] sm:$0xff] %v776
  %785 = vst [vmem:[%s4 + $0x20] sm:$0xff] %v777
  %786 = vst [vmem:[%s4 + $0x28] sm:$0xff] %v778
  %787 = vst [vmem:[%s4 + $0x30] sm:$0xff] %v779
  %788 = vst [vmem:[%s4 + $0x38] sm:$0xff] %v780
  // Predicated region
  $region18: #{_lambda_.40} parent=0 // pred_check
    _
  $region19: #{_lambda_.40} parent=0 // pred_check_branch
    %790 = sbr.rel (0) target = $region21
  $region20: #{_lambda_.40} parent=0 // pred_region
    _
  $region21: #{_lambda_.40} parent=0 // pred_fallthru
    _
  // Predicated region
  $region22: #{_lambda_.40} parent=0 // pred_check
    _
  $region23: #{_lambda_.40} parent=0 // pred_check_branch
    %792 = sbr.rel (0) target = $region25
  $region24: #{_lambda_.40} parent=0 // pred_region
    _
  $region25: #{_lambda_.40} parent=0 // pred_fallthru
    _

</llo_original>
